<compile_context>
chip_gen: v7x
topology: tpu7x:2x2x1
jax: 0.10.0
libtpu: 0.0.40
codegen_flags: <defaults>
</compile_context>

<pallas_src>
import functools

import jax
import jax.numpy as jnp
from jax import lax
from jax.experimental import pallas as pl
from jax.experimental.pallas import tpu as pltpu


# ----------------------------- kernel ---------------------------------------

def _one_conv_kernel(x_ref, w0_ref, b0_ref, alpha_ref, w1_ref, b1_ref, s_ref,
                     o_ref, *, width):
    """Fused one_conv forward for one batch element (flattened-spatial layout).

    x_ref    : (1, Cin, H*W)   VMEM   input, spatial dims flattened (lane-dense)
    w0_ref   : (9, Cin, G, 1)  VMEM   conv  weights: (tap, ci) -> (G, 1) column
    b0_ref   : (G, 1)          VMEM
    alpha_ref: (G, 1)          VMEM   PReLU slopes
    w1_ref   : (9, G, Cin, 1)  VMEM   conv1 weights: (tap, ci) -> (Cin, 1) column
    b1_ref   : (Cin, 1)        VMEM
    s_ref    : (2,)            SMEM   (scale1, scale2)
    o_ref    : (1, Cin, H*W)   VMEM
    """
    _, cin, hw = x_ref.shape
    g = b0_ref.shape[0]
    x = x_ref[...].astype(jnp.float32)

    # Column-boundary masks: realize the zero "SAME" padding for dx = +/-1 taps
    # on the flattened axis (row padding falls out of the zero-filled shift).
    col = lax.broadcasted_iota(jnp.int32, (1, 1, hw), 2) % width
    mask_p = (col != width - 1).astype(jnp.float32)   # tap reads column c + 1
    mask_m = (col != 0).astype(jnp.float32)           # tap reads column c - 1

    def shift_zero(v, s):
        # out[..., i] = v[..., i + s] if 0 <= i + s < hw else 0   (s static)
        if s == 0:
            return v
        pad = jnp.zeros(v.shape[:-1] + (abs(s),), v.dtype)
        if s > 0:
            return jnp.concatenate(
                [lax.slice_in_dim(v, s, hw, axis=2), pad], axis=2)
        return jnp.concatenate(
            [pad, lax.slice_in_dim(v, 0, hw + s, axis=2)], axis=2)

    def conv3x3(v, w_ref, b_col, n_in, n_out):
        # v: (1, n_in, hw) -> (1, n_out, hw).  Pure VPU: each (tap, ci) is one
        # broadcast FMA of a (n_out, 1) weight column against a shifted plane.
        acc = jnp.zeros((v.shape[0], n_out, hw), jnp.float32) + b_col
        t = 0
        for dy in (-1, 0, 1):
            for dx in (-1, 0, 1):
                tap = shift_zero(v, dy * width + dx)      # (1, n_in, hw)
                if dx == 1:
                    tap = tap * mask_p
                elif dx == -1:
                    tap = tap * mask_m
                for ci in range(n_in):
                    acc = acc + w_ref[t, ci] * tap[:, ci:ci + 1, :]
                t += 1
        return acc

    # conv (Cin -> G) + bias + per-channel PReLU; h never leaves the chip.
    h = conv3x3(x, w0_ref, b0_ref[...], cin, g)           # (1, G, hw)
    alpha = alpha_ref[...]                                 # (G, 1)
    h = jnp.where(h > 0, h, alpha * h)

    # conv1 (G -> Cin) + bias, then out = scale1*x + scale2*conv1(...)
    y = conv3x3(h, w1_ref, b1_ref[...], g, cin)            # (1, Cin, hw)
    o_ref[...] = (s_ref[0] * x + s_ref[1] * y).astype(o_ref.dtype)


# ----------------------------- wrapper ---------------------------------------

def one_conv_forward(x_nchw, params):
    """Forward of one_conv (relu=True). x_nchw: (N, Cin, H, W) float32."""
    N, Cin, H, W = x_nchw.shape
    G = params["b0"].shape[0]
    HW = H * W

    # Lane-dense view: (N, Cin, H*W); pure reshape (row-major contiguous).
    x_flat = x_nchw.reshape(N, Cin, HW)

    # Weights rearranged to broadcast-ready columns: (tap, ci) -> (Cout, 1).
    # PyTorch OIHW (co, ci, ky, kx) -> (ky, kx, ci, co) -> (9, ci, co, 1).
    w0_cols = jnp.transpose(params["w0"], (2, 3, 1, 0)).reshape(
        9, Cin, G, 1).astype(jnp.float32)
    w1_cols = jnp.transpose(params["w1"], (2, 3, 1, 0)).reshape(
        9, G, Cin, 1).astype(jnp.float32)
    b0_col = params["b0"].reshape(G, 1).astype(jnp.float32)
    b1_col = params["b1"].reshape(Cin, 1).astype(jnp.float32)
    alpha_col = params["alpha"].reshape(G, 1).astype(jnp.float32)
    scales = jnp.stack(
        [params["scale1"].reshape(()), params["scale2"].reshape(())]
    ).astype(jnp.float32)                                  # (2,)

    img = pl.BlockSpec((1, Cin, HW), lambda n: (n, 0, 0))
    vmem = pl.BlockSpec(memory_space=pltpu.MemorySpace.VMEM)
    smem = pl.BlockSpec(memory_space=pltpu.MemorySpace.SMEM)

    out_flat = pl.pallas_call(
        functools.partial(_one_conv_kernel, width=W),
        out_shape=jax.ShapeDtypeStruct((N, Cin, HW), x_nchw.dtype),
        grid=(N,),
        in_specs=[img, vmem, vmem, vmem, vmem, vmem, smem],
        out_specs=img,
        compiler_params=pltpu.CompilerParams(
            dimension_semantics=("parallel",),
            vmem_limit_bytes=32 * 1024 * 1024,
        ),
    )(x_flat, w0_cols, b0_col, alpha_col, w1_cols, b1_col, scales)

    return out_flat.reshape(N, Cin, H, W)


# ----------------------------- reference -------------------------------------

def one_conv_reference(x, params):
    dn = ("NCHW", "OIHW", "NCHW")
    G = params["b0"].shape[0]
    Cin = x.shape[1]
    h = lax.conv_general_dilated(x, params["w0"], (1, 1), "SAME",
                                 dimension_numbers=dn)
    h = h + params["b0"].reshape(1, G, 1, 1)
    h = jnp.where(h > 0, h, params["alpha"].reshape(1, G, 1, 1) * h)
    c = lax.conv_general_dilated(h, params["w1"], (1, 1), "SAME",
                                 dimension_numbers=dn)
    c = c + params["b1"].reshape(1, Cin, 1, 1)
    return params["scale1"] * x + params["scale2"] * c


# ----------------------------- main -------------------------------------------

if __name__ == "__main__":
    N, Cin, H, W = 2, 4, 16, 16
    G = 8  # growth_rate

    key = jax.random.PRNGKey(0)
    k_x, k_w0, k_b0, k_w1, k_b1 = jax.random.split(key, 5)

    x = jax.random.normal(k_x, (N, Cin, H, W), jnp.float32)

    # Weights kept in PyTorch (Cout, Cin, kh, kw) layout at the interface.
    params = {
        "w0": 0.1 * jax.random.normal(k_w0, (G, Cin, 3, 3), jnp.float32),
        "b0": 0.01 * jax.random.normal(k_b0, (G,), jnp.float32),
        "w1": 0.1 * jax.random.normal(k_w1, (Cin, G, 3, 3), jnp.float32),
        "b1": 0.01 * jax.random.normal(k_b1, (Cin,), jnp.float32),
        "alpha": jnp.full((G,), 0.25, jnp.float32),   # PReLU default init
        "scale1": jnp.array([1.0], jnp.float32),      # blocks.Scale(1)
        "scale2": jnp.array([1.0], jnp.float32),
    }

    out = jax.jit(one_conv_forward)(x, params)
    out = jax.block_until_ready(out)

    ref = one_conv_reference(x, params)
    assert out.shape == (N, Cin, H, W)
    assert jnp.allclose(out, ref, atol=1e-4, rtol=1e-4), "mismatch vs reference"

    print("KERNEL_OK")
</pallas_src>

<mosaic_0001>
module attributes {stable_mosaic.version = 11 : i64} {
  func.func @_one_conv_kernel(%arg0: i32, %arg1: memref<1x4x256xf32, #tpu.memory_space<vmem>>, %arg2: memref<9x4x8x1xf32, #tpu.memory_space<vmem>>, %arg3: memref<8x1xf32, #tpu.memory_space<vmem>>, %arg4: memref<8x1xf32, #tpu.memory_space<vmem>>, %arg5: memref<9x8x4x1xf32, #tpu.memory_space<vmem>>, %arg6: memref<4x1xf32, #tpu.memory_space<vmem>>, %arg7: memref<2xf32, #tpu.memory_space<smem>>, %arg8: memref<1x4x256xf32, #tpu.memory_space<vmem>>) attributes {dimension_semantics = [#tpu.dimension_semantics<parallel>], iteration_bounds = array<i64: 2>, scalar_prefetch = 0 : i64, scratch_operands = 0 : i64, tpu.core_type = #tpu.core_type<tc>, window_params = [{transform_indices = @transform_0, window_bounds = array<i64: 1, 4, 256>}, {pipeline_mode = #tpu.pipeline_mode<synchronous>, transform_indices = @transform_1, window_bounds = array<i64: 9, 4, 8, 1>}, {pipeline_mode = #tpu.pipeline_mode<synchronous>, transform_indices = @transform_2, window_bounds = array<i64: 8, 1>}, {pipeline_mode = #tpu.pipeline_mode<synchronous>, transform_indices = @transform_3, window_bounds = array<i64: 8, 1>}, {pipeline_mode = #tpu.pipeline_mode<synchronous>, transform_indices = @transform_4, window_bounds = array<i64: 9, 8, 4, 1>}, {pipeline_mode = #tpu.pipeline_mode<synchronous>, transform_indices = @transform_5, window_bounds = array<i64: 4, 1>}, {transform_indices = @transform_6, window_bounds = array<i64: 2>}, {transform_indices = @transform_7, window_bounds = array<i64: 1, 4, 256>}]} {
    %c0 = arith.constant 0 : index
    %c0_0 = arith.constant 0 : index
    %c0_1 = arith.constant 0 : index
    %0 = vector.load %arg1[%c0, %c0_0, %c0_1] : memref<1x4x256xf32, #tpu.memory_space<vmem>>, vector<1x4x256xf32>
    %1 = tpu.iota {dimensions = array<i32: 2>} : vector<1x1x256xi32>
    %c16_i32 = arith.constant 16 : i32
    %c0_i32 = arith.constant 0 : i32
    %2 = arith.cmpi eq, %c16_i32, %c0_i32 : i32
    %c1_i32 = arith.constant 1 : i32
    %3 = arith.select %2, %c1_i32, %c16_i32 : i32
    %4 = vector.broadcast %3 : i32 to vector<1x1x256xi32>
    %5 = arith.remsi %1, %4 : vector<1x1x256xi32>
    %c0_i32_2 = arith.constant 0 : i32
    %6 = vector.broadcast %c0_i32_2 : i32 to vector<1x1x256xi32>
    %7 = arith.cmpi ne, %5, %6 : vector<1x1x256xi32>
    %c0_i32_3 = arith.constant 0 : i32
    %8 = vector.broadcast %c0_i32_3 : i32 to vector<1x1x256xi32>
    %9 = arith.cmpi slt, %5, %8 : vector<1x1x256xi32>
    %c0_i32_4 = arith.constant 0 : i32
    %10 = arith.cmpi slt, %3, %c0_i32_4 : i32
    %11 = vector.broadcast %10 : i1 to vector<1x1x256xi1>
    %12 = vector.broadcast %11 : vector<1x1x256xi1> to vector<1x1x256xi1>
    %13 = arith.xori %9, %12 : vector<1x1x256xi1>
    %14 = arith.andi %13, %7 : vector<1x1x256xi1>
    %15 = vector.broadcast %3 : i32 to vector<1x1x256xi32>
    %16 = arith.addi %5, %15 : vector<1x1x256xi32>
    %17 = arith.select %14, %16, %5 : vector<1x1x256xi1>, vector<1x1x256xi32>
    %c15_i32 = arith.constant 15 : i32
    %18 = vector.broadcast %c15_i32 : i32 to vector<1x1x256xi32>
    %19 = arith.cmpi ne, %17, %18 : vector<1x1x256xi32>
    %20 = arith.extui %19 : vector<1x1x256xi1> to vector<1x1x256xi32>
    %21 = arith.sitofp %20 : vector<1x1x256xi32> to vector<1x1x256xf32>
    %c0_i32_5 = arith.constant 0 : i32
    %22 = vector.broadcast %c0_i32_5 : i32 to vector<1x1x256xi32>
    %23 = arith.cmpi ne, %17, %22 : vector<1x1x256xi32>
    %24 = arith.extui %23 : vector<1x1x256xi1> to vector<1x1x256xi32>
    %25 = arith.sitofp %24 : vector<1x1x256xi32> to vector<1x1x256xf32>
    %c0_6 = arith.constant 0 : index
    %c0_7 = arith.constant 0 : index
    %26 = vector.load %arg3[%c0_6, %c0_7] : memref<8x1xf32, #tpu.memory_space<vmem>>, vector<8x1xf32>
    %cst = arith.constant 0.000000e+00 : f32
    %27 = vector.broadcast %cst : f32 to vector<1x8x256xf32>
    %28 = vector.shape_cast %26 : vector<8x1xf32> to vector<1x8x1xf32>
    %29 = vector.broadcast %28 : vector<1x8x1xf32> to vector<1x8x256xf32>
    %30 = arith.addf %27, %29 : vector<1x8x256xf32>
    %cst_8 = arith.constant 0.000000e+00 : f32
    %31 = vector.broadcast %cst_8 : f32 to vector<1x4x17xf32>
    %32 = vector.extract_strided_slice %0 {offsets = [0, 0, 0], sizes = [1, 4, 239], strides = [1, 1, 1]} : vector<1x4x256xf32> to vector<1x4x239xf32>
    %33 = tpu.concatenate %31, %32 in 2 : vector<1x4x17xf32>, vector<1x4x239xf32> -> vector<1x4x256xf32>
    %34 = vector.broadcast %25 : vector<1x1x256xf32> to vector<1x4x256xf32>
    %35 = arith.mulf %33, %34 : vector<1x4x256xf32>
    %c0_9 = arith.constant 0 : index
    %c0_10 = arith.constant 0 : index
    %c0_11 = arith.constant 0 : index
    %c0_12 = arith.constant 0 : index
    %36 = vector.load %arg2[%c0_9, %c0_10, %c0_11, %c0_12] : memref<9x4x8x1xf32, #tpu.memory_space<vmem>>, vector<1x1x8x1xf32>
    %37 = vector.shape_cast %36 : vector<1x1x8x1xf32> to vector<8x1xf32>
    %38 = vector.extract_strided_slice %35 {offsets = [0, 0, 0], sizes = [1, 1, 256], strides = [1, 1, 1]} : vector<1x4x256xf32> to vector<1x1x256xf32>
    %39 = vector.shape_cast %37 : vector<8x1xf32> to vector<1x8x1xf32>
    %40 = vector.broadcast %39 : vector<1x8x1xf32> to vector<1x8x256xf32>
    %41 = vector.broadcast %38 : vector<1x1x256xf32> to vector<1x8x256xf32>
    %42 = arith.mulf %40, %41 : vector<1x8x256xf32>
    %43 = arith.addf %30, %42 : vector<1x8x256xf32>
    %c0_13 = arith.constant 0 : index
    %c1 = arith.constant 1 : index
    %c0_14 = arith.constant 0 : index
    %c0_15 = arith.constant 0 : index
    %44 = vector.load %arg2[%c0_13, %c1, %c0_14, %c0_15] : memref<9x4x8x1xf32, #tpu.memory_space<vmem>>, vector<1x1x8x1xf32>
    %45 = vector.shape_cast %44 : vector<1x1x8x1xf32> to vector<8x1xf32>
    %46 = vector.extract_strided_slice %35 {offsets = [0, 1, 0], sizes = [1, 1, 256], strides = [1, 1, 1]} : vector<1x4x256xf32> to vector<1x1x256xf32>
    %47 = vector.shape_cast %45 : vector<8x1xf32> to vector<1x8x1xf32>
    %48 = vector.broadcast %47 : vector<1x8x1xf32> to vector<1x8x256xf32>
    %49 = vector.broadcast %46 : vector<1x1x256xf32> to vector<1x8x256xf32>
    %50 = arith.mulf %48, %49 : vector<1x8x256xf32>
    %51 = arith.addf %43, %50 : vector<1x8x256xf32>
    %c0_16 = arith.constant 0 : index
    %c2 = arith.constant 2 : index
    %c0_17 = arith.constant 0 : index
    %c0_18 = arith.constant 0 : index
    %52 = vector.load %arg2[%c0_16, %c2, %c0_17, %c0_18] : memref<9x4x8x1xf32, #tpu.memory_space<vmem>>, vector<1x1x8x1xf32>
    %53 = vector.shape_cast %52 : vector<1x1x8x1xf32> to vector<8x1xf32>
    %54 = vector.extract_strided_slice %35 {offsets = [0, 2, 0], sizes = [1, 1, 256], strides = [1, 1, 1]} : vector<1x4x256xf32> to vector<1x1x256xf32>
    %55 = vector.shape_cast %53 : vector<8x1xf32> to vector<1x8x1xf32>
    %56 = vector.broadcast %55 : vector<1x8x1xf32> to vector<1x8x256xf32>
    %57 = vector.broadcast %54 : vector<1x1x256xf32> to vector<1x8x256xf32>
    %58 = arith.mulf %56, %57 : vector<1x8x256xf32>
    %59 = arith.addf %51, %58 : vector<1x8x256xf32>
    %c0_19 = arith.constant 0 : index
    %c3 = arith.constant 3 : index
    %c0_20 = arith.constant 0 : index
    %c0_21 = arith.constant 0 : index
    %60 = vector.load %arg2[%c0_19, %c3, %c0_20, %c0_21] : memref<9x4x8x1xf32, #tpu.memory_space<vmem>>, vector<1x1x8x1xf32>
    %61 = vector.shape_cast %60 : vector<1x1x8x1xf32> to vector<8x1xf32>
    %62 = vector.extract_strided_slice %35 {offsets = [0, 3, 0], sizes = [1, 1, 256], strides = [1, 1, 1]} : vector<1x4x256xf32> to vector<1x1x256xf32>
    %63 = vector.shape_cast %61 : vector<8x1xf32> to vector<1x8x1xf32>
    %64 = vector.broadcast %63 : vector<1x8x1xf32> to vector<1x8x256xf32>
    %65 = vector.broadcast %62 : vector<1x1x256xf32> to vector<1x8x256xf32>
    %66 = arith.mulf %64, %65 : vector<1x8x256xf32>
    %67 = arith.addf %59, %66 : vector<1x8x256xf32>
    %cst_22 = arith.constant 0.000000e+00 : f32
    %68 = vector.broadcast %cst_22 : f32 to vector<1x4x16xf32>
    %69 = vector.extract_strided_slice %0 {offsets = [0, 0, 0], sizes = [1, 4, 240], strides = [1, 1, 1]} : vector<1x4x256xf32> to vector<1x4x240xf32>
    %70 = tpu.concatenate %68, %69 in 2 : vector<1x4x16xf32>, vector<1x4x240xf32> -> vector<1x4x256xf32>
    %c1_23 = arith.constant 1 : index
    %c0_24 = arith.constant 0 : index
    %c0_25 = arith.constant 0 : index
    %c0_26 = arith.constant 0 : index
    %71 = vector.load %arg2[%c1_23, %c0_24, %c0_25, %c0_26] : memref<9x4x8x1xf32, #tpu.memory_space<vmem>>, vector<1x1x8x1xf32>
    %72 = vector.shape_cast %71 : vector<1x1x8x1xf32> to vector<8x1xf32>
    %73 = vector.extract_strided_slice %70 {offsets = [0, 0, 0], sizes = [1, 1, 256], strides = [1, 1, 1]} : vector<1x4x256xf32> to vector<1x1x256xf32>
    %74 = vector.shape_cast %72 : vector<8x1xf32> to vector<1x8x1xf32>
    %75 = vector.broadcast %74 : vector<1x8x1xf32> to vector<1x8x256xf32>
    %76 = vector.broadcast %73 : vector<1x1x256xf32> to vector<1x8x256xf32>
    %77 = arith.mulf %75, %76 : vector<1x8x256xf32>
    %78 = arith.addf %67, %77 : vector<1x8x256xf32>
    %c1_27 = arith.constant 1 : index
    %c1_28 = arith.constant 1 : index
    %c0_29 = arith.constant 0 : index
    %c0_30 = arith.constant 0 : index
    %79 = vector.load %arg2[%c1_27, %c1_28, %c0_29, %c0_30] : memref<9x4x8x1xf32, #tpu.memory_space<vmem>>, vector<1x1x8x1xf32>
    %80 = vector.shape_cast %79 : vector<1x1x8x1xf32> to vector<8x1xf32>
    %81 = vector.extract_strided_slice %70 {offsets = [0, 1, 0], sizes = [1, 1, 256], strides = [1, 1, 1]} : vector<1x4x256xf32> to vector<1x1x256xf32>
    %82 = vector.shape_cast %80 : vector<8x1xf32> to vector<1x8x1xf32>
    %83 = vector.broadcast %82 : vector<1x8x1xf32> to vector<1x8x256xf32>
    %84 = vector.broadcast %81 : vector<1x1x256xf32> to vector<1x8x256xf32>
    %85 = arith.mulf %83, %84 : vector<1x8x256xf32>
    %86 = arith.addf %78, %85 : vector<1x8x256xf32>
    %c1_31 = arith.constant 1 : index
    %c2_32 = arith.constant 2 : index
    %c0_33 = arith.constant 0 : index
    %c0_34 = arith.constant 0 : index
    %87 = vector.load %arg2[%c1_31, %c2_32, %c0_33, %c0_34] : memref<9x4x8x1xf32, #tpu.memory_space<vmem>>, vector<1x1x8x1xf32>
    %88 = vector.shape_cast %87 : vector<1x1x8x1xf32> to vector<8x1xf32>
    %89 = vector.extract_strided_slice %70 {offsets = [0, 2, 0], sizes = [1, 1, 256], strides = [1, 1, 1]} : vector<1x4x256xf32> to vector<1x1x256xf32>
    %90 = vector.shape_cast %88 : vector<8x1xf32> to vector<1x8x1xf32>
    %91 = vector.broadcast %90 : vector<1x8x1xf32> to vector<1x8x256xf32>
    %92 = vector.broadcast %89 : vector<1x1x256xf32> to vector<1x8x256xf32>
    %93 = arith.mulf %91, %92 : vector<1x8x256xf32>
    %94 = arith.addf %86, %93 : vector<1x8x256xf32>
    %c1_35 = arith.constant 1 : index
    %c3_36 = arith.constant 3 : index
    %c0_37 = arith.constant 0 : index
    %c0_38 = arith.constant 0 : index
    %95 = vector.load %arg2[%c1_35, %c3_36, %c0_37, %c0_38] : memref<9x4x8x1xf32, #tpu.memory_space<vmem>>, vector<1x1x8x1xf32>
    %96 = vector.shape_cast %95 : vector<1x1x8x1xf32> to vector<8x1xf32>
    %97 = vector.extract_strided_slice %70 {offsets = [0, 3, 0], sizes = [1, 1, 256], strides = [1, 1, 1]} : vector<1x4x256xf32> to vector<1x1x256xf32>
    %98 = vector.shape_cast %96 : vector<8x1xf32> to vector<1x8x1xf32>
    %99 = vector.broadcast %98 : vector<1x8x1xf32> to vector<1x8x256xf32>
    %100 = vector.broadcast %97 : vector<1x1x256xf32> to vector<1x8x256xf32>
    %101 = arith.mulf %99, %100 : vector<1x8x256xf32>
    %102 = arith.addf %94, %101 : vector<1x8x256xf32>
    %cst_39 = arith.constant 0.000000e+00 : f32
    %103 = vector.broadcast %cst_39 : f32 to vector<1x4x15xf32>
    %104 = vector.extract_strided_slice %0 {offsets = [0, 0, 0], sizes = [1, 4, 241], strides = [1, 1, 1]} : vector<1x4x256xf32> to vector<1x4x241xf32>
    %105 = tpu.concatenate %103, %104 in 2 : vector<1x4x15xf32>, vector<1x4x241xf32> -> vector<1x4x256xf32>
    %106 = vector.broadcast %21 : vector<1x1x256xf32> to vector<1x4x256xf32>
    %107 = arith.mulf %105, %106 : vector<1x4x256xf32>
    %c2_40 = arith.constant 2 : index
    %c0_41 = arith.constant 0 : index
    %c0_42 = arith.constant 0 : index
    %c0_43 = arith.constant 0 : index
    %108 = vector.load %arg2[%c2_40, %c0_41, %c0_42, %c0_43] : memref<9x4x8x1xf32, #tpu.memory_space<vmem>>, vector<1x1x8x1xf32>
    %109 = vector.shape_cast %108 : vector<1x1x8x1xf32> to vector<8x1xf32>
    %110 = vector.extract_strided_slice %107 {offsets = [0, 0, 0], sizes = [1, 1, 256], strides = [1, 1, 1]} : vector<1x4x256xf32> to vector<1x1x256xf32>
    %111 = vector.shape_cast %109 : vector<8x1xf32> to vector<1x8x1xf32>
    %112 = vector.broadcast %111 : vector<1x8x1xf32> to vector<1x8x256xf32>
    %113 = vector.broadcast %110 : vector<1x1x256xf32> to vector<1x8x256xf32>
    %114 = arith.mulf %112, %113 : vector<1x8x256xf32>
    %115 = arith.addf %102, %114 : vector<1x8x256xf32>
    %c2_44 = arith.constant 2 : index
    %c1_45 = arith.constant 1 : index
    %c0_46 = arith.constant 0 : index
    %c0_47 = arith.constant 0 : index
    %116 = vector.load %arg2[%c2_44, %c1_45, %c0_46, %c0_47] : memref<9x4x8x1xf32, #tpu.memory_space<vmem>>, vector<1x1x8x1xf32>
    %117 = vector.shape_cast %116 : vector<1x1x8x1xf32> to vector<8x1xf32>
    %118 = vector.extract_strided_slice %107 {offsets = [0, 1, 0], sizes = [1, 1, 256], strides = [1, 1, 1]} : vector<1x4x256xf32> to vector<1x1x256xf32>
    %119 = vector.shape_cast %117 : vector<8x1xf32> to vector<1x8x1xf32>
    %120 = vector.broadcast %119 : vector<1x8x1xf32> to vector<1x8x256xf32>
    %121 = vector.broadcast %118 : vector<1x1x256xf32> to vector<1x8x256xf32>
    %122 = arith.mulf %120, %121 : vector<1x8x256xf32>
    %123 = arith.addf %115, %122 : vector<1x8x256xf32>
    %c2_48 = arith.constant 2 : index
    %c2_49 = arith.constant 2 : index
    %c0_50 = arith.constant 0 : index
    %c0_51 = arith.constant 0 : index
    %124 = vector.load %arg2[%c2_48, %c2_49, %c0_50, %c0_51] : memref<9x4x8x1xf32, #tpu.memory_space<vmem>>, vector<1x1x8x1xf32>
    %125 = vector.shape_cast %124 : vector<1x1x8x1xf32> to vector<8x1xf32>
    %126 = vector.extract_strided_slice %107 {offsets = [0, 2, 0], sizes = [1, 1, 256], strides = [1, 1, 1]} : vector<1x4x256xf32> to vector<1x1x256xf32>
    %127 = vector.shape_cast %125 : vector<8x1xf32> to vector<1x8x1xf32>
    %128 = vector.broadcast %127 : vector<1x8x1xf32> to vector<1x8x256xf32>
    %129 = vector.broadcast %126 : vector<1x1x256xf32> to vector<1x8x256xf32>
    %130 = arith.mulf %128, %129 : vector<1x8x256xf32>
    %131 = arith.addf %123, %130 : vector<1x8x256xf32>
    %c2_52 = arith.constant 2 : index
    %c3_53 = arith.constant 3 : index
    %c0_54 = arith.constant 0 : index
    %c0_55 = arith.constant 0 : index
    %132 = vector.load %arg2[%c2_52, %c3_53, %c0_54, %c0_55] : memref<9x4x8x1xf32, #tpu.memory_space<vmem>>, vector<1x1x8x1xf32>
    %133 = vector.shape_cast %132 : vector<1x1x8x1xf32> to vector<8x1xf32>
    %134 = vector.extract_strided_slice %107 {offsets = [0, 3, 0], sizes = [1, 1, 256], strides = [1, 1, 1]} : vector<1x4x256xf32> to vector<1x1x256xf32>
    %135 = vector.shape_cast %133 : vector<8x1xf32> to vector<1x8x1xf32>
    %136 = vector.broadcast %135 : vector<1x8x1xf32> to vector<1x8x256xf32>
    %137 = vector.broadcast %134 : vector<1x1x256xf32> to vector<1x8x256xf32>
    %138 = arith.mulf %136, %137 : vector<1x8x256xf32>
    %139 = arith.addf %131, %138 : vector<1x8x256xf32>
    %cst_56 = arith.constant 0.000000e+00 : f32
    %140 = vector.broadcast %cst_56 : f32 to vector<1x4x1xf32>
    %141 = vector.extract_strided_slice %0 {offsets = [0, 0, 0], sizes = [1, 4, 255], strides = [1, 1, 1]} : vector<1x4x256xf32> to vector<1x4x255xf32>
    %142 = tpu.concatenate %140, %141 in 2 : vector<1x4x1xf32>, vector<1x4x255xf32> -> vector<1x4x256xf32>
    %143 = vector.broadcast %25 : vector<1x1x256xf32> to vector<1x4x256xf32>
    %144 = arith.mulf %142, %143 : vector<1x4x256xf32>
    %c3_57 = arith.constant 3 : index
    %c0_58 = arith.constant 0 : index
    %c0_59 = arith.constant 0 : index
    %c0_60 = arith.constant 0 : index
    %145 = vector.load %arg2[%c3_57, %c0_58, %c0_59, %c0_60] : memref<9x4x8x1xf32, #tpu.memory_space<vmem>>, vector<1x1x8x1xf32>
    %146 = vector.shape_cast %145 : vector<1x1x8x1xf32> to vector<8x1xf32>
    %147 = vector.extract_strided_slice %144 {offsets = [0, 0, 0], sizes = [1, 1, 256], strides = [1, 1, 1]} : vector<1x4x256xf32> to vector<1x1x256xf32>
    %148 = vector.shape_cast %146 : vector<8x1xf32> to vector<1x8x1xf32>
    %149 = vector.broadcast %148 : vector<1x8x1xf32> to vector<1x8x256xf32>
    %150 = vector.broadcast %147 : vector<1x1x256xf32> to vector<1x8x256xf32>
    %151 = arith.mulf %149, %150 : vector<1x8x256xf32>
    %152 = arith.addf %139, %151 : vector<1x8x256xf32>
    %c3_61 = arith.constant 3 : index
    %c1_62 = arith.constant 1 : index
    %c0_63 = arith.constant 0 : index
    %c0_64 = arith.constant 0 : index
    %153 = vector.load %arg2[%c3_61, %c1_62, %c0_63, %c0_64] : memref<9x4x8x1xf32, #tpu.memory_space<vmem>>, vector<1x1x8x1xf32>
    %154 = vector.shape_cast %153 : vector<1x1x8x1xf32> to vector<8x1xf32>
    %155 = vector.extract_strided_slice %144 {offsets = [0, 1, 0], sizes = [1, 1, 256], strides = [1, 1, 1]} : vector<1x4x256xf32> to vector<1x1x256xf32>
    %156 = vector.shape_cast %154 : vector<8x1xf32> to vector<1x8x1xf32>
    %157 = vector.broadcast %156 : vector<1x8x1xf32> to vector<1x8x256xf32>
    %158 = vector.broadcast %155 : vector<1x1x256xf32> to vector<1x8x256xf32>
    %159 = arith.mulf %157, %158 : vector<1x8x256xf32>
    %160 = arith.addf %152, %159 : vector<1x8x256xf32>
    %c3_65 = arith.constant 3 : index
    %c2_66 = arith.constant 2 : index
    %c0_67 = arith.constant 0 : index
    %c0_68 = arith.constant 0 : index
    %161 = vector.load %arg2[%c3_65, %c2_66, %c0_67, %c0_68] : memref<9x4x8x1xf32, #tpu.memory_space<vmem>>, vector<1x1x8x1xf32>
    %162 = vector.shape_cast %161 : vector<1x1x8x1xf32> to vector<8x1xf32>
    %163 = vector.extract_strided_slice %144 {offsets = [0, 2, 0], sizes = [1, 1, 256], strides = [1, 1, 1]} : vector<1x4x256xf32> to vector<1x1x256xf32>
    %164 = vector.shape_cast %162 : vector<8x1xf32> to vector<1x8x1xf32>
    %165 = vector.broadcast %164 : vector<1x8x1xf32> to vector<1x8x256xf32>
    %166 = vector.broadcast %163 : vector<1x1x256xf32> to vector<1x8x256xf32>
    %167 = arith.mulf %165, %166 : vector<1x8x256xf32>
    %168 = arith.addf %160, %167 : vector<1x8x256xf32>
    %c3_69 = arith.constant 3 : index
    %c3_70 = arith.constant 3 : index
    %c0_71 = arith.constant 0 : index
    %c0_72 = arith.constant 0 : index
    %169 = vector.load %arg2[%c3_69, %c3_70, %c0_71, %c0_72] : memref<9x4x8x1xf32, #tpu.memory_space<vmem>>, vector<1x1x8x1xf32>
    %170 = vector.shape_cast %169 : vector<1x1x8x1xf32> to vector<8x1xf32>
    %171 = vector.extract_strided_slice %144 {offsets = [0, 3, 0], sizes = [1, 1, 256], strides = [1, 1, 1]} : vector<1x4x256xf32> to vector<1x1x256xf32>
    %172 = vector.shape_cast %170 : vector<8x1xf32> to vector<1x8x1xf32>
    %173 = vector.broadcast %172 : vector<1x8x1xf32> to vector<1x8x256xf32>
    %174 = vector.broadcast %171 : vector<1x1x256xf32> to vector<1x8x256xf32>
    %175 = arith.mulf %173, %174 : vector<1x8x256xf32>
    %176 = arith.addf %168, %175 : vector<1x8x256xf32>
    %c4 = arith.constant 4 : index
    %c0_73 = arith.constant 0 : index
    %c0_74 = arith.constant 0 : index
    %c0_75 = arith.constant 0 : index
    %177 = vector.load %arg2[%c4, %c0_73, %c0_74, %c0_75] : memref<9x4x8x1xf32, #tpu.memory_space<vmem>>, vector<1x1x8x1xf32>
    %178 = vector.shape_cast %177 : vector<1x1x8x1xf32> to vector<8x1xf32>
    %179 = vector.extract_strided_slice %0 {offsets = [0, 0, 0], sizes = [1, 1, 256], strides = [1, 1, 1]} : vector<1x4x256xf32> to vector<1x1x256xf32>
    %180 = vector.shape_cast %178 : vector<8x1xf32> to vector<1x8x1xf32>
    %181 = vector.broadcast %180 : vector<1x8x1xf32> to vector<1x8x256xf32>
    %182 = vector.broadcast %179 : vector<1x1x256xf32> to vector<1x8x256xf32>
    %183 = arith.mulf %181, %182 : vector<1x8x256xf32>
    %184 = arith.addf %176, %183 : vector<1x8x256xf32>
    %c4_76 = arith.constant 4 : index
    %c1_77 = arith.constant 1 : index
    %c0_78 = arith.constant 0 : index
    %c0_79 = arith.constant 0 : index
    %185 = vector.load %arg2[%c4_76, %c1_77, %c0_78, %c0_79] : memref<9x4x8x1xf32, #tpu.memory_space<vmem>>, vector<1x1x8x1xf32>
    %186 = vector.shape_cast %185 : vector<1x1x8x1xf32> to vector<8x1xf32>
    %187 = vector.extract_strided_slice %0 {offsets = [0, 1, 0], sizes = [1, 1, 256], strides = [1, 1, 1]} : vector<1x4x256xf32> to vector<1x1x256xf32>
    %188 = vector.shape_cast %186 : vector<8x1xf32> to vector<1x8x1xf32>
    %189 = vector.broadcast %188 : vector<1x8x1xf32> to vector<1x8x256xf32>
    %190 = vector.broadcast %187 : vector<1x1x256xf32> to vector<1x8x256xf32>
    %191 = arith.mulf %189, %190 : vector<1x8x256xf32>
    %192 = arith.addf %184, %191 : vector<1x8x256xf32>
    %c4_80 = arith.constant 4 : index
    %c2_81 = arith.constant 2 : index
    %c0_82 = arith.constant 0 : index
    %c0_83 = arith.constant 0 : index
    %193 = vector.load %arg2[%c4_80, %c2_81, %c0_82, %c0_83] : memref<9x4x8x1xf32, #tpu.memory_space<vmem>>, vector<1x1x8x1xf32>
    %194 = vector.shape_cast %193 : vector<1x1x8x1xf32> to vector<8x1xf32>
    %195 = vector.extract_strided_slice %0 {offsets = [0, 2, 0], sizes = [1, 1, 256], strides = [1, 1, 1]} : vector<1x4x256xf32> to vector<1x1x256xf32>
    %196 = vector.shape_cast %194 : vector<8x1xf32> to vector<1x8x1xf32>
    %197 = vector.broadcast %196 : vector<1x8x1xf32> to vector<1x8x256xf32>
    %198 = vector.broadcast %195 : vector<1x1x256xf32> to vector<1x8x256xf32>
    %199 = arith.mulf %197, %198 : vector<1x8x256xf32>
    %200 = arith.addf %192, %199 : vector<1x8x256xf32>
    %c4_84 = arith.constant 4 : index
    %c3_85 = arith.constant 3 : index
    %c0_86 = arith.constant 0 : index
    %c0_87 = arith.constant 0 : index
    %201 = vector.load %arg2[%c4_84, %c3_85, %c0_86, %c0_87] : memref<9x4x8x1xf32, #tpu.memory_space<vmem>>, vector<1x1x8x1xf32>
    %202 = vector.shape_cast %201 : vector<1x1x8x1xf32> to vector<8x1xf32>
    %203 = vector.extract_strided_slice %0 {offsets = [0, 3, 0], sizes = [1, 1, 256], strides = [1, 1, 1]} : vector<1x4x256xf32> to vector<1x1x256xf32>
    %204 = vector.shape_cast %202 : vector<8x1xf32> to vector<1x8x1xf32>
    %205 = vector.broadcast %204 : vector<1x8x1xf32> to vector<1x8x256xf32>
    %206 = vector.broadcast %203 : vector<1x1x256xf32> to vector<1x8x256xf32>
    %207 = arith.mulf %205, %206 : vector<1x8x256xf32>
    %208 = arith.addf %200, %207 : vector<1x8x256xf32>
    %cst_88 = arith.constant 0.000000e+00 : f32
    %209 = vector.broadcast %cst_88 : f32 to vector<1x4x1xf32>
    %210 = vector.extract_strided_slice %0 {offsets = [0, 0, 1], sizes = [1, 4, 255], strides = [1, 1, 1]} : vector<1x4x256xf32> to vector<1x4x255xf32>
    %211 = tpu.concatenate %210, %209 in 2 : vector<1x4x255xf32>, vector<1x4x1xf32> -> vector<1x4x256xf32>
    %212 = vector.broadcast %21 : vector<1x1x256xf32> to vector<1x4x256xf32>
    %213 = arith.mulf %211, %212 : vector<1x4x256xf32>
    %c5 = arith.constant 5 : index
    %c0_89 = arith.constant 0 : index
    %c0_90 = arith.constant 0 : index
    %c0_91 = arith.constant 0 : index
    %214 = vector.load %arg2[%c5, %c0_89, %c0_90, %c0_91] : memref<9x4x8x1xf32, #tpu.memory_space<vmem>>, vector<1x1x8x1xf32>
    %215 = vector.shape_cast %214 : vector<1x1x8x1xf32> to vector<8x1xf32>
    %216 = vector.extract_strided_slice %213 {offsets = [0, 0, 0], sizes = [1, 1, 256], strides = [1, 1, 1]} : vector<1x4x256xf32> to vector<1x1x256xf32>
    %217 = vector.shape_cast %215 : vector<8x1xf32> to vector<1x8x1xf32>
    %218 = vector.broadcast %217 : vector<1x8x1xf32> to vector<1x8x256xf32>
    %219 = vector.broadcast %216 : vector<1x1x256xf32> to vector<1x8x256xf32>
    %220 = arith.mulf %218, %219 : vector<1x8x256xf32>
    %221 = arith.addf %208, %220 : vector<1x8x256xf32>
    %c5_92 = arith.constant 5 : index
    %c1_93 = arith.constant 1 : index
    %c0_94 = arith.constant 0 : index
    %c0_95 = arith.constant 0 : index
    %222 = vector.load %arg2[%c5_92, %c1_93, %c0_94, %c0_95] : memref<9x4x8x1xf32, #tpu.memory_space<vmem>>, vector<1x1x8x1xf32>
    %223 = vector.shape_cast %222 : vector<1x1x8x1xf32> to vector<8x1xf32>
    %224 = vector.extract_strided_slice %213 {offsets = [0, 1, 0], sizes = [1, 1, 256], strides = [1, 1, 1]} : vector<1x4x256xf32> to vector<1x1x256xf32>
    %225 = vector.shape_cast %223 : vector<8x1xf32> to vector<1x8x1xf32>
    %226 = vector.broadcast %225 : vector<1x8x1xf32> to vector<1x8x256xf32>
    %227 = vector.broadcast %224 : vector<1x1x256xf32> to vector<1x8x256xf32>
    %228 = arith.mulf %226, %227 : vector<1x8x256xf32>
    %229 = arith.addf %221, %228 : vector<1x8x256xf32>
    %c5_96 = arith.constant 5 : index
    %c2_97 = arith.constant 2 : index
    %c0_98 = arith.constant 0 : index
    %c0_99 = arith.constant 0 : index
    %230 = vector.load %arg2[%c5_96, %c2_97, %c0_98, %c0_99] : memref<9x4x8x1xf32, #tpu.memory_space<vmem>>, vector<1x1x8x1xf32>
    %231 = vector.shape_cast %230 : vector<1x1x8x1xf32> to vector<8x1xf32>
    %232 = vector.extract_strided_slice %213 {offsets = [0, 2, 0], sizes = [1, 1, 256], strides = [1, 1, 1]} : vector<1x4x256xf32> to vector<1x1x256xf32>
    %233 = vector.shape_cast %231 : vector<8x1xf32> to vector<1x8x1xf32>
    %234 = vector.broadcast %233 : vector<1x8x1xf32> to vector<1x8x256xf32>
    %235 = vector.broadcast %232 : vector<1x1x256xf32> to vector<1x8x256xf32>
    %236 = arith.mulf %234, %235 : vector<1x8x256xf32>
    %237 = arith.addf %229, %236 : vector<1x8x256xf32>
    %c5_100 = arith.constant 5 : index
    %c3_101 = arith.constant 3 : index
    %c0_102 = arith.constant 0 : index
    %c0_103 = arith.constant 0 : index
    %238 = vector.load %arg2[%c5_100, %c3_101, %c0_102, %c0_103] : memref<9x4x8x1xf32, #tpu.memory_space<vmem>>, vector<1x1x8x1xf32>
    %239 = vector.shape_cast %238 : vector<1x1x8x1xf32> to vector<8x1xf32>
    %240 = vector.extract_strided_slice %213 {offsets = [0, 3, 0], sizes = [1, 1, 256], strides = [1, 1, 1]} : vector<1x4x256xf32> to vector<1x1x256xf32>
    %241 = vector.shape_cast %239 : vector<8x1xf32> to vector<1x8x1xf32>
    %242 = vector.broadcast %241 : vector<1x8x1xf32> to vector<1x8x256xf32>
    %243 = vector.broadcast %240 : vector<1x1x256xf32> to vector<1x8x256xf32>
    %244 = arith.mulf %242, %243 : vector<1x8x256xf32>
    %245 = arith.addf %237, %244 : vector<1x8x256xf32>
    %cst_104 = arith.constant 0.000000e+00 : f32
    %246 = vector.broadcast %cst_104 : f32 to vector<1x4x15xf32>
    %247 = vector.extract_strided_slice %0 {offsets = [0, 0, 15], sizes = [1, 4, 241], strides = [1, 1, 1]} : vector<1x4x256xf32> to vector<1x4x241xf32>
    %248 = tpu.concatenate %247, %246 in 2 : vector<1x4x241xf32>, vector<1x4x15xf32> -> vector<1x4x256xf32>
    %249 = vector.broadcast %25 : vector<1x1x256xf32> to vector<1x4x256xf32>
    %250 = arith.mulf %248, %249 : vector<1x4x256xf32>
    %c6 = arith.constant 6 : index
    %c0_105 = arith.constant 0 : index
    %c0_106 = arith.constant 0 : index
    %c0_107 = arith.constant 0 : index
    %251 = vector.load %arg2[%c6, %c0_105, %c0_106, %c0_107] : memref<9x4x8x1xf32, #tpu.memory_space<vmem>>, vector<1x1x8x1xf32>
    %252 = vector.shape_cast %251 : vector<1x1x8x1xf32> to vector<8x1xf32>
    %253 = vector.extract_strided_slice %250 {offsets = [0, 0, 0], sizes = [1, 1, 256], strides = [1, 1, 1]} : vector<1x4x256xf32> to vector<1x1x256xf32>
    %254 = vector.shape_cast %252 : vector<8x1xf32> to vector<1x8x1xf32>
    %255 = vector.broadcast %254 : vector<1x8x1xf32> to vector<1x8x256xf32>
    %256 = vector.broadcast %253 : vector<1x1x256xf32> to vector<1x8x256xf32>
    %257 = arith.mulf %255, %256 : vector<1x8x256xf32>
    %258 = arith.addf %245, %257 : vector<1x8x256xf32>
    %c6_108 = arith.constant 6 : index
    %c1_109 = arith.constant 1 : index
    %c0_110 = arith.constant 0 : index
    %c0_111 = arith.constant 0 : index
    %259 = vector.load %arg2[%c6_108, %c1_109, %c0_110, %c0_111] : memref<9x4x8x1xf32, #tpu.memory_space<vmem>>, vector<1x1x8x1xf32>
    %260 = vector.shape_cast %259 : vector<1x1x8x1xf32> to vector<8x1xf32>
    %261 = vector.extract_strided_slice %250 {offsets = [0, 1, 0], sizes = [1, 1, 256], strides = [1, 1, 1]} : vector<1x4x256xf32> to vector<1x1x256xf32>
    %262 = vector.shape_cast %260 : vector<8x1xf32> to vector<1x8x1xf32>
    %263 = vector.broadcast %262 : vector<1x8x1xf32> to vector<1x8x256xf32>
    %264 = vector.broadcast %261 : vector<1x1x256xf32> to vector<1x8x256xf32>
    %265 = arith.mulf %263, %264 : vector<1x8x256xf32>
    %266 = arith.addf %258, %265 : vector<1x8x256xf32>
    %c6_112 = arith.constant 6 : index
    %c2_113 = arith.constant 2 : index
    %c0_114 = arith.constant 0 : index
    %c0_115 = arith.constant 0 : index
    %267 = vector.load %arg2[%c6_112, %c2_113, %c0_114, %c0_115] : memref<9x4x8x1xf32, #tpu.memory_space<vmem>>, vector<1x1x8x1xf32>
    %268 = vector.shape_cast %267 : vector<1x1x8x1xf32> to vector<8x1xf32>
    %269 = vector.extract_strided_slice %250 {offsets = [0, 2, 0], sizes = [1, 1, 256], strides = [1, 1, 1]} : vector<1x4x256xf32> to vector<1x1x256xf32>
    %270 = vector.shape_cast %268 : vector<8x1xf32> to vector<1x8x1xf32>
    %271 = vector.broadcast %270 : vector<1x8x1xf32> to vector<1x8x256xf32>
    %272 = vector.broadcast %269 : vector<1x1x256xf32> to vector<1x8x256xf32>
    %273 = arith.mulf %271, %272 : vector<1x8x256xf32>
    %274 = arith.addf %266, %273 : vector<1x8x256xf32>
    %c6_116 = arith.constant 6 : index
    %c3_117 = arith.constant 3 : index
    %c0_118 = arith.constant 0 : index
    %c0_119 = arith.constant 0 : index
    %275 = vector.load %arg2[%c6_116, %c3_117, %c0_118, %c0_119] : memref<9x4x8x1xf32, #tpu.memory_space<vmem>>, vector<1x1x8x1xf32>
    %276 = vector.shape_cast %275 : vector<1x1x8x1xf32> to vector<8x1xf32>
    %277 = vector.extract_strided_slice %250 {offsets = [0, 3, 0], sizes = [1, 1, 256], strides = [1, 1, 1]} : vector<1x4x256xf32> to vector<1x1x256xf32>
    %278 = vector.shape_cast %276 : vector<8x1xf32> to vector<1x8x1xf32>
    %279 = vector.broadcast %278 : vector<1x8x1xf32> to vector<1x8x256xf32>
    %280 = vector.broadcast %277 : vector<1x1x256xf32> to vector<1x8x256xf32>
    %281 = arith.mulf %279, %280 : vector<1x8x256xf32>
    %282 = arith.addf %274, %281 : vector<1x8x256xf32>
    %cst_120 = arith.constant 0.000000e+00 : f32
    %283 = vector.broadcast %cst_120 : f32 to vector<1x4x16xf32>
    %284 = vector.extract_strided_slice %0 {offsets = [0, 0, 16], sizes = [1, 4, 240], strides = [1, 1, 1]} : vector<1x4x256xf32> to vector<1x4x240xf32>
    %285 = tpu.concatenate %284, %283 in 2 : vector<1x4x240xf32>, vector<1x4x16xf32> -> vector<1x4x256xf32>
    %c7 = arith.constant 7 : index
    %c0_121 = arith.constant 0 : index
    %c0_122 = arith.constant 0 : index
    %c0_123 = arith.constant 0 : index
    %286 = vector.load %arg2[%c7, %c0_121, %c0_122, %c0_123] : memref<9x4x8x1xf32, #tpu.memory_space<vmem>>, vector<1x1x8x1xf32>
    %287 = vector.shape_cast %286 : vector<1x1x8x1xf32> to vector<8x1xf32>
    %288 = vector.extract_strided_slice %285 {offsets = [0, 0, 0], sizes = [1, 1, 256], strides = [1, 1, 1]} : vector<1x4x256xf32> to vector<1x1x256xf32>
    %289 = vector.shape_cast %287 : vector<8x1xf32> to vector<1x8x1xf32>
    %290 = vector.broadcast %289 : vector<1x8x1xf32> to vector<1x8x256xf32>
    %291 = vector.broadcast %288 : vector<1x1x256xf32> to vector<1x8x256xf32>
    %292 = arith.mulf %290, %291 : vector<1x8x256xf32>
    %293 = arith.addf %282, %292 : vector<1x8x256xf32>
    %c7_124 = arith.constant 7 : index
    %c1_125 = arith.constant 1 : index
    %c0_126 = arith.constant 0 : index
    %c0_127 = arith.constant 0 : index
    %294 = vector.load %arg2[%c7_124, %c1_125, %c0_126, %c0_127] : memref<9x4x8x1xf32, #tpu.memory_space<vmem>>, vector<1x1x8x1xf32>
    %295 = vector.shape_cast %294 : vector<1x1x8x1xf32> to vector<8x1xf32>
    %296 = vector.extract_strided_slice %285 {offsets = [0, 1, 0], sizes = [1, 1, 256], strides = [1, 1, 1]} : vector<1x4x256xf32> to vector<1x1x256xf32>
    %297 = vector.shape_cast %295 : vector<8x1xf32> to vector<1x8x1xf32>
    %298 = vector.broadcast %297 : vector<1x8x1xf32> to vector<1x8x256xf32>
    %299 = vector.broadcast %296 : vector<1x1x256xf32> to vector<1x8x256xf32>
    %300 = arith.mulf %298, %299 : vector<1x8x256xf32>
    %301 = arith.addf %293, %300 : vector<1x8x256xf32>
    %c7_128 = arith.constant 7 : index
    %c2_129 = arith.constant 2 : index
    %c0_130 = arith.constant 0 : index
    %c0_131 = arith.constant 0 : index
    %302 = vector.load %arg2[%c7_128, %c2_129, %c0_130, %c0_131] : memref<9x4x8x1xf32, #tpu.memory_space<vmem>>, vector<1x1x8x1xf32>
    %303 = vector.shape_cast %302 : vector<1x1x8x1xf32> to vector<8x1xf32>
    %304 = vector.extract_strided_slice %285 {offsets = [0, 2, 0], sizes = [1, 1, 256], strides = [1, 1, 1]} : vector<1x4x256xf32> to vector<1x1x256xf32>
    %305 = vector.shape_cast %303 : vector<8x1xf32> to vector<1x8x1xf32>
    %306 = vector.broadcast %305 : vector<1x8x1xf32> to vector<1x8x256xf32>
    %307 = vector.broadcast %304 : vector<1x1x256xf32> to vector<1x8x256xf32>
    %308 = arith.mulf %306, %307 : vector<1x8x256xf32>
    %309 = arith.addf %301, %308 : vector<1x8x256xf32>
    %c7_132 = arith.constant 7 : index
    %c3_133 = arith.constant 3 : index
    %c0_134 = arith.constant 0 : index
    %c0_135 = arith.constant 0 : index
    %310 = vector.load %arg2[%c7_132, %c3_133, %c0_134, %c0_135] : memref<9x4x8x1xf32, #tpu.memory_space<vmem>>, vector<1x1x8x1xf32>
    %311 = vector.shape_cast %310 : vector<1x1x8x1xf32> to vector<8x1xf32>
    %312 = vector.extract_strided_slice %285 {offsets = [0, 3, 0], sizes = [1, 1, 256], strides = [1, 1, 1]} : vector<1x4x256xf32> to vector<1x1x256xf32>
    %313 = vector.shape_cast %311 : vector<8x1xf32> to vector<1x8x1xf32>
    %314 = vector.broadcast %313 : vector<1x8x1xf32> to vector<1x8x256xf32>
    %315 = vector.broadcast %312 : vector<1x1x256xf32> to vector<1x8x256xf32>
    %316 = arith.mulf %314, %315 : vector<1x8x256xf32>
    %317 = arith.addf %309, %316 : vector<1x8x256xf32>
    %cst_136 = arith.constant 0.000000e+00 : f32
    %318 = vector.broadcast %cst_136 : f32 to vector<1x4x17xf32>
    %319 = vector.extract_strided_slice %0 {offsets = [0, 0, 17], sizes = [1, 4, 239], strides = [1, 1, 1]} : vector<1x4x256xf32> to vector<1x4x239xf32>
    %320 = tpu.concatenate %319, %318 in 2 : vector<1x4x239xf32>, vector<1x4x17xf32> -> vector<1x4x256xf32>
    %321 = vector.broadcast %21 : vector<1x1x256xf32> to vector<1x4x256xf32>
    %322 = arith.mulf %320, %321 : vector<1x4x256xf32>
    %c8 = arith.constant 8 : index
    %c0_137 = arith.constant 0 : index
    %c0_138 = arith.constant 0 : index
    %c0_139 = arith.constant 0 : index
    %323 = vector.load %arg2[%c8, %c0_137, %c0_138, %c0_139] : memref<9x4x8x1xf32, #tpu.memory_space<vmem>>, vector<1x1x8x1xf32>
    %324 = vector.shape_cast %323 : vector<1x1x8x1xf32> to vector<8x1xf32>
    %325 = vector.extract_strided_slice %322 {offsets = [0, 0, 0], sizes = [1, 1, 256], strides = [1, 1, 1]} : vector<1x4x256xf32> to vector<1x1x256xf32>
    %326 = vector.shape_cast %324 : vector<8x1xf32> to vector<1x8x1xf32>
    %327 = vector.broadcast %326 : vector<1x8x1xf32> to vector<1x8x256xf32>
    %328 = vector.broadcast %325 : vector<1x1x256xf32> to vector<1x8x256xf32>
    %329 = arith.mulf %327, %328 : vector<1x8x256xf32>
    %330 = arith.addf %317, %329 : vector<1x8x256xf32>
    %c8_140 = arith.constant 8 : index
    %c1_141 = arith.constant 1 : index
    %c0_142 = arith.constant 0 : index
    %c0_143 = arith.constant 0 : index
    %331 = vector.load %arg2[%c8_140, %c1_141, %c0_142, %c0_143] : memref<9x4x8x1xf32, #tpu.memory_space<vmem>>, vector<1x1x8x1xf32>
    %332 = vector.shape_cast %331 : vector<1x1x8x1xf32> to vector<8x1xf32>
    %333 = vector.extract_strided_slice %322 {offsets = [0, 1, 0], sizes = [1, 1, 256], strides = [1, 1, 1]} : vector<1x4x256xf32> to vector<1x1x256xf32>
    %334 = vector.shape_cast %332 : vector<8x1xf32> to vector<1x8x1xf32>
    %335 = vector.broadcast %334 : vector<1x8x1xf32> to vector<1x8x256xf32>
    %336 = vector.broadcast %333 : vector<1x1x256xf32> to vector<1x8x256xf32>
    %337 = arith.mulf %335, %336 : vector<1x8x256xf32>
    %338 = arith.addf %330, %337 : vector<1x8x256xf32>
    %c8_144 = arith.constant 8 : index
    %c2_145 = arith.constant 2 : index
    %c0_146 = arith.constant 0 : index
    %c0_147 = arith.constant 0 : index
    %339 = vector.load %arg2[%c8_144, %c2_145, %c0_146, %c0_147] : memref<9x4x8x1xf32, #tpu.memory_space<vmem>>, vector<1x1x8x1xf32>
    %340 = vector.shape_cast %339 : vector<1x1x8x1xf32> to vector<8x1xf32>
    %341 = vector.extract_strided_slice %322 {offsets = [0, 2, 0], sizes = [1, 1, 256], strides = [1, 1, 1]} : vector<1x4x256xf32> to vector<1x1x256xf32>
    %342 = vector.shape_cast %340 : vector<8x1xf32> to vector<1x8x1xf32>
    %343 = vector.broadcast %342 : vector<1x8x1xf32> to vector<1x8x256xf32>
    %344 = vector.broadcast %341 : vector<1x1x256xf32> to vector<1x8x256xf32>
    %345 = arith.mulf %343, %344 : vector<1x8x256xf32>
    %346 = arith.addf %338, %345 : vector<1x8x256xf32>
    %c8_148 = arith.constant 8 : index
    %c3_149 = arith.constant 3 : index
    %c0_150 = arith.constant 0 : index
    %c0_151 = arith.constant 0 : index
    %347 = vector.load %arg2[%c8_148, %c3_149, %c0_150, %c0_151] : memref<9x4x8x1xf32, #tpu.memory_space<vmem>>, vector<1x1x8x1xf32>
    %348 = vector.shape_cast %347 : vector<1x1x8x1xf32> to vector<8x1xf32>
    %349 = vector.extract_strided_slice %322 {offsets = [0, 3, 0], sizes = [1, 1, 256], strides = [1, 1, 1]} : vector<1x4x256xf32> to vector<1x1x256xf32>
    %350 = vector.shape_cast %348 : vector<8x1xf32> to vector<1x8x1xf32>
    %351 = vector.broadcast %350 : vector<1x8x1xf32> to vector<1x8x256xf32>
    %352 = vector.broadcast %349 : vector<1x1x256xf32> to vector<1x8x256xf32>
    %353 = arith.mulf %351, %352 : vector<1x8x256xf32>
    %354 = arith.addf %346, %353 : vector<1x8x256xf32>
    %c0_152 = arith.constant 0 : index
    %c0_153 = arith.constant 0 : index
    %355 = vector.load %arg4[%c0_152, %c0_153] : memref<8x1xf32, #tpu.memory_space<vmem>>, vector<8x1xf32>
    %cst_154 = arith.constant 0.000000e+00 : f32
    %356 = vector.broadcast %cst_154 : f32 to vector<1x8x256xf32>
    %357 = arith.cmpf ogt, %354, %356 : vector<1x8x256xf32>
    %358 = vector.shape_cast %355 : vector<8x1xf32> to vector<1x8x1xf32>
    %359 = vector.broadcast %358 : vector<1x8x1xf32> to vector<1x8x256xf32>
    %360 = arith.mulf %359, %354 : vector<1x8x256xf32>
    %361 = arith.select %357, %354, %360 : vector<1x8x256xi1>, vector<1x8x256xf32>
    %c0_155 = arith.constant 0 : index
    %c0_156 = arith.constant 0 : index
    %362 = vector.load %arg6[%c0_155, %c0_156] : memref<4x1xf32, #tpu.memory_space<vmem>>, vector<4x1xf32>
    %cst_157 = arith.constant 0.000000e+00 : f32
    %363 = vector.broadcast %cst_157 : f32 to vector<1x4x256xf32>
    %364 = vector.shape_cast %362 : vector<4x1xf32> to vector<1x4x1xf32>
    %365 = vector.broadcast %364 : vector<1x4x1xf32> to vector<1x4x256xf32>
    %366 = arith.addf %363, %365 : vector<1x4x256xf32>
    %cst_158 = arith.constant 0.000000e+00 : f32
    %367 = vector.broadcast %cst_158 : f32 to vector<1x8x17xf32>
    %368 = vector.extract_strided_slice %361 {offsets = [0, 0, 0], sizes = [1, 8, 239], strides = [1, 1, 1]} : vector<1x8x256xf32> to vector<1x8x239xf32>
    %369 = tpu.concatenate %367, %368 in 2 : vector<1x8x17xf32>, vector<1x8x239xf32> -> vector<1x8x256xf32>
    %370 = vector.broadcast %25 : vector<1x1x256xf32> to vector<1x8x256xf32>
    %371 = arith.mulf %369, %370 : vector<1x8x256xf32>
    %c0_159 = arith.constant 0 : index
    %c0_160 = arith.constant 0 : index
    %c0_161 = arith.constant 0 : index
    %c0_162 = arith.constant 0 : index
    %372 = vector.load %arg5[%c0_159, %c0_160, %c0_161, %c0_162] : memref<9x8x4x1xf32, #tpu.memory_space<vmem>>, vector<1x1x4x1xf32>
    %373 = vector.shape_cast %372 : vector<1x1x4x1xf32> to vector<4x1xf32>
    %374 = vector.extract_strided_slice %371 {offsets = [0, 0, 0], sizes = [1, 1, 256], strides = [1, 1, 1]} : vector<1x8x256xf32> to vector<1x1x256xf32>
    %375 = vector.shape_cast %373 : vector<4x1xf32> to vector<1x4x1xf32>
    %376 = vector.broadcast %375 : vector<1x4x1xf32> to vector<1x4x256xf32>
    %377 = vector.broadcast %374 : vector<1x1x256xf32> to vector<1x4x256xf32>
    %378 = arith.mulf %376, %377 : vector<1x4x256xf32>
    %379 = arith.addf %366, %378 : vector<1x4x256xf32>
    %c0_163 = arith.constant 0 : index
    %c1_164 = arith.constant 1 : index
    %c0_165 = arith.constant 0 : index
    %c0_166 = arith.constant 0 : index
    %380 = vector.load %arg5[%c0_163, %c1_164, %c0_165, %c0_166] : memref<9x8x4x1xf32, #tpu.memory_space<vmem>>, vector<1x1x4x1xf32>
    %381 = vector.shape_cast %380 : vector<1x1x4x1xf32> to vector<4x1xf32>
    %382 = vector.extract_strided_slice %371 {offsets = [0, 1, 0], sizes = [1, 1, 256], strides = [1, 1, 1]} : vector<1x8x256xf32> to vector<1x1x256xf32>
    %383 = vector.shape_cast %381 : vector<4x1xf32> to vector<1x4x1xf32>
    %384 = vector.broadcast %383 : vector<1x4x1xf32> to vector<1x4x256xf32>
    %385 = vector.broadcast %382 : vector<1x1x256xf32> to vector<1x4x256xf32>
    %386 = arith.mulf %384, %385 : vector<1x4x256xf32>
    %387 = arith.addf %379, %386 : vector<1x4x256xf32>
    %c0_167 = arith.constant 0 : index
    %c2_168 = arith.constant 2 : index
    %c0_169 = arith.constant 0 : index
    %c0_170 = arith.constant 0 : index
    %388 = vector.load %arg5[%c0_167, %c2_168, %c0_169, %c0_170] : memref<9x8x4x1xf32, #tpu.memory_space<vmem>>, vector<1x1x4x1xf32>
    %389 = vector.shape_cast %388 : vector<1x1x4x1xf32> to vector<4x1xf32>
    %390 = vector.extract_strided_slice %371 {offsets = [0, 2, 0], sizes = [1, 1, 256], strides = [1, 1, 1]} : vector<1x8x256xf32> to vector<1x1x256xf32>
    %391 = vector.shape_cast %389 : vector<4x1xf32> to vector<1x4x1xf32>
    %392 = vector.broadcast %391 : vector<1x4x1xf32> to vector<1x4x256xf32>
    %393 = vector.broadcast %390 : vector<1x1x256xf32> to vector<1x4x256xf32>
    %394 = arith.mulf %392, %393 : vector<1x4x256xf32>
    %395 = arith.addf %387, %394 : vector<1x4x256xf32>
    %c0_171 = arith.constant 0 : index
    %c3_172 = arith.constant 3 : index
    %c0_173 = arith.constant 0 : index
    %c0_174 = arith.constant 0 : index
    %396 = vector.load %arg5[%c0_171, %c3_172, %c0_173, %c0_174] : memref<9x8x4x1xf32, #tpu.memory_space<vmem>>, vector<1x1x4x1xf32>
    %397 = vector.shape_cast %396 : vector<1x1x4x1xf32> to vector<4x1xf32>
    %398 = vector.extract_strided_slice %371 {offsets = [0, 3, 0], sizes = [1, 1, 256], strides = [1, 1, 1]} : vector<1x8x256xf32> to vector<1x1x256xf32>
    %399 = vector.shape_cast %397 : vector<4x1xf32> to vector<1x4x1xf32>
    %400 = vector.broadcast %399 : vector<1x4x1xf32> to vector<1x4x256xf32>
    %401 = vector.broadcast %398 : vector<1x1x256xf32> to vector<1x4x256xf32>
    %402 = arith.mulf %400, %401 : vector<1x4x256xf32>
    %403 = arith.addf %395, %402 : vector<1x4x256xf32>
    %c0_175 = arith.constant 0 : index
    %c4_176 = arith.constant 4 : index
    %c0_177 = arith.constant 0 : index
    %c0_178 = arith.constant 0 : index
    %404 = vector.load %arg5[%c0_175, %c4_176, %c0_177, %c0_178] : memref<9x8x4x1xf32, #tpu.memory_space<vmem>>, vector<1x1x4x1xf32>
    %405 = vector.shape_cast %404 : vector<1x1x4x1xf32> to vector<4x1xf32>
    %406 = vector.extract_strided_slice %371 {offsets = [0, 4, 0], sizes = [1, 1, 256], strides = [1, 1, 1]} : vector<1x8x256xf32> to vector<1x1x256xf32>
    %407 = vector.shape_cast %405 : vector<4x1xf32> to vector<1x4x1xf32>
    %408 = vector.broadcast %407 : vector<1x4x1xf32> to vector<1x4x256xf32>
    %409 = vector.broadcast %406 : vector<1x1x256xf32> to vector<1x4x256xf32>
    %410 = arith.mulf %408, %409 : vector<1x4x256xf32>
    %411 = arith.addf %403, %410 : vector<1x4x256xf32>
    %c0_179 = arith.constant 0 : index
    %c5_180 = arith.constant 5 : index
    %c0_181 = arith.constant 0 : index
    %c0_182 = arith.constant 0 : index
    %412 = vector.load %arg5[%c0_179, %c5_180, %c0_181, %c0_182] : memref<9x8x4x1xf32, #tpu.memory_space<vmem>>, vector<1x1x4x1xf32>
    %413 = vector.shape_cast %412 : vector<1x1x4x1xf32> to vector<4x1xf32>
    %414 = vector.extract_strided_slice %371 {offsets = [0, 5, 0], sizes = [1, 1, 256], strides = [1, 1, 1]} : vector<1x8x256xf32> to vector<1x1x256xf32>
    %415 = vector.shape_cast %413 : vector<4x1xf32> to vector<1x4x1xf32>
    %416 = vector.broadcast %415 : vector<1x4x1xf32> to vector<1x4x256xf32>
    %417 = vector.broadcast %414 : vector<1x1x256xf32> to vector<1x4x256xf32>
    %418 = arith.mulf %416, %417 : vector<1x4x256xf32>
    %419 = arith.addf %411, %418 : vector<1x4x256xf32>
    %c0_183 = arith.constant 0 : index
    %c6_184 = arith.constant 6 : index
    %c0_185 = arith.constant 0 : index
    %c0_186 = arith.constant 0 : index
    %420 = vector.load %arg5[%c0_183, %c6_184, %c0_185, %c0_186] : memref<9x8x4x1xf32, #tpu.memory_space<vmem>>, vector<1x1x4x1xf32>
    %421 = vector.shape_cast %420 : vector<1x1x4x1xf32> to vector<4x1xf32>
    %422 = vector.extract_strided_slice %371 {offsets = [0, 6, 0], sizes = [1, 1, 256], strides = [1, 1, 1]} : vector<1x8x256xf32> to vector<1x1x256xf32>
    %423 = vector.shape_cast %421 : vector<4x1xf32> to vector<1x4x1xf32>
    %424 = vector.broadcast %423 : vector<1x4x1xf32> to vector<1x4x256xf32>
    %425 = vector.broadcast %422 : vector<1x1x256xf32> to vector<1x4x256xf32>
    %426 = arith.mulf %424, %425 : vector<1x4x256xf32>
    %427 = arith.addf %419, %426 : vector<1x4x256xf32>
    %c0_187 = arith.constant 0 : index
    %c7_188 = arith.constant 7 : index
    %c0_189 = arith.constant 0 : index
    %c0_190 = arith.constant 0 : index
    %428 = vector.load %arg5[%c0_187, %c7_188, %c0_189, %c0_190] : memref<9x8x4x1xf32, #tpu.memory_space<vmem>>, vector<1x1x4x1xf32>
    %429 = vector.shape_cast %428 : vector<1x1x4x1xf32> to vector<4x1xf32>
    %430 = vector.extract_strided_slice %371 {offsets = [0, 7, 0], sizes = [1, 1, 256], strides = [1, 1, 1]} : vector<1x8x256xf32> to vector<1x1x256xf32>
    %431 = vector.shape_cast %429 : vector<4x1xf32> to vector<1x4x1xf32>
    %432 = vector.broadcast %431 : vector<1x4x1xf32> to vector<1x4x256xf32>
    %433 = vector.broadcast %430 : vector<1x1x256xf32> to vector<1x4x256xf32>
    %434 = arith.mulf %432, %433 : vector<1x4x256xf32>
    %435 = arith.addf %427, %434 : vector<1x4x256xf32>
    %cst_191 = arith.constant 0.000000e+00 : f32
    %436 = vector.broadcast %cst_191 : f32 to vector<1x8x16xf32>
    %437 = vector.extract_strided_slice %361 {offsets = [0, 0, 0], sizes = [1, 8, 240], strides = [1, 1, 1]} : vector<1x8x256xf32> to vector<1x8x240xf32>
    %438 = tpu.concatenate %436, %437 in 2 : vector<1x8x16xf32>, vector<1x8x240xf32> -> vector<1x8x256xf32>
    %c1_192 = arith.constant 1 : index
    %c0_193 = arith.constant 0 : index
    %c0_194 = arith.constant 0 : index
    %c0_195 = arith.constant 0 : index
    %439 = vector.load %arg5[%c1_192, %c0_193, %c0_194, %c0_195] : memref<9x8x4x1xf32, #tpu.memory_space<vmem>>, vector<1x1x4x1xf32>
    %440 = vector.shape_cast %439 : vector<1x1x4x1xf32> to vector<4x1xf32>
    %441 = vector.extract_strided_slice %438 {offsets = [0, 0, 0], sizes = [1, 1, 256], strides = [1, 1, 1]} : vector<1x8x256xf32> to vector<1x1x256xf32>
    %442 = vector.shape_cast %440 : vector<4x1xf32> to vector<1x4x1xf32>
    %443 = vector.broadcast %442 : vector<1x4x1xf32> to vector<1x4x256xf32>
    %444 = vector.broadcast %441 : vector<1x1x256xf32> to vector<1x4x256xf32>
    %445 = arith.mulf %443, %444 : vector<1x4x256xf32>
    %446 = arith.addf %435, %445 : vector<1x4x256xf32>
    %c1_196 = arith.constant 1 : index
    %c1_197 = arith.constant 1 : index
    %c0_198 = arith.constant 0 : index
    %c0_199 = arith.constant 0 : index
    %447 = vector.load %arg5[%c1_196, %c1_197, %c0_198, %c0_199] : memref<9x8x4x1xf32, #tpu.memory_space<vmem>>, vector<1x1x4x1xf32>
    %448 = vector.shape_cast %447 : vector<1x1x4x1xf32> to vector<4x1xf32>
    %449 = vector.extract_strided_slice %438 {offsets = [0, 1, 0], sizes = [1, 1, 256], strides = [1, 1, 1]} : vector<1x8x256xf32> to vector<1x1x256xf32>
    %450 = vector.shape_cast %448 : vector<4x1xf32> to vector<1x4x1xf32>
    %451 = vector.broadcast %450 : vector<1x4x1xf32> to vector<1x4x256xf32>
    %452 = vector.broadcast %449 : vector<1x1x256xf32> to vector<1x4x256xf32>
    %453 = arith.mulf %451, %452 : vector<1x4x256xf32>
    %454 = arith.addf %446, %453 : vector<1x4x256xf32>
    %c1_200 = arith.constant 1 : index
    %c2_201 = arith.constant 2 : index
    %c0_202 = arith.constant 0 : index
    %c0_203 = arith.constant 0 : index
    %455 = vector.load %arg5[%c1_200, %c2_201, %c0_202, %c0_203] : memref<9x8x4x1xf32, #tpu.memory_space<vmem>>, vector<1x1x4x1xf32>
    %456 = vector.shape_cast %455 : vector<1x1x4x1xf32> to vector<4x1xf32>
    %457 = vector.extract_strided_slice %438 {offsets = [0, 2, 0], sizes = [1, 1, 256], strides = [1, 1, 1]} : vector<1x8x256xf32> to vector<1x1x256xf32>
    %458 = vector.shape_cast %456 : vector<4x1xf32> to vector<1x4x1xf32>
    %459 = vector.broadcast %458 : vector<1x4x1xf32> to vector<1x4x256xf32>
    %460 = vector.broadcast %457 : vector<1x1x256xf32> to vector<1x4x256xf32>
    %461 = arith.mulf %459, %460 : vector<1x4x256xf32>
    %462 = arith.addf %454, %461 : vector<1x4x256xf32>
    %c1_204 = arith.constant 1 : index
    %c3_205 = arith.constant 3 : index
    %c0_206 = arith.constant 0 : index
    %c0_207 = arith.constant 0 : index
    %463 = vector.load %arg5[%c1_204, %c3_205, %c0_206, %c0_207] : memref<9x8x4x1xf32, #tpu.memory_space<vmem>>, vector<1x1x4x1xf32>
    %464 = vector.shape_cast %463 : vector<1x1x4x1xf32> to vector<4x1xf32>
    %465 = vector.extract_strided_slice %438 {offsets = [0, 3, 0], sizes = [1, 1, 256], strides = [1, 1, 1]} : vector<1x8x256xf32> to vector<1x1x256xf32>
    %466 = vector.shape_cast %464 : vector<4x1xf32> to vector<1x4x1xf32>
    %467 = vector.broadcast %466 : vector<1x4x1xf32> to vector<1x4x256xf32>
    %468 = vector.broadcast %465 : vector<1x1x256xf32> to vector<1x4x256xf32>
    %469 = arith.mulf %467, %468 : vector<1x4x256xf32>
    %470 = arith.addf %462, %469 : vector<1x4x256xf32>
    %c1_208 = arith.constant 1 : index
    %c4_209 = arith.constant 4 : index
    %c0_210 = arith.constant 0 : index
    %c0_211 = arith.constant 0 : index
    %471 = vector.load %arg5[%c1_208, %c4_209, %c0_210, %c0_211] : memref<9x8x4x1xf32, #tpu.memory_space<vmem>>, vector<1x1x4x1xf32>
    %472 = vector.shape_cast %471 : vector<1x1x4x1xf32> to vector<4x1xf32>
    %473 = vector.extract_strided_slice %438 {offsets = [0, 4, 0], sizes = [1, 1, 256], strides = [1, 1, 1]} : vector<1x8x256xf32> to vector<1x1x256xf32>
    %474 = vector.shape_cast %472 : vector<4x1xf32> to vector<1x4x1xf32>
    %475 = vector.broadcast %474 : vector<1x4x1xf32> to vector<1x4x256xf32>
    %476 = vector.broadcast %473 : vector<1x1x256xf32> to vector<1x4x256xf32>
    %477 = arith.mulf %475, %476 : vector<1x4x256xf32>
    %478 = arith.addf %470, %477 : vector<1x4x256xf32>
    %c1_212 = arith.constant 1 : index
    %c5_213 = arith.constant 5 : index
    %c0_214 = arith.constant 0 : index
    %c0_215 = arith.constant 0 : index
    %479 = vector.load %arg5[%c1_212, %c5_213, %c0_214, %c0_215] : memref<9x8x4x1xf32, #tpu.memory_space<vmem>>, vector<1x1x4x1xf32>
    %480 = vector.shape_cast %479 : vector<1x1x4x1xf32> to vector<4x1xf32>
    %481 = vector.extract_strided_slice %438 {offsets = [0, 5, 0], sizes = [1, 1, 256], strides = [1, 1, 1]} : vector<1x8x256xf32> to vector<1x1x256xf32>
    %482 = vector.shape_cast %480 : vector<4x1xf32> to vector<1x4x1xf32>
    %483 = vector.broadcast %482 : vector<1x4x1xf32> to vector<1x4x256xf32>
    %484 = vector.broadcast %481 : vector<1x1x256xf32> to vector<1x4x256xf32>
    %485 = arith.mulf %483, %484 : vector<1x4x256xf32>
    %486 = arith.addf %478, %485 : vector<1x4x256xf32>
    %c1_216 = arith.constant 1 : index
    %c6_217 = arith.constant 6 : index
    %c0_218 = arith.constant 0 : index
    %c0_219 = arith.constant 0 : index
    %487 = vector.load %arg5[%c1_216, %c6_217, %c0_218, %c0_219] : memref<9x8x4x1xf32, #tpu.memory_space<vmem>>, vector<1x1x4x1xf32>
    %488 = vector.shape_cast %487 : vector<1x1x4x1xf32> to vector<4x1xf32>
    %489 = vector.extract_strided_slice %438 {offsets = [0, 6, 0], sizes = [1, 1, 256], strides = [1, 1, 1]} : vector<1x8x256xf32> to vector<1x1x256xf32>
    %490 = vector.shape_cast %488 : vector<4x1xf32> to vector<1x4x1xf32>
    %491 = vector.broadcast %490 : vector<1x4x1xf32> to vector<1x4x256xf32>
    %492 = vector.broadcast %489 : vector<1x1x256xf32> to vector<1x4x256xf32>
    %493 = arith.mulf %491, %492 : vector<1x4x256xf32>
    %494 = arith.addf %486, %493 : vector<1x4x256xf32>
    %c1_220 = arith.constant 1 : index
    %c7_221 = arith.constant 7 : index
    %c0_222 = arith.constant 0 : index
    %c0_223 = arith.constant 0 : index
    %495 = vector.load %arg5[%c1_220, %c7_221, %c0_222, %c0_223] : memref<9x8x4x1xf32, #tpu.memory_space<vmem>>, vector<1x1x4x1xf32>
    %496 = vector.shape_cast %495 : vector<1x1x4x1xf32> to vector<4x1xf32>
    %497 = vector.extract_strided_slice %438 {offsets = [0, 7, 0], sizes = [1, 1, 256], strides = [1, 1, 1]} : vector<1x8x256xf32> to vector<1x1x256xf32>
    %498 = vector.shape_cast %496 : vector<4x1xf32> to vector<1x4x1xf32>
    %499 = vector.broadcast %498 : vector<1x4x1xf32> to vector<1x4x256xf32>
    %500 = vector.broadcast %497 : vector<1x1x256xf32> to vector<1x4x256xf32>
    %501 = arith.mulf %499, %500 : vector<1x4x256xf32>
    %502 = arith.addf %494, %501 : vector<1x4x256xf32>
    %cst_224 = arith.constant 0.000000e+00 : f32
    %503 = vector.broadcast %cst_224 : f32 to vector<1x8x15xf32>
    %504 = vector.extract_strided_slice %361 {offsets = [0, 0, 0], sizes = [1, 8, 241], strides = [1, 1, 1]} : vector<1x8x256xf32> to vector<1x8x241xf32>
    %505 = tpu.concatenate %503, %504 in 2 : vector<1x8x15xf32>, vector<1x8x241xf32> -> vector<1x8x256xf32>
    %506 = vector.broadcast %21 : vector<1x1x256xf32> to vector<1x8x256xf32>
    %507 = arith.mulf %505, %506 : vector<1x8x256xf32>
    %c2_225 = arith.constant 2 : index
    %c0_226 = arith.constant 0 : index
    %c0_227 = arith.constant 0 : index
    %c0_228 = arith.constant 0 : index
    %508 = vector.load %arg5[%c2_225, %c0_226, %c0_227, %c0_228] : memref<9x8x4x1xf32, #tpu.memory_space<vmem>>, vector<1x1x4x1xf32>
    %509 = vector.shape_cast %508 : vector<1x1x4x1xf32> to vector<4x1xf32>
    %510 = vector.extract_strided_slice %507 {offsets = [0, 0, 0], sizes = [1, 1, 256], strides = [1, 1, 1]} : vector<1x8x256xf32> to vector<1x1x256xf32>
    %511 = vector.shape_cast %509 : vector<4x1xf32> to vector<1x4x1xf32>
    %512 = vector.broadcast %511 : vector<1x4x1xf32> to vector<1x4x256xf32>
    %513 = vector.broadcast %510 : vector<1x1x256xf32> to vector<1x4x256xf32>
    %514 = arith.mulf %512, %513 : vector<1x4x256xf32>
    %515 = arith.addf %502, %514 : vector<1x4x256xf32>
    %c2_229 = arith.constant 2 : index
    %c1_230 = arith.constant 1 : index
    %c0_231 = arith.constant 0 : index
    %c0_232 = arith.constant 0 : index
    %516 = vector.load %arg5[%c2_229, %c1_230, %c0_231, %c0_232] : memref<9x8x4x1xf32, #tpu.memory_space<vmem>>, vector<1x1x4x1xf32>
    %517 = vector.shape_cast %516 : vector<1x1x4x1xf32> to vector<4x1xf32>
    %518 = vector.extract_strided_slice %507 {offsets = [0, 1, 0], sizes = [1, 1, 256], strides = [1, 1, 1]} : vector<1x8x256xf32> to vector<1x1x256xf32>
    %519 = vector.shape_cast %517 : vector<4x1xf32> to vector<1x4x1xf32>
    %520 = vector.broadcast %519 : vector<1x4x1xf32> to vector<1x4x256xf32>
    %521 = vector.broadcast %518 : vector<1x1x256xf32> to vector<1x4x256xf32>
    %522 = arith.mulf %520, %521 : vector<1x4x256xf32>
    %523 = arith.addf %515, %522 : vector<1x4x256xf32>
    %c2_233 = arith.constant 2 : index
    %c2_234 = arith.constant 2 : index
    %c0_235 = arith.constant 0 : index
    %c0_236 = arith.constant 0 : index
    %524 = vector.load %arg5[%c2_233, %c2_234, %c0_235, %c0_236] : memref<9x8x4x1xf32, #tpu.memory_space<vmem>>, vector<1x1x4x1xf32>
    %525 = vector.shape_cast %524 : vector<1x1x4x1xf32> to vector<4x1xf32>
    %526 = vector.extract_strided_slice %507 {offsets = [0, 2, 0], sizes = [1, 1, 256], strides = [1, 1, 1]} : vector<1x8x256xf32> to vector<1x1x256xf32>
    %527 = vector.shape_cast %525 : vector<4x1xf32> to vector<1x4x1xf32>
    %528 = vector.broadcast %527 : vector<1x4x1xf32> to vector<1x4x256xf32>
    %529 = vector.broadcast %526 : vector<1x1x256xf32> to vector<1x4x256xf32>
    %530 = arith.mulf %528, %529 : vector<1x4x256xf32>
    %531 = arith.addf %523, %530 : vector<1x4x256xf32>
    %c2_237 = arith.constant 2 : index
    %c3_238 = arith.constant 3 : index
    %c0_239 = arith.constant 0 : index
    %c0_240 = arith.constant 0 : index
    %532 = vector.load %arg5[%c2_237, %c3_238, %c0_239, %c0_240] : memref<9x8x4x1xf32, #tpu.memory_space<vmem>>, vector<1x1x4x1xf32>
    %533 = vector.shape_cast %532 : vector<1x1x4x1xf32> to vector<4x1xf32>
    %534 = vector.extract_strided_slice %507 {offsets = [0, 3, 0], sizes = [1, 1, 256], strides = [1, 1, 1]} : vector<1x8x256xf32> to vector<1x1x256xf32>
    %535 = vector.shape_cast %533 : vector<4x1xf32> to vector<1x4x1xf32>
    %536 = vector.broadcast %535 : vector<1x4x1xf32> to vector<1x4x256xf32>
    %537 = vector.broadcast %534 : vector<1x1x256xf32> to vector<1x4x256xf32>
    %538 = arith.mulf %536, %537 : vector<1x4x256xf32>
    %539 = arith.addf %531, %538 : vector<1x4x256xf32>
    %c2_241 = arith.constant 2 : index
    %c4_242 = arith.constant 4 : index
    %c0_243 = arith.constant 0 : index
    %c0_244 = arith.constant 0 : index
    %540 = vector.load %arg5[%c2_241, %c4_242, %c0_243, %c0_244] : memref<9x8x4x1xf32, #tpu.memory_space<vmem>>, vector<1x1x4x1xf32>
    %541 = vector.shape_cast %540 : vector<1x1x4x1xf32> to vector<4x1xf32>
    %542 = vector.extract_strided_slice %507 {offsets = [0, 4, 0], sizes = [1, 1, 256], strides = [1, 1, 1]} : vector<1x8x256xf32> to vector<1x1x256xf32>
    %543 = vector.shape_cast %541 : vector<4x1xf32> to vector<1x4x1xf32>
    %544 = vector.broadcast %543 : vector<1x4x1xf32> to vector<1x4x256xf32>
    %545 = vector.broadcast %542 : vector<1x1x256xf32> to vector<1x4x256xf32>
    %546 = arith.mulf %544, %545 : vector<1x4x256xf32>
    %547 = arith.addf %539, %546 : vector<1x4x256xf32>
    %c2_245 = arith.constant 2 : index
    %c5_246 = arith.constant 5 : index
    %c0_247 = arith.constant 0 : index
    %c0_248 = arith.constant 0 : index
    %548 = vector.load %arg5[%c2_245, %c5_246, %c0_247, %c0_248] : memref<9x8x4x1xf32, #tpu.memory_space<vmem>>, vector<1x1x4x1xf32>
    %549 = vector.shape_cast %548 : vector<1x1x4x1xf32> to vector<4x1xf32>
    %550 = vector.extract_strided_slice %507 {offsets = [0, 5, 0], sizes = [1, 1, 256], strides = [1, 1, 1]} : vector<1x8x256xf32> to vector<1x1x256xf32>
    %551 = vector.shape_cast %549 : vector<4x1xf32> to vector<1x4x1xf32>
    %552 = vector.broadcast %551 : vector<1x4x1xf32> to vector<1x4x256xf32>
    %553 = vector.broadcast %550 : vector<1x1x256xf32> to vector<1x4x256xf32>
    %554 = arith.mulf %552, %553 : vector<1x4x256xf32>
    %555 = arith.addf %547, %554 : vector<1x4x256xf32>
    %c2_249 = arith.constant 2 : index
    %c6_250 = arith.constant 6 : index
    %c0_251 = arith.constant 0 : index
    %c0_252 = arith.constant 0 : index
    %556 = vector.load %arg5[%c2_249, %c6_250, %c0_251, %c0_252] : memref<9x8x4x1xf32, #tpu.memory_space<vmem>>, vector<1x1x4x1xf32>
    %557 = vector.shape_cast %556 : vector<1x1x4x1xf32> to vector<4x1xf32>
    %558 = vector.extract_strided_slice %507 {offsets = [0, 6, 0], sizes = [1, 1, 256], strides = [1, 1, 1]} : vector<1x8x256xf32> to vector<1x1x256xf32>
    %559 = vector.shape_cast %557 : vector<4x1xf32> to vector<1x4x1xf32>
    %560 = vector.broadcast %559 : vector<1x4x1xf32> to vector<1x4x256xf32>
    %561 = vector.broadcast %558 : vector<1x1x256xf32> to vector<1x4x256xf32>
    %562 = arith.mulf %560, %561 : vector<1x4x256xf32>
    %563 = arith.addf %555, %562 : vector<1x4x256xf32>
    %c2_253 = arith.constant 2 : index
    %c7_254 = arith.constant 7 : index
    %c0_255 = arith.constant 0 : index
    %c0_256 = arith.constant 0 : index
    %564 = vector.load %arg5[%c2_253, %c7_254, %c0_255, %c0_256] : memref<9x8x4x1xf32, #tpu.memory_space<vmem>>, vector<1x1x4x1xf32>
    %565 = vector.shape_cast %564 : vector<1x1x4x1xf32> to vector<4x1xf32>
    %566 = vector.extract_strided_slice %507 {offsets = [0, 7, 0], sizes = [1, 1, 256], strides = [1, 1, 1]} : vector<1x8x256xf32> to vector<1x1x256xf32>
    %567 = vector.shape_cast %565 : vector<4x1xf32> to vector<1x4x1xf32>
    %568 = vector.broadcast %567 : vector<1x4x1xf32> to vector<1x4x256xf32>
    %569 = vector.broadcast %566 : vector<1x1x256xf32> to vector<1x4x256xf32>
    %570 = arith.mulf %568, %569 : vector<1x4x256xf32>
    %571 = arith.addf %563, %570 : vector<1x4x256xf32>
    %cst_257 = arith.constant 0.000000e+00 : f32
    %572 = vector.broadcast %cst_257 : f32 to vector<1x8x1xf32>
    %573 = vector.extract_strided_slice %361 {offsets = [0, 0, 0], sizes = [1, 8, 255], strides = [1, 1, 1]} : vector<1x8x256xf32> to vector<1x8x255xf32>
    %574 = tpu.concatenate %572, %573 in 2 : vector<1x8x1xf32>, vector<1x8x255xf32> -> vector<1x8x256xf32>
    %575 = vector.broadcast %25 : vector<1x1x256xf32> to vector<1x8x256xf32>
    %576 = arith.mulf %574, %575 : vector<1x8x256xf32>
    %c3_258 = arith.constant 3 : index
    %c0_259 = arith.constant 0 : index
    %c0_260 = arith.constant 0 : index
    %c0_261 = arith.constant 0 : index
    %577 = vector.load %arg5[%c3_258, %c0_259, %c0_260, %c0_261] : memref<9x8x4x1xf32, #tpu.memory_space<vmem>>, vector<1x1x4x1xf32>
    %578 = vector.shape_cast %577 : vector<1x1x4x1xf32> to vector<4x1xf32>
    %579 = vector.extract_strided_slice %576 {offsets = [0, 0, 0], sizes = [1, 1, 256], strides = [1, 1, 1]} : vector<1x8x256xf32> to vector<1x1x256xf32>
    %580 = vector.shape_cast %578 : vector<4x1xf32> to vector<1x4x1xf32>
    %581 = vector.broadcast %580 : vector<1x4x1xf32> to vector<1x4x256xf32>
    %582 = vector.broadcast %579 : vector<1x1x256xf32> to vector<1x4x256xf32>
    %583 = arith.mulf %581, %582 : vector<1x4x256xf32>
    %584 = arith.addf %571, %583 : vector<1x4x256xf32>
    %c3_262 = arith.constant 3 : index
    %c1_263 = arith.constant 1 : index
    %c0_264 = arith.constant 0 : index
    %c0_265 = arith.constant 0 : index
    %585 = vector.load %arg5[%c3_262, %c1_263, %c0_264, %c0_265] : memref<9x8x4x1xf32, #tpu.memory_space<vmem>>, vector<1x1x4x1xf32>
    %586 = vector.shape_cast %585 : vector<1x1x4x1xf32> to vector<4x1xf32>
    %587 = vector.extract_strided_slice %576 {offsets = [0, 1, 0], sizes = [1, 1, 256], strides = [1, 1, 1]} : vector<1x8x256xf32> to vector<1x1x256xf32>
    %588 = vector.shape_cast %586 : vector<4x1xf32> to vector<1x4x1xf32>
    %589 = vector.broadcast %588 : vector<1x4x1xf32> to vector<1x4x256xf32>
    %590 = vector.broadcast %587 : vector<1x1x256xf32> to vector<1x4x256xf32>
    %591 = arith.mulf %589, %590 : vector<1x4x256xf32>
    %592 = arith.addf %584, %591 : vector<1x4x256xf32>
    %c3_266 = arith.constant 3 : index
    %c2_267 = arith.constant 2 : index
    %c0_268 = arith.constant 0 : index
    %c0_269 = arith.constant 0 : index
    %593 = vector.load %arg5[%c3_266, %c2_267, %c0_268, %c0_269] : memref<9x8x4x1xf32, #tpu.memory_space<vmem>>, vector<1x1x4x1xf32>
    %594 = vector.shape_cast %593 : vector<1x1x4x1xf32> to vector<4x1xf32>
    %595 = vector.extract_strided_slice %576 {offsets = [0, 2, 0], sizes = [1, 1, 256], strides = [1, 1, 1]} : vector<1x8x256xf32> to vector<1x1x256xf32>
    %596 = vector.shape_cast %594 : vector<4x1xf32> to vector<1x4x1xf32>
    %597 = vector.broadcast %596 : vector<1x4x1xf32> to vector<1x4x256xf32>
    %598 = vector.broadcast %595 : vector<1x1x256xf32> to vector<1x4x256xf32>
    %599 = arith.mulf %597, %598 : vector<1x4x256xf32>
    %600 = arith.addf %592, %599 : vector<1x4x256xf32>
    %c3_270 = arith.constant 3 : index
    %c3_271 = arith.constant 3 : index
    %c0_272 = arith.constant 0 : index
    %c0_273 = arith.constant 0 : index
    %601 = vector.load %arg5[%c3_270, %c3_271, %c0_272, %c0_273] : memref<9x8x4x1xf32, #tpu.memory_space<vmem>>, vector<1x1x4x1xf32>
    %602 = vector.shape_cast %601 : vector<1x1x4x1xf32> to vector<4x1xf32>
    %603 = vector.extract_strided_slice %576 {offsets = [0, 3, 0], sizes = [1, 1, 256], strides = [1, 1, 1]} : vector<1x8x256xf32> to vector<1x1x256xf32>
    %604 = vector.shape_cast %602 : vector<4x1xf32> to vector<1x4x1xf32>
    %605 = vector.broadcast %604 : vector<1x4x1xf32> to vector<1x4x256xf32>
    %606 = vector.broadcast %603 : vector<1x1x256xf32> to vector<1x4x256xf32>
    %607 = arith.mulf %605, %606 : vector<1x4x256xf32>
    %608 = arith.addf %600, %607 : vector<1x4x256xf32>
    %c3_274 = arith.constant 3 : index
    %c4_275 = arith.constant 4 : index
    %c0_276 = arith.constant 0 : index
    %c0_277 = arith.constant 0 : index
    %609 = vector.load %arg5[%c3_274, %c4_275, %c0_276, %c0_277] : memref<9x8x4x1xf32, #tpu.memory_space<vmem>>, vector<1x1x4x1xf32>
    %610 = vector.shape_cast %609 : vector<1x1x4x1xf32> to vector<4x1xf32>
    %611 = vector.extract_strided_slice %576 {offsets = [0, 4, 0], sizes = [1, 1, 256], strides = [1, 1, 1]} : vector<1x8x256xf32> to vector<1x1x256xf32>
    %612 = vector.shape_cast %610 : vector<4x1xf32> to vector<1x4x1xf32>
    %613 = vector.broadcast %612 : vector<1x4x1xf32> to vector<1x4x256xf32>
    %614 = vector.broadcast %611 : vector<1x1x256xf32> to vector<1x4x256xf32>
    %615 = arith.mulf %613, %614 : vector<1x4x256xf32>
    %616 = arith.addf %608, %615 : vector<1x4x256xf32>
    %c3_278 = arith.constant 3 : index
    %c5_279 = arith.constant 5 : index
    %c0_280 = arith.constant 0 : index
    %c0_281 = arith.constant 0 : index
    %617 = vector.load %arg5[%c3_278, %c5_279, %c0_280, %c0_281] : memref<9x8x4x1xf32, #tpu.memory_space<vmem>>, vector<1x1x4x1xf32>
    %618 = vector.shape_cast %617 : vector<1x1x4x1xf32> to vector<4x1xf32>
    %619 = vector.extract_strided_slice %576 {offsets = [0, 5, 0], sizes = [1, 1, 256], strides = [1, 1, 1]} : vector<1x8x256xf32> to vector<1x1x256xf32>
    %620 = vector.shape_cast %618 : vector<4x1xf32> to vector<1x4x1xf32>
    %621 = vector.broadcast %620 : vector<1x4x1xf32> to vector<1x4x256xf32>
    %622 = vector.broadcast %619 : vector<1x1x256xf32> to vector<1x4x256xf32>
    %623 = arith.mulf %621, %622 : vector<1x4x256xf32>
    %624 = arith.addf %616, %623 : vector<1x4x256xf32>
    %c3_282 = arith.constant 3 : index
    %c6_283 = arith.constant 6 : index
    %c0_284 = arith.constant 0 : index
    %c0_285 = arith.constant 0 : index
    %625 = vector.load %arg5[%c3_282, %c6_283, %c0_284, %c0_285] : memref<9x8x4x1xf32, #tpu.memory_space<vmem>>, vector<1x1x4x1xf32>
    %626 = vector.shape_cast %625 : vector<1x1x4x1xf32> to vector<4x1xf32>
    %627 = vector.extract_strided_slice %576 {offsets = [0, 6, 0], sizes = [1, 1, 256], strides = [1, 1, 1]} : vector<1x8x256xf32> to vector<1x1x256xf32>
    %628 = vector.shape_cast %626 : vector<4x1xf32> to vector<1x4x1xf32>
    %629 = vector.broadcast %628 : vector<1x4x1xf32> to vector<1x4x256xf32>
    %630 = vector.broadcast %627 : vector<1x1x256xf32> to vector<1x4x256xf32>
    %631 = arith.mulf %629, %630 : vector<1x4x256xf32>
    %632 = arith.addf %624, %631 : vector<1x4x256xf32>
    %c3_286 = arith.constant 3 : index
    %c7_287 = arith.constant 7 : index
    %c0_288 = arith.constant 0 : index
    %c0_289 = arith.constant 0 : index
    %633 = vector.load %arg5[%c3_286, %c7_287, %c0_288, %c0_289] : memref<9x8x4x1xf32, #tpu.memory_space<vmem>>, vector<1x1x4x1xf32>
    %634 = vector.shape_cast %633 : vector<1x1x4x1xf32> to vector<4x1xf32>
    %635 = vector.extract_strided_slice %576 {offsets = [0, 7, 0], sizes = [1, 1, 256], strides = [1, 1, 1]} : vector<1x8x256xf32> to vector<1x1x256xf32>
    %636 = vector.shape_cast %634 : vector<4x1xf32> to vector<1x4x1xf32>
    %637 = vector.broadcast %636 : vector<1x4x1xf32> to vector<1x4x256xf32>
    %638 = vector.broadcast %635 : vector<1x1x256xf32> to vector<1x4x256xf32>
    %639 = arith.mulf %637, %638 : vector<1x4x256xf32>
    %640 = arith.addf %632, %639 : vector<1x4x256xf32>
    %c4_290 = arith.constant 4 : index
    %c0_291 = arith.constant 0 : index
    %c0_292 = arith.constant 0 : index
    %c0_293 = arith.constant 0 : index
    %641 = vector.load %arg5[%c4_290, %c0_291, %c0_292, %c0_293] : memref<9x8x4x1xf32, #tpu.memory_space<vmem>>, vector<1x1x4x1xf32>
    %642 = vector.shape_cast %641 : vector<1x1x4x1xf32> to vector<4x1xf32>
    %643 = vector.extract_strided_slice %361 {offsets = [0, 0, 0], sizes = [1, 1, 256], strides = [1, 1, 1]} : vector<1x8x256xf32> to vector<1x1x256xf32>
    %644 = vector.shape_cast %642 : vector<4x1xf32> to vector<1x4x1xf32>
    %645 = vector.broadcast %644 : vector<1x4x1xf32> to vector<1x4x256xf32>
    %646 = vector.broadcast %643 : vector<1x1x256xf32> to vector<1x4x256xf32>
    %647 = arith.mulf %645, %646 : vector<1x4x256xf32>
    %648 = arith.addf %640, %647 : vector<1x4x256xf32>
    %c4_294 = arith.constant 4 : index
    %c1_295 = arith.constant 1 : index
    %c0_296 = arith.constant 0 : index
    %c0_297 = arith.constant 0 : index
    %649 = vector.load %arg5[%c4_294, %c1_295, %c0_296, %c0_297] : memref<9x8x4x1xf32, #tpu.memory_space<vmem>>, vector<1x1x4x1xf32>
    %650 = vector.shape_cast %649 : vector<1x1x4x1xf32> to vector<4x1xf32>
    %651 = vector.extract_strided_slice %361 {offsets = [0, 1, 0], sizes = [1, 1, 256], strides = [1, 1, 1]} : vector<1x8x256xf32> to vector<1x1x256xf32>
    %652 = vector.shape_cast %650 : vector<4x1xf32> to vector<1x4x1xf32>
    %653 = vector.broadcast %652 : vector<1x4x1xf32> to vector<1x4x256xf32>
    %654 = vector.broadcast %651 : vector<1x1x256xf32> to vector<1x4x256xf32>
    %655 = arith.mulf %653, %654 : vector<1x4x256xf32>
    %656 = arith.addf %648, %655 : vector<1x4x256xf32>
    %c4_298 = arith.constant 4 : index
    %c2_299 = arith.constant 2 : index
    %c0_300 = arith.constant 0 : index
    %c0_301 = arith.constant 0 : index
    %657 = vector.load %arg5[%c4_298, %c2_299, %c0_300, %c0_301] : memref<9x8x4x1xf32, #tpu.memory_space<vmem>>, vector<1x1x4x1xf32>
    %658 = vector.shape_cast %657 : vector<1x1x4x1xf32> to vector<4x1xf32>
    %659 = vector.extract_strided_slice %361 {offsets = [0, 2, 0], sizes = [1, 1, 256], strides = [1, 1, 1]} : vector<1x8x256xf32> to vector<1x1x256xf32>
    %660 = vector.shape_cast %658 : vector<4x1xf32> to vector<1x4x1xf32>
    %661 = vector.broadcast %660 : vector<1x4x1xf32> to vector<1x4x256xf32>
    %662 = vector.broadcast %659 : vector<1x1x256xf32> to vector<1x4x256xf32>
    %663 = arith.mulf %661, %662 : vector<1x4x256xf32>
    %664 = arith.addf %656, %663 : vector<1x4x256xf32>
    %c4_302 = arith.constant 4 : index
    %c3_303 = arith.constant 3 : index
    %c0_304 = arith.constant 0 : index
    %c0_305 = arith.constant 0 : index
    %665 = vector.load %arg5[%c4_302, %c3_303, %c0_304, %c0_305] : memref<9x8x4x1xf32, #tpu.memory_space<vmem>>, vector<1x1x4x1xf32>
    %666 = vector.shape_cast %665 : vector<1x1x4x1xf32> to vector<4x1xf32>
    %667 = vector.extract_strided_slice %361 {offsets = [0, 3, 0], sizes = [1, 1, 256], strides = [1, 1, 1]} : vector<1x8x256xf32> to vector<1x1x256xf32>
    %668 = vector.shape_cast %666 : vector<4x1xf32> to vector<1x4x1xf32>
    %669 = vector.broadcast %668 : vector<1x4x1xf32> to vector<1x4x256xf32>
    %670 = vector.broadcast %667 : vector<1x1x256xf32> to vector<1x4x256xf32>
    %671 = arith.mulf %669, %670 : vector<1x4x256xf32>
    %672 = arith.addf %664, %671 : vector<1x4x256xf32>
    %c4_306 = arith.constant 4 : index
    %c4_307 = arith.constant 4 : index
    %c0_308 = arith.constant 0 : index
    %c0_309 = arith.constant 0 : index
    %673 = vector.load %arg5[%c4_306, %c4_307, %c0_308, %c0_309] : memref<9x8x4x1xf32, #tpu.memory_space<vmem>>, vector<1x1x4x1xf32>
    %674 = vector.shape_cast %673 : vector<1x1x4x1xf32> to vector<4x1xf32>
    %675 = vector.extract_strided_slice %361 {offsets = [0, 4, 0], sizes = [1, 1, 256], strides = [1, 1, 1]} : vector<1x8x256xf32> to vector<1x1x256xf32>
    %676 = vector.shape_cast %674 : vector<4x1xf32> to vector<1x4x1xf32>
    %677 = vector.broadcast %676 : vector<1x4x1xf32> to vector<1x4x256xf32>
    %678 = vector.broadcast %675 : vector<1x1x256xf32> to vector<1x4x256xf32>
    %679 = arith.mulf %677, %678 : vector<1x4x256xf32>
    %680 = arith.addf %672, %679 : vector<1x4x256xf32>
    %c4_310 = arith.constant 4 : index
    %c5_311 = arith.constant 5 : index
    %c0_312 = arith.constant 0 : index
    %c0_313 = arith.constant 0 : index
    %681 = vector.load %arg5[%c4_310, %c5_311, %c0_312, %c0_313] : memref<9x8x4x1xf32, #tpu.memory_space<vmem>>, vector<1x1x4x1xf32>
    %682 = vector.shape_cast %681 : vector<1x1x4x1xf32> to vector<4x1xf32>
    %683 = vector.extract_strided_slice %361 {offsets = [0, 5, 0], sizes = [1, 1, 256], strides = [1, 1, 1]} : vector<1x8x256xf32> to vector<1x1x256xf32>
    %684 = vector.shape_cast %682 : vector<4x1xf32> to vector<1x4x1xf32>
    %685 = vector.broadcast %684 : vector<1x4x1xf32> to vector<1x4x256xf32>
    %686 = vector.broadcast %683 : vector<1x1x256xf32> to vector<1x4x256xf32>
    %687 = arith.mulf %685, %686 : vector<1x4x256xf32>
    %688 = arith.addf %680, %687 : vector<1x4x256xf32>
    %c4_314 = arith.constant 4 : index
    %c6_315 = arith.constant 6 : index
    %c0_316 = arith.constant 0 : index
    %c0_317 = arith.constant 0 : index
    %689 = vector.load %arg5[%c4_314, %c6_315, %c0_316, %c0_317] : memref<9x8x4x1xf32, #tpu.memory_space<vmem>>, vector<1x1x4x1xf32>
    %690 = vector.shape_cast %689 : vector<1x1x4x1xf32> to vector<4x1xf32>
    %691 = vector.extract_strided_slice %361 {offsets = [0, 6, 0], sizes = [1, 1, 256], strides = [1, 1, 1]} : vector<1x8x256xf32> to vector<1x1x256xf32>
    %692 = vector.shape_cast %690 : vector<4x1xf32> to vector<1x4x1xf32>
    %693 = vector.broadcast %692 : vector<1x4x1xf32> to vector<1x4x256xf32>
    %694 = vector.broadcast %691 : vector<1x1x256xf32> to vector<1x4x256xf32>
    %695 = arith.mulf %693, %694 : vector<1x4x256xf32>
    %696 = arith.addf %688, %695 : vector<1x4x256xf32>
    %c4_318 = arith.constant 4 : index
    %c7_319 = arith.constant 7 : index
    %c0_320 = arith.constant 0 : index
    %c0_321 = arith.constant 0 : index
    %697 = vector.load %arg5[%c4_318, %c7_319, %c0_320, %c0_321] : memref<9x8x4x1xf32, #tpu.memory_space<vmem>>, vector<1x1x4x1xf32>
    %698 = vector.shape_cast %697 : vector<1x1x4x1xf32> to vector<4x1xf32>
    %699 = vector.extract_strided_slice %361 {offsets = [0, 7, 0], sizes = [1, 1, 256], strides = [1, 1, 1]} : vector<1x8x256xf32> to vector<1x1x256xf32>
    %700 = vector.shape_cast %698 : vector<4x1xf32> to vector<1x4x1xf32>
    %701 = vector.broadcast %700 : vector<1x4x1xf32> to vector<1x4x256xf32>
    %702 = vector.broadcast %699 : vector<1x1x256xf32> to vector<1x4x256xf32>
    %703 = arith.mulf %701, %702 : vector<1x4x256xf32>
    %704 = arith.addf %696, %703 : vector<1x4x256xf32>
    %cst_322 = arith.constant 0.000000e+00 : f32
    %705 = vector.broadcast %cst_322 : f32 to vector<1x8x1xf32>
    %706 = vector.extract_strided_slice %361 {offsets = [0, 0, 1], sizes = [1, 8, 255], strides = [1, 1, 1]} : vector<1x8x256xf32> to vector<1x8x255xf32>
    %707 = tpu.concatenate %706, %705 in 2 : vector<1x8x255xf32>, vector<1x8x1xf32> -> vector<1x8x256xf32>
    %708 = vector.broadcast %21 : vector<1x1x256xf32> to vector<1x8x256xf32>
    %709 = arith.mulf %707, %708 : vector<1x8x256xf32>
    %c5_323 = arith.constant 5 : index
    %c0_324 = arith.constant 0 : index
    %c0_325 = arith.constant 0 : index
    %c0_326 = arith.constant 0 : index
    %710 = vector.load %arg5[%c5_323, %c0_324, %c0_325, %c0_326] : memref<9x8x4x1xf32, #tpu.memory_space<vmem>>, vector<1x1x4x1xf32>
    %711 = vector.shape_cast %710 : vector<1x1x4x1xf32> to vector<4x1xf32>
    %712 = vector.extract_strided_slice %709 {offsets = [0, 0, 0], sizes = [1, 1, 256], strides = [1, 1, 1]} : vector<1x8x256xf32> to vector<1x1x256xf32>
    %713 = vector.shape_cast %711 : vector<4x1xf32> to vector<1x4x1xf32>
    %714 = vector.broadcast %713 : vector<1x4x1xf32> to vector<1x4x256xf32>
    %715 = vector.broadcast %712 : vector<1x1x256xf32> to vector<1x4x256xf32>
    %716 = arith.mulf %714, %715 : vector<1x4x256xf32>
    %717 = arith.addf %704, %716 : vector<1x4x256xf32>
    %c5_327 = arith.constant 5 : index
    %c1_328 = arith.constant 1 : index
    %c0_329 = arith.constant 0 : index
    %c0_330 = arith.constant 0 : index
    %718 = vector.load %arg5[%c5_327, %c1_328, %c0_329, %c0_330] : memref<9x8x4x1xf32, #tpu.memory_space<vmem>>, vector<1x1x4x1xf32>
    %719 = vector.shape_cast %718 : vector<1x1x4x1xf32> to vector<4x1xf32>
    %720 = vector.extract_strided_slice %709 {offsets = [0, 1, 0], sizes = [1, 1, 256], strides = [1, 1, 1]} : vector<1x8x256xf32> to vector<1x1x256xf32>
    %721 = vector.shape_cast %719 : vector<4x1xf32> to vector<1x4x1xf32>
    %722 = vector.broadcast %721 : vector<1x4x1xf32> to vector<1x4x256xf32>
    %723 = vector.broadcast %720 : vector<1x1x256xf32> to vector<1x4x256xf32>
    %724 = arith.mulf %722, %723 : vector<1x4x256xf32>
    %725 = arith.addf %717, %724 : vector<1x4x256xf32>
    %c5_331 = arith.constant 5 : index
    %c2_332 = arith.constant 2 : index
    %c0_333 = arith.constant 0 : index
    %c0_334 = arith.constant 0 : index
    %726 = vector.load %arg5[%c5_331, %c2_332, %c0_333, %c0_334] : memref<9x8x4x1xf32, #tpu.memory_space<vmem>>, vector<1x1x4x1xf32>
    %727 = vector.shape_cast %726 : vector<1x1x4x1xf32> to vector<4x1xf32>
    %728 = vector.extract_strided_slice %709 {offsets = [0, 2, 0], sizes = [1, 1, 256], strides = [1, 1, 1]} : vector<1x8x256xf32> to vector<1x1x256xf32>
    %729 = vector.shape_cast %727 : vector<4x1xf32> to vector<1x4x1xf32>
    %730 = vector.broadcast %729 : vector<1x4x1xf32> to vector<1x4x256xf32>
    %731 = vector.broadcast %728 : vector<1x1x256xf32> to vector<1x4x256xf32>
    %732 = arith.mulf %730, %731 : vector<1x4x256xf32>
    %733 = arith.addf %725, %732 : vector<1x4x256xf32>
    %c5_335 = arith.constant 5 : index
    %c3_336 = arith.constant 3 : index
    %c0_337 = arith.constant 0 : index
    %c0_338 = arith.constant 0 : index
    %734 = vector.load %arg5[%c5_335, %c3_336, %c0_337, %c0_338] : memref<9x8x4x1xf32, #tpu.memory_space<vmem>>, vector<1x1x4x1xf32>
    %735 = vector.shape_cast %734 : vector<1x1x4x1xf32> to vector<4x1xf32>
    %736 = vector.extract_strided_slice %709 {offsets = [0, 3, 0], sizes = [1, 1, 256], strides = [1, 1, 1]} : vector<1x8x256xf32> to vector<1x1x256xf32>
    %737 = vector.shape_cast %735 : vector<4x1xf32> to vector<1x4x1xf32>
    %738 = vector.broadcast %737 : vector<1x4x1xf32> to vector<1x4x256xf32>
    %739 = vector.broadcast %736 : vector<1x1x256xf32> to vector<1x4x256xf32>
    %740 = arith.mulf %738, %739 : vector<1x4x256xf32>
    %741 = arith.addf %733, %740 : vector<1x4x256xf32>
    %c5_339 = arith.constant 5 : index
    %c4_340 = arith.constant 4 : index
    %c0_341 = arith.constant 0 : index
    %c0_342 = arith.constant 0 : index
    %742 = vector.load %arg5[%c5_339, %c4_340, %c0_341, %c0_342] : memref<9x8x4x1xf32, #tpu.memory_space<vmem>>, vector<1x1x4x1xf32>
    %743 = vector.shape_cast %742 : vector<1x1x4x1xf32> to vector<4x1xf32>
    %744 = vector.extract_strided_slice %709 {offsets = [0, 4, 0], sizes = [1, 1, 256], strides = [1, 1, 1]} : vector<1x8x256xf32> to vector<1x1x256xf32>
    %745 = vector.shape_cast %743 : vector<4x1xf32> to vector<1x4x1xf32>
    %746 = vector.broadcast %745 : vector<1x4x1xf32> to vector<1x4x256xf32>
    %747 = vector.broadcast %744 : vector<1x1x256xf32> to vector<1x4x256xf32>
    %748 = arith.mulf %746, %747 : vector<1x4x256xf32>
    %749 = arith.addf %741, %748 : vector<1x4x256xf32>
    %c5_343 = arith.constant 5 : index
    %c5_344 = arith.constant 5 : index
    %c0_345 = arith.constant 0 : index
    %c0_346 = arith.constant 0 : index
    %750 = vector.load %arg5[%c5_343, %c5_344, %c0_345, %c0_346] : memref<9x8x4x1xf32, #tpu.memory_space<vmem>>, vector<1x1x4x1xf32>
    %751 = vector.shape_cast %750 : vector<1x1x4x1xf32> to vector<4x1xf32>
    %752 = vector.extract_strided_slice %709 {offsets = [0, 5, 0], sizes = [1, 1, 256], strides = [1, 1, 1]} : vector<1x8x256xf32> to vector<1x1x256xf32>
    %753 = vector.shape_cast %751 : vector<4x1xf32> to vector<1x4x1xf32>
    %754 = vector.broadcast %753 : vector<1x4x1xf32> to vector<1x4x256xf32>
    %755 = vector.broadcast %752 : vector<1x1x256xf32> to vector<1x4x256xf32>
    %756 = arith.mulf %754, %755 : vector<1x4x256xf32>
    %757 = arith.addf %749, %756 : vector<1x4x256xf32>
    %c5_347 = arith.constant 5 : index
    %c6_348 = arith.constant 6 : index
    %c0_349 = arith.constant 0 : index
    %c0_350 = arith.constant 0 : index
    %758 = vector.load %arg5[%c5_347, %c6_348, %c0_349, %c0_350] : memref<9x8x4x1xf32, #tpu.memory_space<vmem>>, vector<1x1x4x1xf32>
    %759 = vector.shape_cast %758 : vector<1x1x4x1xf32> to vector<4x1xf32>
    %760 = vector.extract_strided_slice %709 {offsets = [0, 6, 0], sizes = [1, 1, 256], strides = [1, 1, 1]} : vector<1x8x256xf32> to vector<1x1x256xf32>
    %761 = vector.shape_cast %759 : vector<4x1xf32> to vector<1x4x1xf32>
    %762 = vector.broadcast %761 : vector<1x4x1xf32> to vector<1x4x256xf32>
    %763 = vector.broadcast %760 : vector<1x1x256xf32> to vector<1x4x256xf32>
    %764 = arith.mulf %762, %763 : vector<1x4x256xf32>
    %765 = arith.addf %757, %764 : vector<1x4x256xf32>
    %c5_351 = arith.constant 5 : index
    %c7_352 = arith.constant 7 : index
    %c0_353 = arith.constant 0 : index
    %c0_354 = arith.constant 0 : index
    %766 = vector.load %arg5[%c5_351, %c7_352, %c0_353, %c0_354] : memref<9x8x4x1xf32, #tpu.memory_space<vmem>>, vector<1x1x4x1xf32>
    %767 = vector.shape_cast %766 : vector<1x1x4x1xf32> to vector<4x1xf32>
    %768 = vector.extract_strided_slice %709 {offsets = [0, 7, 0], sizes = [1, 1, 256], strides = [1, 1, 1]} : vector<1x8x256xf32> to vector<1x1x256xf32>
    %769 = vector.shape_cast %767 : vector<4x1xf32> to vector<1x4x1xf32>
    %770 = vector.broadcast %769 : vector<1x4x1xf32> to vector<1x4x256xf32>
    %771 = vector.broadcast %768 : vector<1x1x256xf32> to vector<1x4x256xf32>
    %772 = arith.mulf %770, %771 : vector<1x4x256xf32>
    %773 = arith.addf %765, %772 : vector<1x4x256xf32>
    %cst_355 = arith.constant 0.000000e+00 : f32
    %774 = vector.broadcast %cst_355 : f32 to vector<1x8x15xf32>
    %775 = vector.extract_strided_slice %361 {offsets = [0, 0, 15], sizes = [1, 8, 241], strides = [1, 1, 1]} : vector<1x8x256xf32> to vector<1x8x241xf32>
    %776 = tpu.concatenate %775, %774 in 2 : vector<1x8x241xf32>, vector<1x8x15xf32> -> vector<1x8x256xf32>
    %777 = vector.broadcast %25 : vector<1x1x256xf32> to vector<1x8x256xf32>
    %778 = arith.mulf %776, %777 : vector<1x8x256xf32>
    %c6_356 = arith.constant 6 : index
    %c0_357 = arith.constant 0 : index
    %c0_358 = arith.constant 0 : index
    %c0_359 = arith.constant 0 : index
    %779 = vector.load %arg5[%c6_356, %c0_357, %c0_358, %c0_359] : memref<9x8x4x1xf32, #tpu.memory_space<vmem>>, vector<1x1x4x1xf32>
    %780 = vector.shape_cast %779 : vector<1x1x4x1xf32> to vector<4x1xf32>
    %781 = vector.extract_strided_slice %778 {offsets = [0, 0, 0], sizes = [1, 1, 256], strides = [1, 1, 1]} : vector<1x8x256xf32> to vector<1x1x256xf32>
    %782 = vector.shape_cast %780 : vector<4x1xf32> to vector<1x4x1xf32>
    %783 = vector.broadcast %782 : vector<1x4x1xf32> to vector<1x4x256xf32>
    %784 = vector.broadcast %781 : vector<1x1x256xf32> to vector<1x4x256xf32>
    %785 = arith.mulf %783, %784 : vector<1x4x256xf32>
    %786 = arith.addf %773, %785 : vector<1x4x256xf32>
    %c6_360 = arith.constant 6 : index
    %c1_361 = arith.constant 1 : index
    %c0_362 = arith.constant 0 : index
    %c0_363 = arith.constant 0 : index
    %787 = vector.load %arg5[%c6_360, %c1_361, %c0_362, %c0_363] : memref<9x8x4x1xf32, #tpu.memory_space<vmem>>, vector<1x1x4x1xf32>
    %788 = vector.shape_cast %787 : vector<1x1x4x1xf32> to vector<4x1xf32>
    %789 = vector.extract_strided_slice %778 {offsets = [0, 1, 0], sizes = [1, 1, 256], strides = [1, 1, 1]} : vector<1x8x256xf32> to vector<1x1x256xf32>
    %790 = vector.shape_cast %788 : vector<4x1xf32> to vector<1x4x1xf32>
    %791 = vector.broadcast %790 : vector<1x4x1xf32> to vector<1x4x256xf32>
    %792 = vector.broadcast %789 : vector<1x1x256xf32> to vector<1x4x256xf32>
    %793 = arith.mulf %791, %792 : vector<1x4x256xf32>
    %794 = arith.addf %786, %793 : vector<1x4x256xf32>
    %c6_364 = arith.constant 6 : index
    %c2_365 = arith.constant 2 : index
    %c0_366 = arith.constant 0 : index
    %c0_367 = arith.constant 0 : index
    %795 = vector.load %arg5[%c6_364, %c2_365, %c0_366, %c0_367] : memref<9x8x4x1xf32, #tpu.memory_space<vmem>>, vector<1x1x4x1xf32>
    %796 = vector.shape_cast %795 : vector<1x1x4x1xf32> to vector<4x1xf32>
    %797 = vector.extract_strided_slice %778 {offsets = [0, 2, 0], sizes = [1, 1, 256], strides = [1, 1, 1]} : vector<1x8x256xf32> to vector<1x1x256xf32>
    %798 = vector.shape_cast %796 : vector<4x1xf32> to vector<1x4x1xf32>
    %799 = vector.broadcast %798 : vector<1x4x1xf32> to vector<1x4x256xf32>
    %800 = vector.broadcast %797 : vector<1x1x256xf32> to vector<1x4x256xf32>
    %801 = arith.mulf %799, %800 : vector<1x4x256xf32>
    %802 = arith.addf %794, %801 : vector<1x4x256xf32>
    %c6_368 = arith.constant 6 : index
    %c3_369 = arith.constant 3 : index
    %c0_370 = arith.constant 0 : index
    %c0_371 = arith.constant 0 : index
    %803 = vector.load %arg5[%c6_368, %c3_369, %c0_370, %c0_371] : memref<9x8x4x1xf32, #tpu.memory_space<vmem>>, vector<1x1x4x1xf32>
    %804 = vector.shape_cast %803 : vector<1x1x4x1xf32> to vector<4x1xf32>
    %805 = vector.extract_strided_slice %778 {offsets = [0, 3, 0], sizes = [1, 1, 256], strides = [1, 1, 1]} : vector<1x8x256xf32> to vector<1x1x256xf32>
    %806 = vector.shape_cast %804 : vector<4x1xf32> to vector<1x4x1xf32>
    %807 = vector.broadcast %806 : vector<1x4x1xf32> to vector<1x4x256xf32>
    %808 = vector.broadcast %805 : vector<1x1x256xf32> to vector<1x4x256xf32>
    %809 = arith.mulf %807, %808 : vector<1x4x256xf32>
    %810 = arith.addf %802, %809 : vector<1x4x256xf32>
    %c6_372 = arith.constant 6 : index
    %c4_373 = arith.constant 4 : index
    %c0_374 = arith.constant 0 : index
    %c0_375 = arith.constant 0 : index
    %811 = vector.load %arg5[%c6_372, %c4_373, %c0_374, %c0_375] : memref<9x8x4x1xf32, #tpu.memory_space<vmem>>, vector<1x1x4x1xf32>
    %812 = vector.shape_cast %811 : vector<1x1x4x1xf32> to vector<4x1xf32>
    %813 = vector.extract_strided_slice %778 {offsets = [0, 4, 0], sizes = [1, 1, 256], strides = [1, 1, 1]} : vector<1x8x256xf32> to vector<1x1x256xf32>
    %814 = vector.shape_cast %812 : vector<4x1xf32> to vector<1x4x1xf32>
    %815 = vector.broadcast %814 : vector<1x4x1xf32> to vector<1x4x256xf32>
    %816 = vector.broadcast %813 : vector<1x1x256xf32> to vector<1x4x256xf32>
    %817 = arith.mulf %815, %816 : vector<1x4x256xf32>
    %818 = arith.addf %810, %817 : vector<1x4x256xf32>
    %c6_376 = arith.constant 6 : index
    %c5_377 = arith.constant 5 : index
    %c0_378 = arith.constant 0 : index
    %c0_379 = arith.constant 0 : index
    %819 = vector.load %arg5[%c6_376, %c5_377, %c0_378, %c0_379] : memref<9x8x4x1xf32, #tpu.memory_space<vmem>>, vector<1x1x4x1xf32>
    %820 = vector.shape_cast %819 : vector<1x1x4x1xf32> to vector<4x1xf32>
    %821 = vector.extract_strided_slice %778 {offsets = [0, 5, 0], sizes = [1, 1, 256], strides = [1, 1, 1]} : vector<1x8x256xf32> to vector<1x1x256xf32>
    %822 = vector.shape_cast %820 : vector<4x1xf32> to vector<1x4x1xf32>
    %823 = vector.broadcast %822 : vector<1x4x1xf32> to vector<1x4x256xf32>
    %824 = vector.broadcast %821 : vector<1x1x256xf32> to vector<1x4x256xf32>
    %825 = arith.mulf %823, %824 : vector<1x4x256xf32>
    %826 = arith.addf %818, %825 : vector<1x4x256xf32>
    %c6_380 = arith.constant 6 : index
    %c6_381 = arith.constant 6 : index
    %c0_382 = arith.constant 0 : index
    %c0_383 = arith.constant 0 : index
    %827 = vector.load %arg5[%c6_380, %c6_381, %c0_382, %c0_383] : memref<9x8x4x1xf32, #tpu.memory_space<vmem>>, vector<1x1x4x1xf32>
    %828 = vector.shape_cast %827 : vector<1x1x4x1xf32> to vector<4x1xf32>
    %829 = vector.extract_strided_slice %778 {offsets = [0, 6, 0], sizes = [1, 1, 256], strides = [1, 1, 1]} : vector<1x8x256xf32> to vector<1x1x256xf32>
    %830 = vector.shape_cast %828 : vector<4x1xf32> to vector<1x4x1xf32>
    %831 = vector.broadcast %830 : vector<1x4x1xf32> to vector<1x4x256xf32>
    %832 = vector.broadcast %829 : vector<1x1x256xf32> to vector<1x4x256xf32>
    %833 = arith.mulf %831, %832 : vector<1x4x256xf32>
    %834 = arith.addf %826, %833 : vector<1x4x256xf32>
    %c6_384 = arith.constant 6 : index
    %c7_385 = arith.constant 7 : index
    %c0_386 = arith.constant 0 : index
    %c0_387 = arith.constant 0 : index
    %835 = vector.load %arg5[%c6_384, %c7_385, %c0_386, %c0_387] : memref<9x8x4x1xf32, #tpu.memory_space<vmem>>, vector<1x1x4x1xf32>
    %836 = vector.shape_cast %835 : vector<1x1x4x1xf32> to vector<4x1xf32>
    %837 = vector.extract_strided_slice %778 {offsets = [0, 7, 0], sizes = [1, 1, 256], strides = [1, 1, 1]} : vector<1x8x256xf32> to vector<1x1x256xf32>
    %838 = vector.shape_cast %836 : vector<4x1xf32> to vector<1x4x1xf32>
    %839 = vector.broadcast %838 : vector<1x4x1xf32> to vector<1x4x256xf32>
    %840 = vector.broadcast %837 : vector<1x1x256xf32> to vector<1x4x256xf32>
    %841 = arith.mulf %839, %840 : vector<1x4x256xf32>
    %842 = arith.addf %834, %841 : vector<1x4x256xf32>
    %cst_388 = arith.constant 0.000000e+00 : f32
    %843 = vector.broadcast %cst_388 : f32 to vector<1x8x16xf32>
    %844 = vector.extract_strided_slice %361 {offsets = [0, 0, 16], sizes = [1, 8, 240], strides = [1, 1, 1]} : vector<1x8x256xf32> to vector<1x8x240xf32>
    %845 = tpu.concatenate %844, %843 in 2 : vector<1x8x240xf32>, vector<1x8x16xf32> -> vector<1x8x256xf32>
    %c7_389 = arith.constant 7 : index
    %c0_390 = arith.constant 0 : index
    %c0_391 = arith.constant 0 : index
    %c0_392 = arith.constant 0 : index
    %846 = vector.load %arg5[%c7_389, %c0_390, %c0_391, %c0_392] : memref<9x8x4x1xf32, #tpu.memory_space<vmem>>, vector<1x1x4x1xf32>
    %847 = vector.shape_cast %846 : vector<1x1x4x1xf32> to vector<4x1xf32>
    %848 = vector.extract_strided_slice %845 {offsets = [0, 0, 0], sizes = [1, 1, 256], strides = [1, 1, 1]} : vector<1x8x256xf32> to vector<1x1x256xf32>
    %849 = vector.shape_cast %847 : vector<4x1xf32> to vector<1x4x1xf32>
    %850 = vector.broadcast %849 : vector<1x4x1xf32> to vector<1x4x256xf32>
    %851 = vector.broadcast %848 : vector<1x1x256xf32> to vector<1x4x256xf32>
    %852 = arith.mulf %850, %851 : vector<1x4x256xf32>
    %853 = arith.addf %842, %852 : vector<1x4x256xf32>
    %c7_393 = arith.constant 7 : index
    %c1_394 = arith.constant 1 : index
    %c0_395 = arith.constant 0 : index
    %c0_396 = arith.constant 0 : index
    %854 = vector.load %arg5[%c7_393, %c1_394, %c0_395, %c0_396] : memref<9x8x4x1xf32, #tpu.memory_space<vmem>>, vector<1x1x4x1xf32>
    %855 = vector.shape_cast %854 : vector<1x1x4x1xf32> to vector<4x1xf32>
    %856 = vector.extract_strided_slice %845 {offsets = [0, 1, 0], sizes = [1, 1, 256], strides = [1, 1, 1]} : vector<1x8x256xf32> to vector<1x1x256xf32>
    %857 = vector.shape_cast %855 : vector<4x1xf32> to vector<1x4x1xf32>
    %858 = vector.broadcast %857 : vector<1x4x1xf32> to vector<1x4x256xf32>
    %859 = vector.broadcast %856 : vector<1x1x256xf32> to vector<1x4x256xf32>
    %860 = arith.mulf %858, %859 : vector<1x4x256xf32>
    %861 = arith.addf %853, %860 : vector<1x4x256xf32>
    %c7_397 = arith.constant 7 : index
    %c2_398 = arith.constant 2 : index
    %c0_399 = arith.constant 0 : index
    %c0_400 = arith.constant 0 : index
    %862 = vector.load %arg5[%c7_397, %c2_398, %c0_399, %c0_400] : memref<9x8x4x1xf32, #tpu.memory_space<vmem>>, vector<1x1x4x1xf32>
    %863 = vector.shape_cast %862 : vector<1x1x4x1xf32> to vector<4x1xf32>
    %864 = vector.extract_strided_slice %845 {offsets = [0, 2, 0], sizes = [1, 1, 256], strides = [1, 1, 1]} : vector<1x8x256xf32> to vector<1x1x256xf32>
    %865 = vector.shape_cast %863 : vector<4x1xf32> to vector<1x4x1xf32>
    %866 = vector.broadcast %865 : vector<1x4x1xf32> to vector<1x4x256xf32>
    %867 = vector.broadcast %864 : vector<1x1x256xf32> to vector<1x4x256xf32>
    %868 = arith.mulf %866, %867 : vector<1x4x256xf32>
    %869 = arith.addf %861, %868 : vector<1x4x256xf32>
    %c7_401 = arith.constant 7 : index
    %c3_402 = arith.constant 3 : index
    %c0_403 = arith.constant 0 : index
    %c0_404 = arith.constant 0 : index
    %870 = vector.load %arg5[%c7_401, %c3_402, %c0_403, %c0_404] : memref<9x8x4x1xf32, #tpu.memory_space<vmem>>, vector<1x1x4x1xf32>
    %871 = vector.shape_cast %870 : vector<1x1x4x1xf32> to vector<4x1xf32>
    %872 = vector.extract_strided_slice %845 {offsets = [0, 3, 0], sizes = [1, 1, 256], strides = [1, 1, 1]} : vector<1x8x256xf32> to vector<1x1x256xf32>
    %873 = vector.shape_cast %871 : vector<4x1xf32> to vector<1x4x1xf32>
    %874 = vector.broadcast %873 : vector<1x4x1xf32> to vector<1x4x256xf32>
    %875 = vector.broadcast %872 : vector<1x1x256xf32> to vector<1x4x256xf32>
    %876 = arith.mulf %874, %875 : vector<1x4x256xf32>
    %877 = arith.addf %869, %876 : vector<1x4x256xf32>
    %c7_405 = arith.constant 7 : index
    %c4_406 = arith.constant 4 : index
    %c0_407 = arith.constant 0 : index
    %c0_408 = arith.constant 0 : index
    %878 = vector.load %arg5[%c7_405, %c4_406, %c0_407, %c0_408] : memref<9x8x4x1xf32, #tpu.memory_space<vmem>>, vector<1x1x4x1xf32>
    %879 = vector.shape_cast %878 : vector<1x1x4x1xf32> to vector<4x1xf32>
    %880 = vector.extract_strided_slice %845 {offsets = [0, 4, 0], sizes = [1, 1, 256], strides = [1, 1, 1]} : vector<1x8x256xf32> to vector<1x1x256xf32>
    %881 = vector.shape_cast %879 : vector<4x1xf32> to vector<1x4x1xf32>
    %882 = vector.broadcast %881 : vector<1x4x1xf32> to vector<1x4x256xf32>
    %883 = vector.broadcast %880 : vector<1x1x256xf32> to vector<1x4x256xf32>
    %884 = arith.mulf %882, %883 : vector<1x4x256xf32>
    %885 = arith.addf %877, %884 : vector<1x4x256xf32>
    %c7_409 = arith.constant 7 : index
    %c5_410 = arith.constant 5 : index
    %c0_411 = arith.constant 0 : index
    %c0_412 = arith.constant 0 : index
    %886 = vector.load %arg5[%c7_409, %c5_410, %c0_411, %c0_412] : memref<9x8x4x1xf32, #tpu.memory_space<vmem>>, vector<1x1x4x1xf32>
    %887 = vector.shape_cast %886 : vector<1x1x4x1xf32> to vector<4x1xf32>
    %888 = vector.extract_strided_slice %845 {offsets = [0, 5, 0], sizes = [1, 1, 256], strides = [1, 1, 1]} : vector<1x8x256xf32> to vector<1x1x256xf32>
    %889 = vector.shape_cast %887 : vector<4x1xf32> to vector<1x4x1xf32>
    %890 = vector.broadcast %889 : vector<1x4x1xf32> to vector<1x4x256xf32>
    %891 = vector.broadcast %888 : vector<1x1x256xf32> to vector<1x4x256xf32>
    %892 = arith.mulf %890, %891 : vector<1x4x256xf32>
    %893 = arith.addf %885, %892 : vector<1x4x256xf32>
    %c7_413 = arith.constant 7 : index
    %c6_414 = arith.constant 6 : index
    %c0_415 = arith.constant 0 : index
    %c0_416 = arith.constant 0 : index
    %894 = vector.load %arg5[%c7_413, %c6_414, %c0_415, %c0_416] : memref<9x8x4x1xf32, #tpu.memory_space<vmem>>, vector<1x1x4x1xf32>
    %895 = vector.shape_cast %894 : vector<1x1x4x1xf32> to vector<4x1xf32>
    %896 = vector.extract_strided_slice %845 {offsets = [0, 6, 0], sizes = [1, 1, 256], strides = [1, 1, 1]} : vector<1x8x256xf32> to vector<1x1x256xf32>
    %897 = vector.shape_cast %895 : vector<4x1xf32> to vector<1x4x1xf32>
    %898 = vector.broadcast %897 : vector<1x4x1xf32> to vector<1x4x256xf32>
    %899 = vector.broadcast %896 : vector<1x1x256xf32> to vector<1x4x256xf32>
    %900 = arith.mulf %898, %899 : vector<1x4x256xf32>
    %901 = arith.addf %893, %900 : vector<1x4x256xf32>
    %c7_417 = arith.constant 7 : index
    %c7_418 = arith.constant 7 : index
    %c0_419 = arith.constant 0 : index
    %c0_420 = arith.constant 0 : index
    %902 = vector.load %arg5[%c7_417, %c7_418, %c0_419, %c0_420] : memref<9x8x4x1xf32, #tpu.memory_space<vmem>>, vector<1x1x4x1xf32>
    %903 = vector.shape_cast %902 : vector<1x1x4x1xf32> to vector<4x1xf32>
    %904 = vector.extract_strided_slice %845 {offsets = [0, 7, 0], sizes = [1, 1, 256], strides = [1, 1, 1]} : vector<1x8x256xf32> to vector<1x1x256xf32>
    %905 = vector.shape_cast %903 : vector<4x1xf32> to vector<1x4x1xf32>
    %906 = vector.broadcast %905 : vector<1x4x1xf32> to vector<1x4x256xf32>
    %907 = vector.broadcast %904 : vector<1x1x256xf32> to vector<1x4x256xf32>
    %908 = arith.mulf %906, %907 : vector<1x4x256xf32>
    %909 = arith.addf %901, %908 : vector<1x4x256xf32>
    %cst_421 = arith.constant 0.000000e+00 : f32
    %910 = vector.broadcast %cst_421 : f32 to vector<1x8x17xf32>
    %911 = vector.extract_strided_slice %361 {offsets = [0, 0, 17], sizes = [1, 8, 239], strides = [1, 1, 1]} : vector<1x8x256xf32> to vector<1x8x239xf32>
    %912 = tpu.concatenate %911, %910 in 2 : vector<1x8x239xf32>, vector<1x8x17xf32> -> vector<1x8x256xf32>
    %913 = vector.broadcast %21 : vector<1x1x256xf32> to vector<1x8x256xf32>
    %914 = arith.mulf %912, %913 : vector<1x8x256xf32>
    %c8_422 = arith.constant 8 : index
    %c0_423 = arith.constant 0 : index
    %c0_424 = arith.constant 0 : index
    %c0_425 = arith.constant 0 : index
    %915 = vector.load %arg5[%c8_422, %c0_423, %c0_424, %c0_425] : memref<9x8x4x1xf32, #tpu.memory_space<vmem>>, vector<1x1x4x1xf32>
    %916 = vector.shape_cast %915 : vector<1x1x4x1xf32> to vector<4x1xf32>
    %917 = vector.extract_strided_slice %914 {offsets = [0, 0, 0], sizes = [1, 1, 256], strides = [1, 1, 1]} : vector<1x8x256xf32> to vector<1x1x256xf32>
    %918 = vector.shape_cast %916 : vector<4x1xf32> to vector<1x4x1xf32>
    %919 = vector.broadcast %918 : vector<1x4x1xf32> to vector<1x4x256xf32>
    %920 = vector.broadcast %917 : vector<1x1x256xf32> to vector<1x4x256xf32>
    %921 = arith.mulf %919, %920 : vector<1x4x256xf32>
    %922 = arith.addf %909, %921 : vector<1x4x256xf32>
    %c8_426 = arith.constant 8 : index
    %c1_427 = arith.constant 1 : index
    %c0_428 = arith.constant 0 : index
    %c0_429 = arith.constant 0 : index
    %923 = vector.load %arg5[%c8_426, %c1_427, %c0_428, %c0_429] : memref<9x8x4x1xf32, #tpu.memory_space<vmem>>, vector<1x1x4x1xf32>
    %924 = vector.shape_cast %923 : vector<1x1x4x1xf32> to vector<4x1xf32>
    %925 = vector.extract_strided_slice %914 {offsets = [0, 1, 0], sizes = [1, 1, 256], strides = [1, 1, 1]} : vector<1x8x256xf32> to vector<1x1x256xf32>
    %926 = vector.shape_cast %924 : vector<4x1xf32> to vector<1x4x1xf32>
    %927 = vector.broadcast %926 : vector<1x4x1xf32> to vector<1x4x256xf32>
    %928 = vector.broadcast %925 : vector<1x1x256xf32> to vector<1x4x256xf32>
    %929 = arith.mulf %927, %928 : vector<1x4x256xf32>
    %930 = arith.addf %922, %929 : vector<1x4x256xf32>
    %c8_430 = arith.constant 8 : index
    %c2_431 = arith.constant 2 : index
    %c0_432 = arith.constant 0 : index
    %c0_433 = arith.constant 0 : index
    %931 = vector.load %arg5[%c8_430, %c2_431, %c0_432, %c0_433] : memref<9x8x4x1xf32, #tpu.memory_space<vmem>>, vector<1x1x4x1xf32>
    %932 = vector.shape_cast %931 : vector<1x1x4x1xf32> to vector<4x1xf32>
    %933 = vector.extract_strided_slice %914 {offsets = [0, 2, 0], sizes = [1, 1, 256], strides = [1, 1, 1]} : vector<1x8x256xf32> to vector<1x1x256xf32>
    %934 = vector.shape_cast %932 : vector<4x1xf32> to vector<1x4x1xf32>
    %935 = vector.broadcast %934 : vector<1x4x1xf32> to vector<1x4x256xf32>
    %936 = vector.broadcast %933 : vector<1x1x256xf32> to vector<1x4x256xf32>
    %937 = arith.mulf %935, %936 : vector<1x4x256xf32>
    %938 = arith.addf %930, %937 : vector<1x4x256xf32>
    %c8_434 = arith.constant 8 : index
    %c3_435 = arith.constant 3 : index
    %c0_436 = arith.constant 0 : index
    %c0_437 = arith.constant 0 : index
    %939 = vector.load %arg5[%c8_434, %c3_435, %c0_436, %c0_437] : memref<9x8x4x1xf32, #tpu.memory_space<vmem>>, vector<1x1x4x1xf32>
    %940 = vector.shape_cast %939 : vector<1x1x4x1xf32> to vector<4x1xf32>
    %941 = vector.extract_strided_slice %914 {offsets = [0, 3, 0], sizes = [1, 1, 256], strides = [1, 1, 1]} : vector<1x8x256xf32> to vector<1x1x256xf32>
    %942 = vector.shape_cast %940 : vector<4x1xf32> to vector<1x4x1xf32>
    %943 = vector.broadcast %942 : vector<1x4x1xf32> to vector<1x4x256xf32>
    %944 = vector.broadcast %941 : vector<1x1x256xf32> to vector<1x4x256xf32>
    %945 = arith.mulf %943, %944 : vector<1x4x256xf32>
    %946 = arith.addf %938, %945 : vector<1x4x256xf32>
    %c8_438 = arith.constant 8 : index
    %c4_439 = arith.constant 4 : index
    %c0_440 = arith.constant 0 : index
    %c0_441 = arith.constant 0 : index
    %947 = vector.load %arg5[%c8_438, %c4_439, %c0_440, %c0_441] : memref<9x8x4x1xf32, #tpu.memory_space<vmem>>, vector<1x1x4x1xf32>
    %948 = vector.shape_cast %947 : vector<1x1x4x1xf32> to vector<4x1xf32>
    %949 = vector.extract_strided_slice %914 {offsets = [0, 4, 0], sizes = [1, 1, 256], strides = [1, 1, 1]} : vector<1x8x256xf32> to vector<1x1x256xf32>
    %950 = vector.shape_cast %948 : vector<4x1xf32> to vector<1x4x1xf32>
    %951 = vector.broadcast %950 : vector<1x4x1xf32> to vector<1x4x256xf32>
    %952 = vector.broadcast %949 : vector<1x1x256xf32> to vector<1x4x256xf32>
    %953 = arith.mulf %951, %952 : vector<1x4x256xf32>
    %954 = arith.addf %946, %953 : vector<1x4x256xf32>
    %c8_442 = arith.constant 8 : index
    %c5_443 = arith.constant 5 : index
    %c0_444 = arith.constant 0 : index
    %c0_445 = arith.constant 0 : index
    %955 = vector.load %arg5[%c8_442, %c5_443, %c0_444, %c0_445] : memref<9x8x4x1xf32, #tpu.memory_space<vmem>>, vector<1x1x4x1xf32>
    %956 = vector.shape_cast %955 : vector<1x1x4x1xf32> to vector<4x1xf32>
    %957 = vector.extract_strided_slice %914 {offsets = [0, 5, 0], sizes = [1, 1, 256], strides = [1, 1, 1]} : vector<1x8x256xf32> to vector<1x1x256xf32>
    %958 = vector.shape_cast %956 : vector<4x1xf32> to vector<1x4x1xf32>
    %959 = vector.broadcast %958 : vector<1x4x1xf32> to vector<1x4x256xf32>
    %960 = vector.broadcast %957 : vector<1x1x256xf32> to vector<1x4x256xf32>
    %961 = arith.mulf %959, %960 : vector<1x4x256xf32>
    %962 = arith.addf %954, %961 : vector<1x4x256xf32>
    %c8_446 = arith.constant 8 : index
    %c6_447 = arith.constant 6 : index
    %c0_448 = arith.constant 0 : index
    %c0_449 = arith.constant 0 : index
    %963 = vector.load %arg5[%c8_446, %c6_447, %c0_448, %c0_449] : memref<9x8x4x1xf32, #tpu.memory_space<vmem>>, vector<1x1x4x1xf32>
    %964 = vector.shape_cast %963 : vector<1x1x4x1xf32> to vector<4x1xf32>
    %965 = vector.extract_strided_slice %914 {offsets = [0, 6, 0], sizes = [1, 1, 256], strides = [1, 1, 1]} : vector<1x8x256xf32> to vector<1x1x256xf32>
    %966 = vector.shape_cast %964 : vector<4x1xf32> to vector<1x4x1xf32>
    %967 = vector.broadcast %966 : vector<1x4x1xf32> to vector<1x4x256xf32>
    %968 = vector.broadcast %965 : vector<1x1x256xf32> to vector<1x4x256xf32>
    %969 = arith.mulf %967, %968 : vector<1x4x256xf32>
    %970 = arith.addf %962, %969 : vector<1x4x256xf32>
    %c8_450 = arith.constant 8 : index
    %c7_451 = arith.constant 7 : index
    %c0_452 = arith.constant 0 : index
    %c0_453 = arith.constant 0 : index
    %971 = vector.load %arg5[%c8_450, %c7_451, %c0_452, %c0_453] : memref<9x8x4x1xf32, #tpu.memory_space<vmem>>, vector<1x1x4x1xf32>
    %972 = vector.shape_cast %971 : vector<1x1x4x1xf32> to vector<4x1xf32>
    %973 = vector.extract_strided_slice %914 {offsets = [0, 7, 0], sizes = [1, 1, 256], strides = [1, 1, 1]} : vector<1x8x256xf32> to vector<1x1x256xf32>
    %974 = vector.shape_cast %972 : vector<4x1xf32> to vector<1x4x1xf32>
    %975 = vector.broadcast %974 : vector<1x4x1xf32> to vector<1x4x256xf32>
    %976 = vector.broadcast %973 : vector<1x1x256xf32> to vector<1x4x256xf32>
    %977 = arith.mulf %975, %976 : vector<1x4x256xf32>
    %978 = arith.addf %970, %977 : vector<1x4x256xf32>
    %c0_454 = arith.constant 0 : index
    %979 = memref.load %arg7[%c0_454] : memref<2xf32, #tpu.memory_space<smem>>
    %980 = vector.broadcast %979 : f32 to vector<1x4x256xf32>
    %981 = arith.mulf %980, %0 : vector<1x4x256xf32>
    %c1_455 = arith.constant 1 : index
    %982 = memref.load %arg7[%c1_455] : memref<2xf32, #tpu.memory_space<smem>>
    %983 = vector.broadcast %982 : f32 to vector<1x4x256xf32>
    %984 = arith.mulf %983, %978 : vector<1x4x256xf32>
    %985 = arith.addf %981, %984 : vector<1x4x256xf32>
    %c0_456 = arith.constant 0 : index
    %c0_457 = arith.constant 0 : index
    %c0_458 = arith.constant 0 : index
    %986 = vector.load %arg8[%c0_456, %c0_457, %c0_458] : memref<1x4x256xf32, #tpu.memory_space<vmem>>, vector<1x4x256xf32>
    tpu.vector_store %arg8[%c0_456, %c0_457, %c0_458], %985 {strides = array<i32>} : memref<1x4x256xf32, #tpu.memory_space<vmem>>, vector<1x4x256xf32>,
    return
  }
  func.func @transform_0(%arg0: i32) -> (i32, i32, i32) {
    %c0_i32 = arith.constant 0 : i32
    %c0_i32_0 = arith.constant 0 : i32
    %c0_i32_1 = arith.constant 0 : i32
    return %arg0, %c0_i32, %c0_i32_0 : i32, i32, i32
  }
  func.func @transform_1(%arg0: i32) -> (i32, i32, i32, i32) {
    %c0_i32 = arith.constant 0 : i32
    %c0_i32_0 = arith.constant 0 : i32
    %c0_i32_1 = arith.constant 0 : i32
    %c0_i32_2 = arith.constant 0 : i32
    %c0_i32_3 = arith.constant 0 : i32
    return %c0_i32, %c0_i32_0, %c0_i32_1, %c0_i32_2 : i32, i32, i32, i32
  }
  func.func @transform_2(%arg0: i32) -> (i32, i32) {
    %c0_i32 = arith.constant 0 : i32
    %c0_i32_0 = arith.constant 0 : i32
    %c0_i32_1 = arith.constant 0 : i32
    return %c0_i32, %c0_i32_0 : i32, i32
  }
  func.func @transform_3(%arg0: i32) -> (i32, i32) {
    %c0_i32 = arith.constant 0 : i32
    %c0_i32_0 = arith.constant 0 : i32
    %c0_i32_1 = arith.constant 0 : i32
    return %c0_i32, %c0_i32_0 : i32, i32
  }
  func.func @transform_4(%arg0: i32) -> (i32, i32, i32, i32) {
    %c0_i32 = arith.constant 0 : i32
    %c0_i32_0 = arith.constant 0 : i32
    %c0_i32_1 = arith.constant 0 : i32
    %c0_i32_2 = arith.constant 0 : i32
    %c0_i32_3 = arith.constant 0 : i32
    return %c0_i32, %c0_i32_0, %c0_i32_1, %c0_i32_2 : i32, i32, i32, i32
  }
  func.func @transform_5(%arg0: i32) -> (i32, i32) {
    %c0_i32 = arith.constant 0 : i32
    %c0_i32_0 = arith.constant 0 : i32
    %c0_i32_1 = arith.constant 0 : i32
    return %c0_i32, %c0_i32_0 : i32, i32
  }
  func.func @transform_6(%arg0: i32) -> i32 {
    %c0_i32 = arith.constant 0 : i32
    %c0_i32_0 = arith.constant 0 : i32
    return %c0_i32 : i32
  }
  func.func @transform_7(%arg0: i32) -> (i32, i32, i32) {
    %c0_i32 = arith.constant 0 : i32
    %c0_i32_0 = arith.constant 0 : i32
    %c0_i32_1 = arith.constant 0 : i32
    return %arg0, %c0_i32, %c0_i32_0 : i32, i32, i32
  }
}

</mosaic_0001>

<llo_original>
// kernel: one_conv_forward.1
$region0: #{one_conv_forward.1}
  #allocation0 [shape = 'u32[]', space=smem, size = 0x4, offset = 0x4, fixed_abs, tag = 'smem constant byte address 0x4 - core index']
  #allocation1 [shape = 'u32[144,128]{1,0:T(1,128)}', space=vmem, size = 0x12000, scoped, tag = 'internal scratch']
  %s0 = inlined_call_operand.vmem [shape: f32[2,4,256], index: 0, kind: input, shape index: {}]
  %s1 = inlined_call_operand.vmem [shape: f32[9,4,8,1], index: 1, kind: input, shape index: {}]
  %s2 = inlined_call_operand.vmem [shape: f32[8,1], index: 2, kind: input, shape index: {}]
  %s3 = inlined_call_operand.vmem [shape: f32[8,1], index: 3, kind: input, shape index: {}]
  %s4 = inlined_call_operand.vmem [shape: f32[9,8,4,1], index: 4, kind: input, shape index: {}]
  %s5 = inlined_call_operand.vmem [shape: f32[4,1], index: 5, kind: input, shape index: {}]
  %s6 = inlined_call_operand.vmem [shape: f32[2], index: 6, kind: input, shape index: {}]
  %s7 = inlined_call_operand.vmem [shape: f32[2,4,256], index: 7, kind: output, shape index: {}]
  %s8 = sld [smem:[#allocation0]]
  $region65: #{one_conv_forward.1} parent=0
    _
  %s10 = ssub.s32 1, %s8
  %s11 = scalar_select 0, %s10, %s8
  $region1: #{one_conv_forward.1} parent=0
    #allocation2 [shape = 'u8[512]{0}', space=smem, size = 0x200, scoped, tag = 'input window, operand 6, single buffered']
    #allocation3 [shape = 's32[2]{0}', space=sflag, size = 0x8, scoped, tag = 'scoped memory for one_conv_forward.1']
    %12 = vsyncpa [#allocation3], 0
    loop: start=0, step=1, limit=4
    $region2: #{one_conv_forward.1} parent=1 // loop_pre_header
      _
    $region3: #{one_conv_forward.1} parent=1 // loop_header
      %s14 = sphi 0, %s18
      %p15 = scmp.ge.s32.totalorder %s14, 4
      %s24 = sphi 0, %s26
      %s27 = sphi 0, %s24
      %s28 = sphi 0, %s27
      %s44 = sphi 0, %s28
      %s48 = sphi 0, %s48
      %s50 = sphi 0, %s48
      %s51 = sphi 0, %s50
      %s65 = sphi 0, %s51
      %s69 = sphi 0, %s69
      %s71 = sphi 0, %s69
      %s72 = sphi 0, %s71
      %s86 = sphi 0, %s72
      %s90 = sphi 0, %s90
      %s92 = sphi 0, %s90
      %s93 = sphi 0, %s92
      %s107 = sphi 0, %s93
      %s111 = sphi 0, %s111
      %s113 = sphi 0, %s111
      %s114 = sphi 0, %s113
      %s128 = sphi 0, %s114
      %s132 = sphi 0, %s132
      %s134 = sphi 0, %s132
      %s135 = sphi 0, %s134
      %s149 = sphi 0, %s135
      %s153 = sphi 0, %s153
      %s155 = sphi 0, %s153
      %s156 = sphi 0, %s155
      %s170 = sphi 0, %s156
      %s176 = sphi 0, %s178
      %s179 = sphi 0, %s176
      %s180 = sphi 0, %s179
      %s196 = sphi 0, %s180
    $region4: #{one_conv_forward.1} parent=1 // loop_header_branch
      %17 = sbr.rel (%p15) target = $region8
    $region5: #{one_conv_forward.1} parent=1 // loop_body
      %s19 = ssub.s32 %s14, 1
      %s20 = ssub.s32 %s14, 2
      %s21 = sadd.s32 %s14, 1
      %s22 = ssub.s32 %s14, %s21
      %p23 = scmp.eq.s32.totalorder %s22, 0
      %s25 = sadd.s32 %s24, 1
      %s26 = scalar_select %p23, %s24, %s25
      %p29 = pneg %p23
      %p30 = scmp.eq.s32.totalorder %s14, 1
      %p31 = por %p29, %p30
      %p32 = scmp.ne.s32.totalorder %s24, %s27
      %p33 = scmp.eq.s32.totalorder %s14, 0
      %p34 = por %p32, %p33
      %p35 = scmp.ne.s32.totalorder %s24, %s27
      %p36 = scmp.eq.s32.totalorder %s19, 1
      %p37 = por %p35, %p36
      %p38 = scmp.ne.s32.totalorder %s27, %s28
      %p39 = scmp.eq.s32.totalorder %s19, 0
      %p40 = por %p38, %p39
      %p41 = scmp.ne.s32.totalorder %s27, %s28
      %p42 = scmp.eq.s32.totalorder %s20, 1
      %p43 = por %p41, %p42
      %p45 = scmp.ne.s32.totalorder %s28, %s44
      %p46 = scmp.eq.s32.totalorder %s20, 0
      %p47 = por %p45, %p46
      %s49 = sadd.s32 %s48, 1
      %p52 = scmp.eq.s32.totalorder %s14, 1
      %p53 = scmp.ne.s32.totalorder %s48, %s50
      %p54 = scmp.eq.s32.totalorder %s14, 0
      %p55 = por %p53, %p54
      %p56 = scmp.ne.s32.totalorder %s48, %s50
      %p57 = scmp.eq.s32.totalorder %s19, 1
      %p58 = por %p56, %p57
      %p59 = scmp.ne.s32.totalorder %s50, %s51
      %p60 = scmp.eq.s32.totalorder %s19, 0
      %p61 = por %p59, %p60
      %p62 = scmp.ne.s32.totalorder %s50, %s51
      %p63 = scmp.eq.s32.totalorder %s20, 1
      %p64 = por %p62, %p63
      %p66 = scmp.ne.s32.totalorder %s51, %s65
      %p67 = scmp.eq.s32.totalorder %s20, 0
      %p68 = por %p66, %p67
      %s70 = sadd.s32 %s69, 1
      %p73 = scmp.eq.s32.totalorder %s14, 1
      %p74 = scmp.ne.s32.totalorder %s69, %s71
      %p75 = scmp.eq.s32.totalorder %s14, 0
      %p76 = por %p74, %p75
      %p77 = scmp.ne.s32.totalorder %s69, %s71
      %p78 = scmp.eq.s32.totalorder %s19, 1
      %p79 = por %p77, %p78
      %p80 = scmp.ne.s32.totalorder %s71, %s72
      %p81 = scmp.eq.s32.totalorder %s19, 0
      %p82 = por %p80, %p81
      %p83 = scmp.ne.s32.totalorder %s71, %s72
      %p84 = scmp.eq.s32.totalorder %s20, 1
      %p85 = por %p83, %p84
      %p87 = scmp.ne.s32.totalorder %s72, %s86
      %p88 = scmp.eq.s32.totalorder %s20, 0
      %p89 = por %p87, %p88
      %s91 = sadd.s32 %s90, 1
      %p94 = scmp.eq.s32.totalorder %s14, 1
      %p95 = scmp.ne.s32.totalorder %s90, %s92
      %p96 = scmp.eq.s32.totalorder %s14, 0
      %p97 = por %p95, %p96
      %p98 = scmp.ne.s32.totalorder %s90, %s92
      %p99 = scmp.eq.s32.totalorder %s19, 1
      %p100 = por %p98, %p99
      %p101 = scmp.ne.s32.totalorder %s92, %s93
      %p102 = scmp.eq.s32.totalorder %s19, 0
      %p103 = por %p101, %p102
      %p104 = scmp.ne.s32.totalorder %s92, %s93
      %p105 = scmp.eq.s32.totalorder %s20, 1
      %p106 = por %p104, %p105
      %p108 = scmp.ne.s32.totalorder %s93, %s107
      %p109 = scmp.eq.s32.totalorder %s20, 0
      %p110 = por %p108, %p109
      %s112 = sadd.s32 %s111, 1
      %p115 = scmp.eq.s32.totalorder %s14, 1
      %p116 = scmp.ne.s32.totalorder %s111, %s113
      %p117 = scmp.eq.s32.totalorder %s14, 0
      %p118 = por %p116, %p117
      %p119 = scmp.ne.s32.totalorder %s111, %s113
      %p120 = scmp.eq.s32.totalorder %s19, 1
      %p121 = por %p119, %p120
      %p122 = scmp.ne.s32.totalorder %s113, %s114
      %p123 = scmp.eq.s32.totalorder %s19, 0
      %p124 = por %p122, %p123
      %p125 = scmp.ne.s32.totalorder %s113, %s114
      %p126 = scmp.eq.s32.totalorder %s20, 1
      %p127 = por %p125, %p126
      %p129 = scmp.ne.s32.totalorder %s114, %s128
      %p130 = scmp.eq.s32.totalorder %s20, 0
      %p131 = por %p129, %p130
      %s133 = sadd.s32 %s132, 1
      %p136 = scmp.eq.s32.totalorder %s14, 1
      %p137 = scmp.ne.s32.totalorder %s132, %s134
      %p138 = scmp.eq.s32.totalorder %s14, 0
      %p139 = por %p137, %p138
      %p140 = scmp.ne.s32.totalorder %s132, %s134
      %p141 = scmp.eq.s32.totalorder %s19, 1
      %p142 = por %p140, %p141
      %p143 = scmp.ne.s32.totalorder %s134, %s135
      %p144 = scmp.eq.s32.totalorder %s19, 0
      %p145 = por %p143, %p144
      %p146 = scmp.ne.s32.totalorder %s134, %s135
      %p147 = scmp.eq.s32.totalorder %s20, 1
      %p148 = por %p146, %p147
      %p150 = scmp.ne.s32.totalorder %s135, %s149
      %p151 = scmp.eq.s32.totalorder %s20, 0
      %p152 = por %p150, %p151
      %s154 = sadd.s32 %s153, 1
      %p157 = scmp.eq.s32.totalorder %s14, 1
      %p158 = scmp.ne.s32.totalorder %s153, %s155
      %p159 = scmp.eq.s32.totalorder %s14, 0
      %p160 = por %p158, %p159
      %p161 = scmp.ne.s32.totalorder %s153, %s155
      %p162 = scmp.eq.s32.totalorder %s19, 1
      %p163 = por %p161, %p162
      %p164 = scmp.ne.s32.totalorder %s155, %s156
      %p165 = scmp.eq.s32.totalorder %s19, 0
      %p166 = por %p164, %p165
      %p167 = scmp.ne.s32.totalorder %s155, %s156
      %p168 = scmp.eq.s32.totalorder %s20, 1
      %p169 = por %p167, %p168
      %p171 = scmp.ne.s32.totalorder %s156, %s170
      %p172 = scmp.eq.s32.totalorder %s20, 0
      %p173 = por %p171, %p172
      %s174 = ssub.s32 %s14, %s21
      %p175 = scmp.eq.s32.totalorder %s174, 0
      %s177 = sadd.s32 %s176, 1
      %s178 = scalar_select %p175, %s176, %s177
      %p181 = pneg %p175
      %p182 = scmp.eq.s32.totalorder %s14, 1
      %p183 = por %p181, %p182
      %p184 = scmp.ne.s32.totalorder %s176, %s179
      %p185 = scmp.eq.s32.totalorder %s14, 0
      %p186 = por %p184, %p185
      %p187 = scmp.ne.s32.totalorder %s176, %s179
      %p188 = scmp.eq.s32.totalorder %s19, 1
      %p189 = por %p187, %p188
      %p190 = scmp.ne.s32.totalorder %s179, %s180
      %p191 = scmp.eq.s32.totalorder %s19, 0
      %p192 = por %p190, %p191
      %p193 = scmp.ne.s32.totalorder %s179, %s180
      %p194 = scmp.eq.s32.totalorder %s20, 1
      %p195 = por %p193, %p194
      %p197 = scmp.ne.s32.totalorder %s180, %s196
      %p198 = scmp.eq.s32.totalorder %s20, 0
      %p199 = por %p197, %p198
      %p200 = scmp.le.s32.totalorder 1, %s14
      %p201 = scmp.lt.s32.totalorder %s14, 3
      %p202 = pnand %p200, %p201
      %p203 = pneg %p202
      // Predicated region
      $region9: #{one_conv_forward.1} parent=5 // pred_check
        _
      $region10: #{one_conv_forward.1} parent=5 // pred_check_branch
        %205 = sbr.rel (%p202) target = $region12
      $region11: #{one_conv_forward.1} parent=5 // pred_region
        %s206 = ssub.s32 %s14, 1
        // Predicated region
        $region13: #{one_conv_forward.1} parent=11 // pred_check
          %p207 = pneg %p61
        $region14: #{one_conv_forward.1} parent=11 // pred_check_branch
          %209 = sbr.rel (%p207) target = $region16
        $region15: #{one_conv_forward.1} parent=11 // pred_region
          _
        $region16: #{one_conv_forward.1} parent=11 // pred_fallthru
          _
        // Predicated region
        $region17: #{one_conv_forward.1} parent=11 // pred_check
          %p210 = pneg %p82
        $region18: #{one_conv_forward.1} parent=11 // pred_check_branch
          %212 = sbr.rel (%p210) target = $region20
        $region19: #{one_conv_forward.1} parent=11 // pred_region
          _
        $region20: #{one_conv_forward.1} parent=11 // pred_fallthru
          _
        // Predicated region
        $region21: #{one_conv_forward.1} parent=11 // pred_check
          %p213 = pneg %p103
        $region22: #{one_conv_forward.1} parent=11 // pred_check_branch
          %215 = sbr.rel (%p213) target = $region24
        $region23: #{one_conv_forward.1} parent=11 // pred_region
          _
        $region24: #{one_conv_forward.1} parent=11 // pred_fallthru
          _
        // Predicated region
        $region25: #{one_conv_forward.1} parent=11 // pred_check
          %p216 = pneg %p124
        $region26: #{one_conv_forward.1} parent=11 // pred_check_branch
          %218 = sbr.rel (%p216) target = $region28
        $region27: #{one_conv_forward.1} parent=11 // pred_region
          _
        $region28: #{one_conv_forward.1} parent=11 // pred_fallthru
          _
        // Predicated region
        $region29: #{one_conv_forward.1} parent=11 // pred_check
          %p219 = pneg %p145
        $region30: #{one_conv_forward.1} parent=11 // pred_check_branch
          %221 = sbr.rel (%p219) target = $region32
        $region31: #{one_conv_forward.1} parent=11 // pred_region
          _
        $region32: #{one_conv_forward.1} parent=11 // pred_fallthru
          _
        // Predicated region
        $region33: #{one_conv_forward.1} parent=11 // pred_check
          %p222 = pneg %p166
        $region34: #{one_conv_forward.1} parent=11 // pred_check_branch
          %224 = sbr.rel (%p222) target = $region36
        $region35: #{one_conv_forward.1} parent=11 // pred_region
          %s226 = ssub.s32 16, 16
          %227 = vsyncadd [#allocation3], %s226
          %s229 = sshll.u32 %s6, 4
          %s230 = int_to_ptr.vmem [resolvable:$true] %s229
          %232 = dma.vmem_to_smem %s230, 16, [#allocation2], [#allocation3]
        $region36: #{one_conv_forward.1} parent=11 // pred_fallthru
          _
      $region12: #{one_conv_forward.1} parent=5 // pred_fallthru
        _
      %p233 = scmp.lt.s32.totalorder %s14, 2
      // Predicated region
      $region37: #{one_conv_forward.1} parent=5 // pred_check
        %p234 = pneg %p233
      $region38: #{one_conv_forward.1} parent=5 // pred_check_branch
        %236 = sbr.rel (%p234) target = $region40
      $region39: #{one_conv_forward.1} parent=5 // pred_region
        // Predicated region
        $region41: #{one_conv_forward.1} parent=39 // pred_check
          %p237 = pneg %p34
        $region42: #{one_conv_forward.1} parent=39 // pred_check_branch
          %239 = sbr.rel (%p237) target = $region44
        $region43: #{one_conv_forward.1} parent=39 // pred_region
          %p240 = scmp.lt.s32.totalorder %s14, 1
          %s241 = scalar_select %p240, %s14, 1
          %s242 = smul.addr %s241, 2
          %s243 = smul.addr %s242, 4
          %s244 = scalar_lea.vmem %s0, %s243
        $region44: #{one_conv_forward.1} parent=39 // pred_fallthru
          _
      $region40: #{one_conv_forward.1} parent=5 // pred_fallthru
        _
      %p245 = scmp.le.s32.totalorder 1, %s14
      %p246 = scmp.lt.s32.totalorder %s14, 3
      %p247 = pnand %p245, %p246
      %p248 = pneg %p247
      // Predicated region
      $region45: #{one_conv_forward.1} parent=5 // pred_check
        _
      $region46: #{one_conv_forward.1} parent=5 // pred_check_branch
        %250 = sbr.rel (%p247) target = $region48
      $region47: #{one_conv_forward.1} parent=5 // pred_region
        %s251 = ssub.s32 %s14, 1
        // Predicated region
        $region49: #{one_conv_forward.1} parent=47 // pred_check
          %p252 = pneg %p166
        $region50: #{one_conv_forward.1} parent=47 // pred_check_branch
          %254 = sbr.rel (%p252) target = $region52
        $region51: #{one_conv_forward.1} parent=47 // pred_region
          %255 = dma.done [#allocation3], 16
        $region52: #{one_conv_forward.1} parent=47 // pred_fallthru
          _
        %256 = sfence
        %p257 = scmp.lt.s32.totalorder %s19, 1
        %s258 = scalar_select %p257, %s19, 1
        %s259 = smul.addr %s258, 2
        %s260 = smul.addr %s259, 4
        %s261 = scalar_lea.vmem %s0, %s260
        %p262 = pneg %p40
        %p263 = pneg %p37
        %p264 = pneg %p61
        %p265 = pneg %p58
        %p266 = pneg %p82
        %p267 = pneg %p79
        %p268 = pneg %p103
        %p269 = pneg %p100
        %p270 = pneg %p124
        %p271 = pneg %p121
        %p272 = pneg %p145
        %p273 = pneg %p142
        %p274 = pneg %p166
        %p275 = pneg %p163
        %p276 = pneg %p192
        %p277 = pneg %p189
        %p278 = scmp.lt.s32.totalorder %s19, 1
        %s279 = scalar_select %p278, %s19, 1
        %s280 = smul.addr %s279, 2
        %s281 = smul.addr %s280, 4
        %s282 = scalar_lea.vmem %s7, %s281
        %p283 = scmp.lt.s32.totalorder %s19, 1
        %s284 = scalar_select %p283, %s19, 1
        %s285 = smul.addr %s284, 2
        %s286 = smul.addr %s285, 4
        %s287 = scalar_lea.vmem %s0, %s286
        %p288 = scmp.lt.s32.totalorder %s19, 1
        %s289 = scalar_select %p288, %s19, 1
        %s290 = smul.addr %s289, 2
        %s291 = smul.addr %s290, 4
        %s292 = scalar_lea.vmem %s7, %s291
        %v293 = vld [vmem:[%s287] sm:$0xff]
        %v294 = vlaneseq
        %v295 = vand.u32 %v294, 127
        %v296 = vadd.s32 %v295, 128
        %vm297 = vcmp.lt.s32.totalorder %v295, 0
        %v298 = vsub.s32 0, %v295
        %v299 = vsel %vm297, %v298, %v295
        %v300 = vshrl.u32 %v299, 4
        %v301 = vand.u32 %v299, 15
        %v302 = vsub.s32 0, %v301
        %v303 = vsel %vm297, %v302, %v301
        %vm304 = vcmp.lt.s32.totalorder %v296, 0
        %v305 = vsub.s32 0, %v296
        %v306 = vsel %vm304, %v305, %v296
        %v307 = vshrl.u32 %v306, 4
        %v308 = vand.u32 %v306, 15
        %v309 = vsub.s32 0, %v308
        %v310 = vsel %vm304, %v309, %v308
        %vm311 = vcmp.ne.s32.totalorder %v303, 0
        %vm312 = vcmp.ne.s32.totalorder %v310, 0
        %vm313 = vcmp.lt.s32.totalorder %v303, 0
        %vm314 = vcmp.lt.s32.totalorder %v310, 0
        %vm315 = vmand %vm313, %vm311
        %vm316 = vmand %vm314, %vm312
        %v317 = vadd.s32 %v303, 16
        %v318 = vadd.s32 %v310, 16
        %v319 = vsel %vm315, %v317, %v303
        %v320 = vsel %vm316, %v318, %v310
        %vm321 = vcmp.ne.s32.totalorder %v319, 15
        %vm322 = vcmp.ne.s32.totalorder %v320, 15
        %v323 = vsel %vm321, 1, 0
        %v324 = vsel %vm322, 1, 0
        %v325 = vcvt.s32.f32 %v323
        %v326 = vcvt.s32.f32 %v324
        %vm327 = vcmp.ne.s32.totalorder %v319, 0
        %vm328 = vcmp.ne.s32.totalorder %v320, 0
        %v329 = vsel %vm327, 1, 0
        %v330 = vsel %vm328, 1, 0
        %v331 = vcvt.s32.f32 %v329
        %v332 = vcvt.s32.f32 %v330
        %v333 = vld [vmem:[%s2] sm:$0xff]
        %335 = vset.pattern.permute.xlu0 0
        %336 = vperm.xlu0 %335, %v333
        %v337 = vpop.permute.xlu0 %336
        %v339 = vadd.f32 %v337, 0.0
        %v341 = vcombine.high %v293, %v293
        %342 = vrot.lane.b32.xlu0 %v293, 17
        %v343 = vpop.permute.xlu0 %342
        %344 = vrot.lane.b32.xlu0 %v341, 17
        %v345 = vpop.permute.xlu0 %344
        %vm346 = vcmask 138240
        %v347 = vsel %vm346, %v343, %v345
        %v350 = vsel %vm346, 0.0, %v343
        %v351 = vmul.f32 %v350, %v331
        %v352 = vmul.f32 %v347, %v332
        %v353 = vld [vmem:[%s1] sm:$0xff]
        %355 = vset.pattern.permute.xlu0 0
        %356 = vperm.xlu0 %355, %v353
        %v357 = vpop.permute.xlu0 %356
        %v359 = vlaneseq
        %v360 = vshrl.u32 %v359, 7
        %v361 = vsub.s32 0, %v360
        %v362 = vrot.slane %v351, %v361
        %v363 = vlaneseq
        %v364 = vshrl.u32 %v363, 7
        %v365 = vsub.s32 0, %v364
        %v366 = vrot.slane %v352, %v365
        %v367 = vmul.f32 %v357, %v362
        %v368 = vmul.f32 %v357, %v366
        %v369 = vadd.f32 %v339, %v367
        %v370 = vadd.f32 %v339, %v368
        %s371 = scalar_lea.vmem %s1, 8
        %v372 = vld [vmem:[%s371] sm:$0xff]
        %374 = vset.pattern.permute.xlu0 0
        %375 = vperm.xlu0 %374, %v372
        %v376 = vpop.permute.xlu0 %375
        %v378 = vlaneseq
        %v379 = vshrl.u32 %v378, 7
        %v380 = vsub.s32 1, %v379
        %v381 = vrot.slane %v351, %v380
        %v382 = vlaneseq
        %v383 = vshrl.u32 %v382, 7
        %v384 = vsub.s32 1, %v383
        %v385 = vrot.slane %v352, %v384
        %v386 = vmul.f32 %v376, %v381
        %v387 = vmul.f32 %v376, %v385
        %v388 = vadd.f32 %v369, %v386
        %v389 = vadd.f32 %v370, %v387
        %s390 = scalar_lea.vmem %s1, 16
        %v391 = vld [vmem:[%s390] sm:$0xff]
        %393 = vset.pattern.permute.xlu0 0
        %394 = vperm.xlu0 %393, %v391
        %v395 = vpop.permute.xlu0 %394
        %v397 = vlaneseq
        %v398 = vshrl.u32 %v397, 7
        %v399 = vsub.s32 2, %v398
        %v400 = vrot.slane %v351, %v399
        %v401 = vlaneseq
        %v402 = vshrl.u32 %v401, 7
        %v403 = vsub.s32 2, %v402
        %v404 = vrot.slane %v352, %v403
        %v405 = vmul.f32 %v395, %v400
        %v406 = vmul.f32 %v395, %v404
        %v407 = vadd.f32 %v388, %v405
        %v408 = vadd.f32 %v389, %v406
        %s409 = scalar_lea.vmem %s1, 24
        %v410 = vld [vmem:[%s409] sm:$0xff]
        %412 = vset.pattern.permute.xlu0 0
        %413 = vperm.xlu0 %412, %v410
        %v414 = vpop.permute.xlu0 %413
        %v416 = vlaneseq
        %v417 = vshrl.u32 %v416, 7
        %v418 = vsub.s32 3, %v417
        %v419 = vrot.slane %v351, %v418
        %v420 = vlaneseq
        %v421 = vshrl.u32 %v420, 7
        %v422 = vsub.s32 3, %v421
        %v423 = vrot.slane %v352, %v422
        %v424 = vmul.f32 %v414, %v419
        %v425 = vmul.f32 %v414, %v423
        %v426 = vadd.f32 %v407, %v424
        %v427 = vadd.f32 %v408, %v425
        %428 = vrot.lane.b32.xlu0 %v293, 16
        %v429 = vpop.permute.xlu0 %428
        %430 = vrot.lane.b32.xlu0 %v341, 16
        %v431 = vpop.permute.xlu0 %430
        %vm432 = vcmask 130048
        %v433 = vsel %vm432, %v429, %v431
        %v436 = vsel %vm432, 0.0, %v429
        %s437 = scalar_lea.vmem %s1, 32
        %v438 = vld [vmem:[%s437] sm:$0xff]
        %440 = vset.pattern.permute.xlu0 0
        %441 = vperm.xlu0 %440, %v438
        %v442 = vpop.permute.xlu0 %441
        %v444 = vlaneseq
        %v445 = vshrl.u32 %v444, 7
        %v446 = vsub.s32 0, %v445
        %v447 = vrot.slane %v436, %v446
        %v448 = vlaneseq
        %v449 = vshrl.u32 %v448, 7
        %v450 = vsub.s32 0, %v449
        %v451 = vrot.slane %v433, %v450
        %v452 = vmul.f32 %v442, %v447
        %v453 = vmul.f32 %v442, %v451
        %v454 = vadd.f32 %v426, %v452
        %v455 = vadd.f32 %v427, %v453
        %s456 = scalar_lea.vmem %s1, 40
        %v457 = vld [vmem:[%s456] sm:$0xff]
        %459 = vset.pattern.permute.xlu0 0
        %460 = vperm.xlu0 %459, %v457
        %v461 = vpop.permute.xlu0 %460
        %v463 = vlaneseq
        %v464 = vshrl.u32 %v463, 7
        %v465 = vsub.s32 1, %v464
        %v466 = vrot.slane %v436, %v465
        %v467 = vlaneseq
        %v468 = vshrl.u32 %v467, 7
        %v469 = vsub.s32 1, %v468
        %v470 = vrot.slane %v433, %v469
        %v471 = vmul.f32 %v461, %v466
        %v472 = vmul.f32 %v461, %v470
        %v473 = vadd.f32 %v454, %v471
        %v474 = vadd.f32 %v455, %v472
        %s475 = scalar_lea.vmem %s1, 48
        %v476 = vld [vmem:[%s475] sm:$0xff]
        %478 = vset.pattern.permute.xlu0 0
        %479 = vperm.xlu0 %478, %v476
        %v480 = vpop.permute.xlu0 %479
        %v482 = vlaneseq
        %v483 = vshrl.u32 %v482, 7
        %v484 = vsub.s32 2, %v483
        %v485 = vrot.slane %v436, %v484
        %v486 = vlaneseq
        %v487 = vshrl.u32 %v486, 7
        %v488 = vsub.s32 2, %v487
        %v489 = vrot.slane %v433, %v488
        %v490 = vmul.f32 %v480, %v485
        %v491 = vmul.f32 %v480, %v489
        %v492 = vadd.f32 %v473, %v490
        %v493 = vadd.f32 %v474, %v491
        %s494 = scalar_lea.vmem %s1, 56
        %v495 = vld [vmem:[%s494] sm:$0xff]
        %497 = vset.pattern.permute.xlu0 0
        %498 = vperm.xlu0 %497, %v495
        %v499 = vpop.permute.xlu0 %498
        %v501 = vlaneseq
        %v502 = vshrl.u32 %v501, 7
        %v503 = vsub.s32 3, %v502
        %v504 = vrot.slane %v436, %v503
        %v505 = vlaneseq
        %v506 = vshrl.u32 %v505, 7
        %v507 = vsub.s32 3, %v506
        %v508 = vrot.slane %v433, %v507
        %v509 = vmul.f32 %v499, %v504
        %v510 = vmul.f32 %v499, %v508
        %v511 = vadd.f32 %v492, %v509
        %v512 = vadd.f32 %v493, %v510
        %513 = vrot.lane.b32.xlu0 %v293, 15
        %v514 = vpop.permute.xlu0 %513
        %515 = vrot.lane.b32.xlu0 %v341, 15
        %v516 = vpop.permute.xlu0 %515
        %vm517 = vcmask 121856
        %v518 = vsel %vm517, %v514, %v516
        %v521 = vsel %vm517, 0.0, %v514
        %v522 = vmul.f32 %v521, %v325
        %v523 = vmul.f32 %v518, %v326
        %s524 = scalar_lea.vmem %s1, 64
        %v525 = vld [vmem:[%s524] sm:$0xff]
        %527 = vset.pattern.permute.xlu0 0
        %528 = vperm.xlu0 %527, %v525
        %v529 = vpop.permute.xlu0 %528
        %v531 = vlaneseq
        %v532 = vshrl.u32 %v531, 7
        %v533 = vsub.s32 0, %v532
        %v534 = vrot.slane %v522, %v533
        %v535 = vlaneseq
        %v536 = vshrl.u32 %v535, 7
        %v537 = vsub.s32 0, %v536
        %v538 = vrot.slane %v523, %v537
        %v539 = vmul.f32 %v529, %v534
        %v540 = vmul.f32 %v529, %v538
        %v541 = vadd.f32 %v511, %v539
        %v542 = vadd.f32 %v512, %v540
        %s543 = scalar_lea.vmem %s1, 72
        %v544 = vld [vmem:[%s543] sm:$0xff]
        %546 = vset.pattern.permute.xlu0 0
        %547 = vperm.xlu0 %546, %v544
        %v548 = vpop.permute.xlu0 %547
        %v550 = vlaneseq
        %v551 = vshrl.u32 %v550, 7
        %v552 = vsub.s32 1, %v551
        %v553 = vrot.slane %v522, %v552
        %v554 = vlaneseq
        %v555 = vshrl.u32 %v554, 7
        %v556 = vsub.s32 1, %v555
        %v557 = vrot.slane %v523, %v556
        %v558 = vmul.f32 %v548, %v553
        %v559 = vmul.f32 %v548, %v557
        %v560 = vadd.f32 %v541, %v558
        %v561 = vadd.f32 %v542, %v559
        %s562 = scalar_lea.vmem %s1, 80
        %v563 = vld [vmem:[%s562] sm:$0xff]
        %565 = vset.pattern.permute.xlu0 0
        %566 = vperm.xlu0 %565, %v563
        %v567 = vpop.permute.xlu0 %566
        %v569 = vlaneseq
        %v570 = vshrl.u32 %v569, 7
        %v571 = vsub.s32 2, %v570
        %v572 = vrot.slane %v522, %v571
        %v573 = vlaneseq
        %v574 = vshrl.u32 %v573, 7
        %v575 = vsub.s32 2, %v574
        %v576 = vrot.slane %v523, %v575
        %v577 = vmul.f32 %v567, %v572
        %v578 = vmul.f32 %v567, %v576
        %v579 = vadd.f32 %v560, %v577
        %v580 = vadd.f32 %v561, %v578
        %s581 = scalar_lea.vmem %s1, 88
        %v582 = vld [vmem:[%s581] sm:$0xff]
        %584 = vset.pattern.permute.xlu0 0
        %585 = vperm.xlu0 %584, %v582
        %v586 = vpop.permute.xlu0 %585
        %v588 = vlaneseq
        %v589 = vshrl.u32 %v588, 7
        %v590 = vsub.s32 3, %v589
        %v591 = vrot.slane %v522, %v590
        %v592 = vlaneseq
        %v593 = vshrl.u32 %v592, 7
        %v594 = vsub.s32 3, %v593
        %v595 = vrot.slane %v523, %v594
        %v596 = vmul.f32 %v586, %v591
        %v597 = vmul.f32 %v586, %v595
        %v598 = vadd.f32 %v579, %v596
        %v599 = vadd.f32 %v580, %v597
        %600 = vrot.lane.b32.xlu0 %v293, 1
        %v601 = vpop.permute.xlu0 %600
        %602 = vrot.lane.b32.xlu0 %v341, 1
        %v603 = vpop.permute.xlu0 %602
        %vm604 = vcmask 7168
        %v605 = vsel %vm604, %v601, %v603
        %v608 = vsel %vm604, 0.0, %v601
        %v609 = vmul.f32 %v608, %v331
        %v610 = vmul.f32 %v605, %v332
        %s611 = scalar_lea.vmem %s1, 96
        %v612 = vld [vmem:[%s611] sm:$0xff]
        %614 = vset.pattern.permute.xlu0 0
        %615 = vperm.xlu0 %614, %v612
        %v616 = vpop.permute.xlu0 %615
        %v618 = vlaneseq
        %v619 = vshrl.u32 %v618, 7
        %v620 = vsub.s32 0, %v619
        %v621 = vrot.slane %v609, %v620
        %v622 = vlaneseq
        %v623 = vshrl.u32 %v622, 7
        %v624 = vsub.s32 0, %v623
        %v625 = vrot.slane %v610, %v624
        %v626 = vmul.f32 %v616, %v621
        %v627 = vmul.f32 %v616, %v625
        %v628 = vadd.f32 %v598, %v626
        %v629 = vadd.f32 %v599, %v627
        %s630 = scalar_lea.vmem %s1, 104
        %v631 = vld [vmem:[%s630] sm:$0xff]
        %633 = vset.pattern.permute.xlu0 0
        %634 = vperm.xlu0 %633, %v631
        %v635 = vpop.permute.xlu0 %634
        %v637 = vlaneseq
        %v638 = vshrl.u32 %v637, 7
        %v639 = vsub.s32 1, %v638
        %v640 = vrot.slane %v609, %v639
        %v641 = vlaneseq
        %v642 = vshrl.u32 %v641, 7
        %v643 = vsub.s32 1, %v642
        %v644 = vrot.slane %v610, %v643
        %v645 = vmul.f32 %v635, %v640
        %v646 = vmul.f32 %v635, %v644
        %v647 = vadd.f32 %v628, %v645
        %v648 = vadd.f32 %v629, %v646
        %s649 = scalar_lea.vmem %s1, 112
        %v650 = vld [vmem:[%s649] sm:$0xff]
        %652 = vset.pattern.permute.xlu0 0
        %653 = vperm.xlu0 %652, %v650
        %v654 = vpop.permute.xlu0 %653
        %v656 = vlaneseq
        %v657 = vshrl.u32 %v656, 7
        %v658 = vsub.s32 2, %v657
        %v659 = vrot.slane %v609, %v658
        %v660 = vlaneseq
        %v661 = vshrl.u32 %v660, 7
        %v662 = vsub.s32 2, %v661
        %v663 = vrot.slane %v610, %v662
        %v664 = vmul.f32 %v654, %v659
        %v665 = vmul.f32 %v654, %v663
        %v666 = vadd.f32 %v647, %v664
        %v667 = vadd.f32 %v648, %v665
        %s668 = scalar_lea.vmem %s1, 120
        %v669 = vld [vmem:[%s668] sm:$0xff]
        %671 = vset.pattern.permute.xlu0 0
        %672 = vperm.xlu0 %671, %v669
        %v673 = vpop.permute.xlu0 %672
        %v675 = vlaneseq
        %v676 = vshrl.u32 %v675, 7
        %v677 = vsub.s32 3, %v676
        %v678 = vrot.slane %v609, %v677
        %v679 = vlaneseq
        %v680 = vshrl.u32 %v679, 7
        %v681 = vsub.s32 3, %v680
        %v682 = vrot.slane %v610, %v681
        %v683 = vmul.f32 %v673, %v678
        %v684 = vmul.f32 %v673, %v682
        %v685 = vadd.f32 %v666, %v683
        %v686 = vadd.f32 %v667, %v684
        %s687 = scalar_lea.vmem %s1, 128
        %v688 = vld [vmem:[%s687] sm:$0xff]
        %690 = vset.pattern.permute.xlu0 0
        %691 = vperm.xlu0 %690, %v688
        %v692 = vpop.permute.xlu0 %691
        %v694 = vlaneseq
        %v695 = vshrl.u32 %v694, 7
        %v696 = vsub.s32 0, %v695
        %v697 = vrot.slane %v293, %v696
        %v698 = vlaneseq
        %v699 = vshrl.u32 %v698, 7
        %v700 = vsub.s32 4, %v699
        %v701 = vrot.slane %v293, %v700
        %v704 = vlaneseq
        %v705 = vshrl.u32 %v704, 7
        %v706 = vsub.s32 0, %v705
        %v707 = vrot.slane %v697, %v706
        %v708 = vlaneseq
        %v709 = vshrl.u32 %v708, 7
        %v710 = vsub.s32 0, %v709
        %v711 = vrot.slane %v701, %v710
        %v712 = vmul.f32 %v692, %v707
        %v713 = vmul.f32 %v692, %v711
        %v714 = vadd.f32 %v685, %v712
        %v715 = vadd.f32 %v686, %v713
        %s716 = scalar_lea.vmem %s1, 136
        %v717 = vld [vmem:[%s716] sm:$0xff]
        %719 = vset.pattern.permute.xlu0 0
        %720 = vperm.xlu0 %719, %v717
        %v721 = vpop.permute.xlu0 %720
        %v723 = vlaneseq
        %v724 = vshrl.u32 %v723, 7
        %v725 = vsub.s32 1, %v724
        %v726 = vrot.slane %v293, %v725
        %v727 = vlaneseq
        %v728 = vshrl.u32 %v727, 7
        %v729 = vsub.s32 5, %v728
        %v730 = vrot.slane %v293, %v729
        %v733 = vlaneseq
        %v734 = vshrl.u32 %v733, 7
        %v735 = vsub.s32 1, %v734
        %v736 = vrot.slane %v726, %v735
        %v737 = vlaneseq
        %v738 = vshrl.u32 %v737, 7
        %v739 = vsub.s32 1, %v738
        %v740 = vrot.slane %v730, %v739
        %v741 = vmul.f32 %v721, %v736
        %v742 = vmul.f32 %v721, %v740
        %v743 = vadd.f32 %v714, %v741
        %v744 = vadd.f32 %v715, %v742
        %s745 = scalar_lea.vmem %s1, 144
        %v746 = vld [vmem:[%s745] sm:$0xff]
        %748 = vset.pattern.permute.xlu0 0
        %749 = vperm.xlu0 %748, %v746
        %v750 = vpop.permute.xlu0 %749
        %v752 = vlaneseq
        %v753 = vshrl.u32 %v752, 7
        %v754 = vsub.s32 2, %v753
        %v755 = vrot.slane %v293, %v754
        %v756 = vlaneseq
        %v757 = vshrl.u32 %v756, 7
        %v758 = vsub.s32 6, %v757
        %v759 = vrot.slane %v293, %v758
        %v762 = vlaneseq
        %v763 = vshrl.u32 %v762, 7
        %v764 = vsub.s32 2, %v763
        %v765 = vrot.slane %v755, %v764
        %v766 = vlaneseq
        %v767 = vshrl.u32 %v766, 7
        %v768 = vsub.s32 2, %v767
        %v769 = vrot.slane %v759, %v768
        %v770 = vmul.f32 %v750, %v765
        %v771 = vmul.f32 %v750, %v769
        %v772 = vadd.f32 %v743, %v770
        %v773 = vadd.f32 %v744, %v771
        %s774 = scalar_lea.vmem %s1, 152
        %v775 = vld [vmem:[%s774] sm:$0xff]
        %777 = vset.pattern.permute.xlu0 0
        %778 = vperm.xlu0 %777, %v775
        %v779 = vpop.permute.xlu0 %778
        %v781 = vlaneseq
        %v782 = vshrl.u32 %v781, 7
        %v783 = vsub.s32 3, %v782
        %v784 = vrot.slane %v293, %v783
        %v785 = vlaneseq
        %v786 = vshrl.u32 %v785, 7
        %v787 = vsub.s32 7, %v786
        %v788 = vrot.slane %v293, %v787
        %v791 = vlaneseq
        %v792 = vshrl.u32 %v791, 7
        %v793 = vsub.s32 3, %v792
        %v794 = vrot.slane %v784, %v793
        %v795 = vlaneseq
        %v796 = vshrl.u32 %v795, 7
        %v797 = vsub.s32 3, %v796
        %v798 = vrot.slane %v788, %v797
        %v799 = vmul.f32 %v779, %v794
        %v800 = vmul.f32 %v779, %v798
        %v801 = vadd.f32 %v772, %v799
        %v802 = vadd.f32 %v773, %v800
        %803 = vrot.lane.b32.xlu0 %v293, 127
        %v804 = vpop.permute.xlu0 %803
        %805 = vrot.lane.b32.xlu0 %v341, 127
        %v806 = vpop.permute.xlu0 %805
        %vm807 = vcmask 1039360
        %v808 = vsel %vm807, %v804, %v806
        %v811 = vsel %vm807, %v806, 0.0
        %v812 = vmul.f32 %v808, %v325
        %v813 = vmul.f32 %v811, %v326
        %s814 = scalar_lea.vmem %s1, 160
        %v815 = vld [vmem:[%s814] sm:$0xff]
        %817 = vset.pattern.permute.xlu0 0
        %818 = vperm.xlu0 %817, %v815
        %v819 = vpop.permute.xlu0 %818
        %v821 = vlaneseq
        %v822 = vshrl.u32 %v821, 7
        %v823 = vsub.s32 0, %v822
        %v824 = vrot.slane %v812, %v823
        %v825 = vlaneseq
        %v826 = vshrl.u32 %v825, 7
        %v827 = vsub.s32 0, %v826
        %v828 = vrot.slane %v813, %v827
        %v829 = vmul.f32 %v819, %v824
        %v830 = vmul.f32 %v819, %v828
        %v831 = vadd.f32 %v801, %v829
        %v832 = vadd.f32 %v802, %v830
        %s833 = scalar_lea.vmem %s1, 168
        %v834 = vld [vmem:[%s833] sm:$0xff]
        %836 = vset.pattern.permute.xlu0 0
        %837 = vperm.xlu0 %836, %v834
        %v838 = vpop.permute.xlu0 %837
        %v840 = vlaneseq
        %v841 = vshrl.u32 %v840, 7
        %v842 = vsub.s32 1, %v841
        %v843 = vrot.slane %v812, %v842
        %v844 = vlaneseq
        %v845 = vshrl.u32 %v844, 7
        %v846 = vsub.s32 1, %v845
        %v847 = vrot.slane %v813, %v846
        %v848 = vmul.f32 %v838, %v843
        %v849 = vmul.f32 %v838, %v847
        %v850 = vadd.f32 %v831, %v848
        %v851 = vadd.f32 %v832, %v849
        %s852 = scalar_lea.vmem %s1, 176
        %v853 = vld [vmem:[%s852] sm:$0xff]
        %855 = vset.pattern.permute.xlu0 0
        %856 = vperm.xlu0 %855, %v853
        %v857 = vpop.permute.xlu0 %856
        %v859 = vlaneseq
        %v860 = vshrl.u32 %v859, 7
        %v861 = vsub.s32 2, %v860
        %v862 = vrot.slane %v812, %v861
        %v863 = vlaneseq
        %v864 = vshrl.u32 %v863, 7
        %v865 = vsub.s32 2, %v864
        %v866 = vrot.slane %v813, %v865
        %v867 = vmul.f32 %v857, %v862
        %v868 = vmul.f32 %v857, %v866
        %v869 = vadd.f32 %v850, %v867
        %v870 = vadd.f32 %v851, %v868
        %s871 = scalar_lea.vmem %s1, 184
        %v872 = vld [vmem:[%s871] sm:$0xff]
        %874 = vset.pattern.permute.xlu0 0
        %875 = vperm.xlu0 %874, %v872
        %v876 = vpop.permute.xlu0 %875
        %v878 = vlaneseq
        %v879 = vshrl.u32 %v878, 7
        %v880 = vsub.s32 3, %v879
        %v881 = vrot.slane %v812, %v880
        %v882 = vlaneseq
        %v883 = vshrl.u32 %v882, 7
        %v884 = vsub.s32 3, %v883
        %v885 = vrot.slane %v813, %v884
        %v886 = vmul.f32 %v876, %v881
        %v887 = vmul.f32 %v876, %v885
        %v888 = vadd.f32 %v869, %v886
        %v889 = vadd.f32 %v870, %v887
        %890 = vrot.lane.b32.xlu0 %v293, 113
        %v891 = vpop.permute.xlu0 %890
        %892 = vrot.lane.b32.xlu0 %v341, 113
        %v893 = vpop.permute.xlu0 %892
        %vm894 = vcmask 924672
        %v895 = vsel %vm894, %v891, %v893
        %v898 = vsel %vm894, %v893, 0.0
        %v899 = vmul.f32 %v895, %v331
        %v900 = vmul.f32 %v898, %v332
        %s901 = scalar_lea.vmem %s1, 192
        %v902 = vld [vmem:[%s901] sm:$0xff]
        %904 = vset.pattern.permute.xlu0 0
        %905 = vperm.xlu0 %904, %v902
        %v906 = vpop.permute.xlu0 %905
        %v908 = vlaneseq
        %v909 = vshrl.u32 %v908, 7
        %v910 = vsub.s32 0, %v909
        %v911 = vrot.slane %v899, %v910
        %v912 = vlaneseq
        %v913 = vshrl.u32 %v912, 7
        %v914 = vsub.s32 0, %v913
        %v915 = vrot.slane %v900, %v914
        %v916 = vmul.f32 %v906, %v911
        %v917 = vmul.f32 %v906, %v915
        %v918 = vadd.f32 %v888, %v916
        %v919 = vadd.f32 %v889, %v917
        %s920 = scalar_lea.vmem %s1, 200
        %v921 = vld [vmem:[%s920] sm:$0xff]
        %923 = vset.pattern.permute.xlu0 0
        %924 = vperm.xlu0 %923, %v921
        %v925 = vpop.permute.xlu0 %924
        %v927 = vlaneseq
        %v928 = vshrl.u32 %v927, 7
        %v929 = vsub.s32 1, %v928
        %v930 = vrot.slane %v899, %v929
        %v931 = vlaneseq
        %v932 = vshrl.u32 %v931, 7
        %v933 = vsub.s32 1, %v932
        %v934 = vrot.slane %v900, %v933
        %v935 = vmul.f32 %v925, %v930
        %v936 = vmul.f32 %v925, %v934
        %v937 = vadd.f32 %v918, %v935
        %v938 = vadd.f32 %v919, %v936
        %s939 = scalar_lea.vmem %s1, 208
        %v940 = vld [vmem:[%s939] sm:$0xff]
        %942 = vset.pattern.permute.xlu0 0
        %943 = vperm.xlu0 %942, %v940
        %v944 = vpop.permute.xlu0 %943
        %v946 = vlaneseq
        %v947 = vshrl.u32 %v946, 7
        %v948 = vsub.s32 2, %v947
        %v949 = vrot.slane %v899, %v948
        %v950 = vlaneseq
        %v951 = vshrl.u32 %v950, 7
        %v952 = vsub.s32 2, %v951
        %v953 = vrot.slane %v900, %v952
        %v954 = vmul.f32 %v944, %v949
        %v955 = vmul.f32 %v944, %v953
        %v956 = vadd.f32 %v937, %v954
        %v957 = vadd.f32 %v938, %v955
        %s958 = scalar_lea.vmem %s1, 216
        %v959 = vld [vmem:[%s958] sm:$0xff]
        %961 = vset.pattern.permute.xlu0 0
        %962 = vperm.xlu0 %961, %v959
        %v963 = vpop.permute.xlu0 %962
        %v965 = vlaneseq
        %v966 = vshrl.u32 %v965, 7
        %v967 = vsub.s32 3, %v966
        %v968 = vrot.slane %v899, %v967
        %v969 = vlaneseq
        %v970 = vshrl.u32 %v969, 7
        %v971 = vsub.s32 3, %v970
        %v972 = vrot.slane %v900, %v971
        %v973 = vmul.f32 %v963, %v968
        %v974 = vmul.f32 %v963, %v972
        %v975 = vadd.f32 %v956, %v973
        %v976 = vadd.f32 %v957, %v974
        %977 = vrot.lane.b32.xlu0 %v293, 112
        %v978 = vpop.permute.xlu0 %977
        %979 = vrot.lane.b32.xlu0 %v341, 112
        %v980 = vpop.permute.xlu0 %979
        %vm981 = vcmask 916480
        %v982 = vsel %vm981, %v978, %v980
        %v985 = vsel %vm981, %v980, 0.0
        %s986 = scalar_lea.vmem %s1, 224
        %v987 = vld [vmem:[%s986] sm:$0xff]
        %989 = vset.pattern.permute.xlu0 0
        %990 = vperm.xlu0 %989, %v987
        %v991 = vpop.permute.xlu0 %990
        %v993 = vlaneseq
        %v994 = vshrl.u32 %v993, 7
        %v995 = vsub.s32 0, %v994
        %v996 = vrot.slane %v982, %v995
        %v997 = vlaneseq
        %v998 = vshrl.u32 %v997, 7
        %v999 = vsub.s32 0, %v998
        %v1000 = vrot.slane %v985, %v999
        %v1001 = vmul.f32 %v991, %v996
        %v1002 = vmul.f32 %v991, %v1000
        %v1003 = vadd.f32 %v975, %v1001
        %v1004 = vadd.f32 %v976, %v1002
        %s1005 = scalar_lea.vmem %s1, 232
        %v1006 = vld [vmem:[%s1005] sm:$0xff]
        %1008 = vset.pattern.permute.xlu0 0
        %1009 = vperm.xlu0 %1008, %v1006
        %v1010 = vpop.permute.xlu0 %1009
        %v1012 = vlaneseq
        %v1013 = vshrl.u32 %v1012, 7
        %v1014 = vsub.s32 1, %v1013
        %v1015 = vrot.slane %v982, %v1014
        %v1016 = vlaneseq
        %v1017 = vshrl.u32 %v1016, 7
        %v1018 = vsub.s32 1, %v1017
        %v1019 = vrot.slane %v985, %v1018
        %v1020 = vmul.f32 %v1010, %v1015
        %v1021 = vmul.f32 %v1010, %v1019
        %v1022 = vadd.f32 %v1003, %v1020
        %v1023 = vadd.f32 %v1004, %v1021
        %s1024 = scalar_lea.vmem %s1, 240
        %v1025 = vld [vmem:[%s1024] sm:$0xff]
        %1027 = vset.pattern.permute.xlu0 0
        %1028 = vperm.xlu0 %1027, %v1025
        %v1029 = vpop.permute.xlu0 %1028
        %v1031 = vlaneseq
        %v1032 = vshrl.u32 %v1031, 7
        %v1033 = vsub.s32 2, %v1032
        %v1034 = vrot.slane %v982, %v1033
        %v1035 = vlaneseq
        %v1036 = vshrl.u32 %v1035, 7
        %v1037 = vsub.s32 2, %v1036
        %v1038 = vrot.slane %v985, %v1037
        %v1039 = vmul.f32 %v1029, %v1034
        %v1040 = vmul.f32 %v1029, %v1038
        %v1041 = vadd.f32 %v1022, %v1039
        %v1042 = vadd.f32 %v1023, %v1040
        %s1043 = scalar_lea.vmem %s1, 248
        %v1044 = vld [vmem:[%s1043] sm:$0xff]
        %1046 = vset.pattern.permute.xlu0 0
        %1047 = vperm.xlu0 %1046, %v1044
        %v1048 = vpop.permute.xlu0 %1047
        %v1050 = vlaneseq
        %v1051 = vshrl.u32 %v1050, 7
        %v1052 = vsub.s32 3, %v1051
        %v1053 = vrot.slane %v982, %v1052
        %v1054 = vlaneseq
        %v1055 = vshrl.u32 %v1054, 7
        %v1056 = vsub.s32 3, %v1055
        %v1057 = vrot.slane %v985, %v1056
        %v1058 = vmul.f32 %v1048, %v1053
        %v1059 = vmul.f32 %v1048, %v1057
        %v1060 = vadd.f32 %v1041, %v1058
        %v1061 = vadd.f32 %v1042, %v1059
        %1062 = vrot.lane.b32.xlu0 %v293, 111
        %v1063 = vpop.permute.xlu0 %1062
        %1064 = vrot.lane.b32.xlu0 %v341, 111
        %v1065 = vpop.permute.xlu0 %1064
        %vm1066 = vcmask 908288
        %v1067 = vsel %vm1066, %v1063, %v1065
        %v1070 = vsel %vm1066, %v1065, 0.0
        %v1071 = vmul.f32 %v1067, %v325
        %v1072 = vmul.f32 %v1070, %v326
        %s1073 = scalar_lea.vmem %s1, 256
        %v1074 = vld [vmem:[%s1073] sm:$0xff]
        %1076 = vset.pattern.permute.xlu0 0
        %1077 = vperm.xlu0 %1076, %v1074
        %v1078 = vpop.permute.xlu0 %1077
        %v1080 = vlaneseq
        %v1081 = vshrl.u32 %v1080, 7
        %v1082 = vsub.s32 0, %v1081
        %v1083 = vrot.slane %v1071, %v1082
        %v1084 = vlaneseq
        %v1085 = vshrl.u32 %v1084, 7
        %v1086 = vsub.s32 0, %v1085
        %v1087 = vrot.slane %v1072, %v1086
        %v1088 = vmul.f32 %v1078, %v1083
        %v1089 = vmul.f32 %v1078, %v1087
        %v1090 = vadd.f32 %v1060, %v1088
        %v1091 = vadd.f32 %v1061, %v1089
        %s1092 = scalar_lea.vmem %s1, 264
        %v1093 = vld [vmem:[%s1092] sm:$0xff]
        %1095 = vset.pattern.permute.xlu0 0
        %1096 = vperm.xlu0 %1095, %v1093
        %v1097 = vpop.permute.xlu0 %1096
        %v1099 = vlaneseq
        %v1100 = vshrl.u32 %v1099, 7
        %v1101 = vsub.s32 1, %v1100
        %v1102 = vrot.slane %v1071, %v1101
        %v1103 = vlaneseq
        %v1104 = vshrl.u32 %v1103, 7
        %v1105 = vsub.s32 1, %v1104
        %v1106 = vrot.slane %v1072, %v1105
        %v1107 = vmul.f32 %v1097, %v1102
        %v1108 = vmul.f32 %v1097, %v1106
        %v1109 = vadd.f32 %v1090, %v1107
        %v1110 = vadd.f32 %v1091, %v1108
        %s1111 = scalar_lea.vmem %s1, 272
        %v1112 = vld [vmem:[%s1111] sm:$0xff]
        %1114 = vset.pattern.permute.xlu0 0
        %1115 = vperm.xlu0 %1114, %v1112
        %v1116 = vpop.permute.xlu0 %1115
        %v1118 = vlaneseq
        %v1119 = vshrl.u32 %v1118, 7
        %v1120 = vsub.s32 2, %v1119
        %v1121 = vrot.slane %v1071, %v1120
        %v1122 = vlaneseq
        %v1123 = vshrl.u32 %v1122, 7
        %v1124 = vsub.s32 2, %v1123
        %v1125 = vrot.slane %v1072, %v1124
        %v1126 = vmul.f32 %v1116, %v1121
        %v1127 = vmul.f32 %v1116, %v1125
        %v1128 = vadd.f32 %v1109, %v1126
        %v1129 = vadd.f32 %v1110, %v1127
        %s1130 = scalar_lea.vmem %s1, 280
        %v1131 = vld [vmem:[%s1130] sm:$0xff]
        %1133 = vset.pattern.permute.xlu0 0
        %1134 = vperm.xlu0 %1133, %v1131
        %v1135 = vpop.permute.xlu0 %1134
        %v1137 = vlaneseq
        %v1138 = vshrl.u32 %v1137, 7
        %v1139 = vsub.s32 3, %v1138
        %v1140 = vrot.slane %v1071, %v1139
        %v1141 = vlaneseq
        %v1142 = vshrl.u32 %v1141, 7
        %v1143 = vsub.s32 3, %v1142
        %v1144 = vrot.slane %v1072, %v1143
        %v1145 = vmul.f32 %v1135, %v1140
        %v1146 = vmul.f32 %v1135, %v1144
        %v1147 = vadd.f32 %v1128, %v1145
        %v1148 = vadd.f32 %v1129, %v1146
        %v1149 = vld [vmem:[%s3] sm:$0xff]
        %vm1150 = vcmp.gt.f32.partialorder %v1147, 0.0
        %vm1151 = vcmp.gt.f32.partialorder %v1148, 0.0
        %1153 = vset.pattern.permute.xlu0 0
        %1154 = vperm.xlu0 %1153, %v1149
        %v1155 = vpop.permute.xlu0 %1154
        %v1157 = vmul.f32 %v1155, %v1147
        %v1158 = vmul.f32 %v1155, %v1148
        %v1159 = vsel %vm1150, %v1147, %v1157
        %v1160 = vsel %vm1151, %v1148, %v1158
        %v1161 = vld [vmem:[%s5] sm:$0xf]
        %1163 = vset.pattern.permute.xlu0 0
        %1164 = vperm.xlu0 %1163, %v1161
        %v1165 = vpop.permute.xlu0 %1164
        %v1167 = vadd.f32 %v1165, 0.0
        %1170 = vrot.lane.b32.xlu0 %v1159, 17
        %v1171 = vpop.permute.xlu0 %1170
        %1172 = vrot.lane.b32.xlu0 %v1160, 17
        %v1173 = vpop.permute.xlu0 %1172
        %v1174 = vsel %vm346, %v1171, %v1173
        %v1177 = vsel %vm346, 0.0, %v1171
        %v1178 = vmul.f32 %v1177, %v331
        %v1179 = vmul.f32 %v1174, %v332
        %v1180 = vld [vmem:[%s4] sm:$0xf]
        %1182 = vset.pattern.permute.xlu0 0
        %1183 = vperm.xlu0 %1182, %v1180
        %v1184 = vpop.permute.xlu0 %1183
        %v1186 = vlaneseq
        %v1187 = vshrl.u32 %v1186, 7
        %v1188 = vsub.s32 0, %v1187
        %v1189 = vrot.slane %v1178, %v1188
        %v1190 = vlaneseq
        %v1191 = vshrl.u32 %v1190, 7
        %v1192 = vsub.s32 0, %v1191
        %v1193 = vrot.slane %v1179, %v1192
        %v1194 = vmul.f32 %v1184, %v1189
        %v1195 = vmul.f32 %v1184, %v1193
        %v1196 = vadd.f32 %v1167, %v1194
        %v1197 = vadd.f32 %v1167, %v1195
        %s1198 = scalar_lea.vmem %s4, 4
        %v1199 = vld [vmem:[%s1198] sm:$0xf]
        %1201 = vset.pattern.permute.xlu0 0
        %1202 = vperm.xlu0 %1201, %v1199
        %v1203 = vpop.permute.xlu0 %1202
        %v1205 = vlaneseq
        %v1206 = vshrl.u32 %v1205, 7
        %v1207 = vsub.s32 1, %v1206
        %v1208 = vrot.slane %v1178, %v1207
        %v1209 = vlaneseq
        %v1210 = vshrl.u32 %v1209, 7
        %v1211 = vsub.s32 1, %v1210
        %v1212 = vrot.slane %v1179, %v1211
        %v1213 = vmul.f32 %v1203, %v1208
        %v1214 = vmul.f32 %v1203, %v1212
        %v1215 = vadd.f32 %v1196, %v1213
        %v1216 = vadd.f32 %v1197, %v1214
        %s1217 = scalar_lea.vmem %s4, 8
        %v1218 = vld [vmem:[%s1217] sm:$0xf]
        %1220 = vset.pattern.permute.xlu0 0
        %1221 = vperm.xlu0 %1220, %v1218
        %v1222 = vpop.permute.xlu0 %1221
        %v1224 = vlaneseq
        %v1225 = vshrl.u32 %v1224, 7
        %v1226 = vsub.s32 2, %v1225
        %v1227 = vrot.slane %v1178, %v1226
        %v1228 = vlaneseq
        %v1229 = vshrl.u32 %v1228, 7
        %v1230 = vsub.s32 2, %v1229
        %v1231 = vrot.slane %v1179, %v1230
        %v1232 = vmul.f32 %v1222, %v1227
        %v1233 = vmul.f32 %v1222, %v1231
        %v1234 = vadd.f32 %v1215, %v1232
        %v1235 = vadd.f32 %v1216, %v1233
        %s1236 = scalar_lea.vmem %s4, 12
        %v1237 = vld [vmem:[%s1236] sm:$0xf]
        %1239 = vset.pattern.permute.xlu0 0
        %1240 = vperm.xlu0 %1239, %v1237
        %v1241 = vpop.permute.xlu0 %1240
        %v1243 = vlaneseq
        %v1244 = vshrl.u32 %v1243, 7
        %v1245 = vsub.s32 3, %v1244
        %v1246 = vrot.slane %v1178, %v1245
        %v1247 = vlaneseq
        %v1248 = vshrl.u32 %v1247, 7
        %v1249 = vsub.s32 3, %v1248
        %v1250 = vrot.slane %v1179, %v1249
        %v1251 = vmul.f32 %v1241, %v1246
        %v1252 = vmul.f32 %v1241, %v1250
        %v1253 = vadd.f32 %v1234, %v1251
        %v1254 = vadd.f32 %v1235, %v1252
        %s1255 = scalar_lea.vmem %s4, 16
        %v1256 = vld [vmem:[%s1255] sm:$0xf]
        %1258 = vset.pattern.permute.xlu0 0
        %1259 = vperm.xlu0 %1258, %v1256
        %v1260 = vpop.permute.xlu0 %1259
        %v1262 = vlaneseq
        %v1263 = vshrl.u32 %v1262, 7
        %v1264 = vsub.s32 4, %v1263
        %v1265 = vrot.slane %v1178, %v1264
        %v1266 = vlaneseq
        %v1267 = vshrl.u32 %v1266, 7
        %v1268 = vsub.s32 4, %v1267
        %v1269 = vrot.slane %v1179, %v1268
        %v1270 = vmul.f32 %v1260, %v1265
        %v1271 = vmul.f32 %v1260, %v1269
        %v1272 = vadd.f32 %v1253, %v1270
        %v1273 = vadd.f32 %v1254, %v1271
        %s1274 = scalar_lea.vmem %s4, 20
        %v1275 = vld [vmem:[%s1274] sm:$0xf]
        %1277 = vset.pattern.permute.xlu0 0
        %1278 = vperm.xlu0 %1277, %v1275
        %v1279 = vpop.permute.xlu0 %1278
        %v1281 = vlaneseq
        %v1282 = vshrl.u32 %v1281, 7
        %v1283 = vsub.s32 5, %v1282
        %v1284 = vrot.slane %v1178, %v1283
        %v1285 = vlaneseq
        %v1286 = vshrl.u32 %v1285, 7
        %v1287 = vsub.s32 5, %v1286
        %v1288 = vrot.slane %v1179, %v1287
        %v1289 = vmul.f32 %v1279, %v1284
        %v1290 = vmul.f32 %v1279, %v1288
        %v1291 = vadd.f32 %v1272, %v1289
        %v1292 = vadd.f32 %v1273, %v1290
        %s1293 = scalar_lea.vmem %s4, 24
        %v1294 = vld [vmem:[%s1293] sm:$0xf]
        %1296 = vset.pattern.permute.xlu0 0
        %1297 = vperm.xlu0 %1296, %v1294
        %v1298 = vpop.permute.xlu0 %1297
        %v1300 = vlaneseq
        %v1301 = vshrl.u32 %v1300, 7
        %v1302 = vsub.s32 6, %v1301
        %v1303 = vrot.slane %v1178, %v1302
        %v1304 = vlaneseq
        %v1305 = vshrl.u32 %v1304, 7
        %v1306 = vsub.s32 6, %v1305
        %v1307 = vrot.slane %v1179, %v1306
        %v1308 = vmul.f32 %v1298, %v1303
        %v1309 = vmul.f32 %v1298, %v1307
        %v1310 = vadd.f32 %v1291, %v1308
        %v1311 = vadd.f32 %v1292, %v1309
        %s1312 = scalar_lea.vmem %s4, 28
        %v1313 = vld [vmem:[%s1312] sm:$0xf]
        %1315 = vset.pattern.permute.xlu0 0
        %1316 = vperm.xlu0 %1315, %v1313
        %v1317 = vpop.permute.xlu0 %1316
        %v1319 = vlaneseq
        %v1320 = vshrl.u32 %v1319, 7
        %v1321 = vsub.s32 7, %v1320
        %v1322 = vrot.slane %v1178, %v1321
        %v1323 = vlaneseq
        %v1324 = vshrl.u32 %v1323, 7
        %v1325 = vsub.s32 7, %v1324
        %v1326 = vrot.slane %v1179, %v1325
        %v1327 = vmul.f32 %v1317, %v1322
        %v1328 = vmul.f32 %v1317, %v1326
        %v1329 = vadd.f32 %v1310, %v1327
        %v1330 = vadd.f32 %v1311, %v1328
        %1331 = vrot.lane.b32.xlu0 %v1159, 16
        %v1332 = vpop.permute.xlu0 %1331
        %1333 = vrot.lane.b32.xlu0 %v1160, 16
        %v1334 = vpop.permute.xlu0 %1333
        %v1335 = vsel %vm432, %v1332, %v1334
        %v1338 = vsel %vm432, 0.0, %v1332
        %s1339 = scalar_lea.vmem %s4, 32
        %v1340 = vld [vmem:[%s1339] sm:$0xf]
        %1342 = vset.pattern.permute.xlu0 0
        %1343 = vperm.xlu0 %1342, %v1340
        %v1344 = vpop.permute.xlu0 %1343
        %v1346 = vlaneseq
        %v1347 = vshrl.u32 %v1346, 7
        %v1348 = vsub.s32 0, %v1347
        %v1349 = vrot.slane %v1338, %v1348
        %v1350 = vlaneseq
        %v1351 = vshrl.u32 %v1350, 7
        %v1352 = vsub.s32 0, %v1351
        %v1353 = vrot.slane %v1335, %v1352
        %v1354 = vmul.f32 %v1344, %v1349
        %v1355 = vmul.f32 %v1344, %v1353
        %v1356 = vadd.f32 %v1329, %v1354
        %v1357 = vadd.f32 %v1330, %v1355
        %s1358 = scalar_lea.vmem %s4, 36
        %v1359 = vld [vmem:[%s1358] sm:$0xf]
        %1361 = vset.pattern.permute.xlu0 0
        %1362 = vperm.xlu0 %1361, %v1359
        %v1363 = vpop.permute.xlu0 %1362
        %v1365 = vlaneseq
        %v1366 = vshrl.u32 %v1365, 7
        %v1367 = vsub.s32 1, %v1366
        %v1368 = vrot.slane %v1338, %v1367
        %v1369 = vlaneseq
        %v1370 = vshrl.u32 %v1369, 7
        %v1371 = vsub.s32 1, %v1370
        %v1372 = vrot.slane %v1335, %v1371
        %v1373 = vmul.f32 %v1363, %v1368
        %v1374 = vmul.f32 %v1363, %v1372
        %v1375 = vadd.f32 %v1356, %v1373
        %v1376 = vadd.f32 %v1357, %v1374
        %s1377 = scalar_lea.vmem %s4, 40
        %v1378 = vld [vmem:[%s1377] sm:$0xf]
        %1380 = vset.pattern.permute.xlu0 0
        %1381 = vperm.xlu0 %1380, %v1378
        %v1382 = vpop.permute.xlu0 %1381
        %v1384 = vlaneseq
        %v1385 = vshrl.u32 %v1384, 7
        %v1386 = vsub.s32 2, %v1385
        %v1387 = vrot.slane %v1338, %v1386
        %v1388 = vlaneseq
        %v1389 = vshrl.u32 %v1388, 7
        %v1390 = vsub.s32 2, %v1389
        %v1391 = vrot.slane %v1335, %v1390
        %v1392 = vmul.f32 %v1382, %v1387
        %v1393 = vmul.f32 %v1382, %v1391
        %v1394 = vadd.f32 %v1375, %v1392
        %v1395 = vadd.f32 %v1376, %v1393
        %s1396 = scalar_lea.vmem %s4, 44
        %v1397 = vld [vmem:[%s1396] sm:$0xf]
        %1399 = vset.pattern.permute.xlu0 0
        %1400 = vperm.xlu0 %1399, %v1397
        %v1401 = vpop.permute.xlu0 %1400
        %v1403 = vlaneseq
        %v1404 = vshrl.u32 %v1403, 7
        %v1405 = vsub.s32 3, %v1404
        %v1406 = vrot.slane %v1338, %v1405
        %v1407 = vlaneseq
        %v1408 = vshrl.u32 %v1407, 7
        %v1409 = vsub.s32 3, %v1408
        %v1410 = vrot.slane %v1335, %v1409
        %v1411 = vmul.f32 %v1401, %v1406
        %v1412 = vmul.f32 %v1401, %v1410
        %v1413 = vadd.f32 %v1394, %v1411
        %v1414 = vadd.f32 %v1395, %v1412
        %s1415 = scalar_lea.vmem %s4, 48
        %v1416 = vld [vmem:[%s1415] sm:$0xf]
        %1418 = vset.pattern.permute.xlu0 0
        %1419 = vperm.xlu0 %1418, %v1416
        %v1420 = vpop.permute.xlu0 %1419
        %v1422 = vlaneseq
        %v1423 = vshrl.u32 %v1422, 7
        %v1424 = vsub.s32 4, %v1423
        %v1425 = vrot.slane %v1338, %v1424
        %v1426 = vlaneseq
        %v1427 = vshrl.u32 %v1426, 7
        %v1428 = vsub.s32 4, %v1427
        %v1429 = vrot.slane %v1335, %v1428
        %v1430 = vmul.f32 %v1420, %v1425
        %v1431 = vmul.f32 %v1420, %v1429
        %v1432 = vadd.f32 %v1413, %v1430
        %v1433 = vadd.f32 %v1414, %v1431
        %s1434 = scalar_lea.vmem %s4, 52
        %v1435 = vld [vmem:[%s1434] sm:$0xf]
        %1437 = vset.pattern.permute.xlu0 0
        %1438 = vperm.xlu0 %1437, %v1435
        %v1439 = vpop.permute.xlu0 %1438
        %v1441 = vlaneseq
        %v1442 = vshrl.u32 %v1441, 7
        %v1443 = vsub.s32 5, %v1442
        %v1444 = vrot.slane %v1338, %v1443
        %v1445 = vlaneseq
        %v1446 = vshrl.u32 %v1445, 7
        %v1447 = vsub.s32 5, %v1446
        %v1448 = vrot.slane %v1335, %v1447
        %v1449 = vmul.f32 %v1439, %v1444
        %v1450 = vmul.f32 %v1439, %v1448
        %v1451 = vadd.f32 %v1432, %v1449
        %v1452 = vadd.f32 %v1433, %v1450
        %s1453 = scalar_lea.vmem %s4, 56
        %v1454 = vld [vmem:[%s1453] sm:$0xf]
        %1456 = vset.pattern.permute.xlu0 0
        %1457 = vperm.xlu0 %1456, %v1454
        %v1458 = vpop.permute.xlu0 %1457
        %v1460 = vlaneseq
        %v1461 = vshrl.u32 %v1460, 7
        %v1462 = vsub.s32 6, %v1461
        %v1463 = vrot.slane %v1338, %v1462
        %v1464 = vlaneseq
        %v1465 = vshrl.u32 %v1464, 7
        %v1466 = vsub.s32 6, %v1465
        %v1467 = vrot.slane %v1335, %v1466
        %v1468 = vmul.f32 %v1458, %v1463
        %v1469 = vmul.f32 %v1458, %v1467
        %v1470 = vadd.f32 %v1451, %v1468
        %v1471 = vadd.f32 %v1452, %v1469
        %s1472 = scalar_lea.vmem %s4, 60
        %v1473 = vld [vmem:[%s1472] sm:$0xf]
        %1475 = vset.pattern.permute.xlu0 0
        %1476 = vperm.xlu0 %1475, %v1473
        %v1477 = vpop.permute.xlu0 %1476
        %v1479 = vlaneseq
        %v1480 = vshrl.u32 %v1479, 7
        %v1481 = vsub.s32 7, %v1480
        %v1482 = vrot.slane %v1338, %v1481
        %v1483 = vlaneseq
        %v1484 = vshrl.u32 %v1483, 7
        %v1485 = vsub.s32 7, %v1484
        %v1486 = vrot.slane %v1335, %v1485
        %v1487 = vmul.f32 %v1477, %v1482
        %v1488 = vmul.f32 %v1477, %v1486
        %v1489 = vadd.f32 %v1470, %v1487
        %v1490 = vadd.f32 %v1471, %v1488
        %1491 = vrot.lane.b32.xlu0 %v1159, 15
        %v1492 = vpop.permute.xlu0 %1491
        %1493 = vrot.lane.b32.xlu0 %v1160, 15
        %v1494 = vpop.permute.xlu0 %1493
        %v1495 = vsel %vm517, %v1492, %v1494
        %v1498 = vsel %vm517, 0.0, %v1492
        %v1499 = vmul.f32 %v1498, %v325
        %v1500 = vmul.f32 %v1495, %v326
        %s1501 = scalar_lea.vmem %s4, 64
        %v1502 = vld [vmem:[%s1501] sm:$0xf]
        %1504 = vset.pattern.permute.xlu0 0
        %1505 = vperm.xlu0 %1504, %v1502
        %v1506 = vpop.permute.xlu0 %1505
        %v1508 = vlaneseq
        %v1509 = vshrl.u32 %v1508, 7
        %v1510 = vsub.s32 0, %v1509
        %v1511 = vrot.slane %v1499, %v1510
        %v1512 = vlaneseq
        %v1513 = vshrl.u32 %v1512, 7
        %v1514 = vsub.s32 0, %v1513
        %v1515 = vrot.slane %v1500, %v1514
        %v1516 = vmul.f32 %v1506, %v1511
        %v1517 = vmul.f32 %v1506, %v1515
        %v1518 = vadd.f32 %v1489, %v1516
        %v1519 = vadd.f32 %v1490, %v1517
        %s1520 = scalar_lea.vmem %s4, 68
        %v1521 = vld [vmem:[%s1520] sm:$0xf]
        %1523 = vset.pattern.permute.xlu0 0
        %1524 = vperm.xlu0 %1523, %v1521
        %v1525 = vpop.permute.xlu0 %1524
        %v1527 = vlaneseq
        %v1528 = vshrl.u32 %v1527, 7
        %v1529 = vsub.s32 1, %v1528
        %v1530 = vrot.slane %v1499, %v1529
        %v1531 = vlaneseq
        %v1532 = vshrl.u32 %v1531, 7
        %v1533 = vsub.s32 1, %v1532
        %v1534 = vrot.slane %v1500, %v1533
        %v1535 = vmul.f32 %v1525, %v1530
        %v1536 = vmul.f32 %v1525, %v1534
        %v1537 = vadd.f32 %v1518, %v1535
        %v1538 = vadd.f32 %v1519, %v1536
        %s1539 = scalar_lea.vmem %s4, 72
        %v1540 = vld [vmem:[%s1539] sm:$0xf]
        %1542 = vset.pattern.permute.xlu0 0
        %1543 = vperm.xlu0 %1542, %v1540
        %v1544 = vpop.permute.xlu0 %1543
        %v1546 = vlaneseq
        %v1547 = vshrl.u32 %v1546, 7
        %v1548 = vsub.s32 2, %v1547
        %v1549 = vrot.slane %v1499, %v1548
        %v1550 = vlaneseq
        %v1551 = vshrl.u32 %v1550, 7
        %v1552 = vsub.s32 2, %v1551
        %v1553 = vrot.slane %v1500, %v1552
        %v1554 = vmul.f32 %v1544, %v1549
        %v1555 = vmul.f32 %v1544, %v1553
        %v1556 = vadd.f32 %v1537, %v1554
        %v1557 = vadd.f32 %v1538, %v1555
        %s1558 = scalar_lea.vmem %s4, 76
        %v1559 = vld [vmem:[%s1558] sm:$0xf]
        %1561 = vset.pattern.permute.xlu0 0
        %1562 = vperm.xlu0 %1561, %v1559
        %v1563 = vpop.permute.xlu0 %1562
        %v1565 = vlaneseq
        %v1566 = vshrl.u32 %v1565, 7
        %v1567 = vsub.s32 3, %v1566
        %v1568 = vrot.slane %v1499, %v1567
        %v1569 = vlaneseq
        %v1570 = vshrl.u32 %v1569, 7
        %v1571 = vsub.s32 3, %v1570
        %v1572 = vrot.slane %v1500, %v1571
        %v1573 = vmul.f32 %v1563, %v1568
        %v1574 = vmul.f32 %v1563, %v1572
        %v1575 = vadd.f32 %v1556, %v1573
        %v1576 = vadd.f32 %v1557, %v1574
        %s1577 = scalar_lea.vmem %s4, 80
        %v1578 = vld [vmem:[%s1577] sm:$0xf]
        %1580 = vset.pattern.permute.xlu0 0
        %1581 = vperm.xlu0 %1580, %v1578
        %v1582 = vpop.permute.xlu0 %1581
        %v1584 = vlaneseq
        %v1585 = vshrl.u32 %v1584, 7
        %v1586 = vsub.s32 4, %v1585
        %v1587 = vrot.slane %v1499, %v1586
        %v1588 = vlaneseq
        %v1589 = vshrl.u32 %v1588, 7
        %v1590 = vsub.s32 4, %v1589
        %v1591 = vrot.slane %v1500, %v1590
        %v1592 = vmul.f32 %v1582, %v1587
        %v1593 = vmul.f32 %v1582, %v1591
        %v1594 = vadd.f32 %v1575, %v1592
        %v1595 = vadd.f32 %v1576, %v1593
        %s1596 = scalar_lea.vmem %s4, 84
        %v1597 = vld [vmem:[%s1596] sm:$0xf]
        %1599 = vset.pattern.permute.xlu0 0
        %1600 = vperm.xlu0 %1599, %v1597
        %v1601 = vpop.permute.xlu0 %1600
        %v1603 = vlaneseq
        %v1604 = vshrl.u32 %v1603, 7
        %v1605 = vsub.s32 5, %v1604
        %v1606 = vrot.slane %v1499, %v1605
        %v1607 = vlaneseq
        %v1608 = vshrl.u32 %v1607, 7
        %v1609 = vsub.s32 5, %v1608
        %v1610 = vrot.slane %v1500, %v1609
        %v1611 = vmul.f32 %v1601, %v1606
        %v1612 = vmul.f32 %v1601, %v1610
        %v1613 = vadd.f32 %v1594, %v1611
        %v1614 = vadd.f32 %v1595, %v1612
        %s1615 = scalar_lea.vmem %s4, 88
        %v1616 = vld [vmem:[%s1615] sm:$0xf]
        %1618 = vset.pattern.permute.xlu0 0
        %1619 = vperm.xlu0 %1618, %v1616
        %v1620 = vpop.permute.xlu0 %1619
        %v1622 = vlaneseq
        %v1623 = vshrl.u32 %v1622, 7
        %v1624 = vsub.s32 6, %v1623
        %v1625 = vrot.slane %v1499, %v1624
        %v1626 = vlaneseq
        %v1627 = vshrl.u32 %v1626, 7
        %v1628 = vsub.s32 6, %v1627
        %v1629 = vrot.slane %v1500, %v1628
        %v1630 = vmul.f32 %v1620, %v1625
        %v1631 = vmul.f32 %v1620, %v1629
        %v1632 = vadd.f32 %v1613, %v1630
        %v1633 = vadd.f32 %v1614, %v1631
        %s1634 = scalar_lea.vmem %s4, 92
        %v1635 = vld [vmem:[%s1634] sm:$0xf]
        %1637 = vset.pattern.permute.xlu0 0
        %1638 = vperm.xlu0 %1637, %v1635
        %v1639 = vpop.permute.xlu0 %1638
        %v1641 = vlaneseq
        %v1642 = vshrl.u32 %v1641, 7
        %v1643 = vsub.s32 7, %v1642
        %v1644 = vrot.slane %v1499, %v1643
        %v1645 = vlaneseq
        %v1646 = vshrl.u32 %v1645, 7
        %v1647 = vsub.s32 7, %v1646
        %v1648 = vrot.slane %v1500, %v1647
        %v1649 = vmul.f32 %v1639, %v1644
        %v1650 = vmul.f32 %v1639, %v1648
        %v1651 = vadd.f32 %v1632, %v1649
        %v1652 = vadd.f32 %v1633, %v1650
        %1653 = vrot.lane.b32.xlu0 %v1159, 1
        %v1654 = vpop.permute.xlu0 %1653
        %1655 = vrot.lane.b32.xlu0 %v1160, 1
        %v1656 = vpop.permute.xlu0 %1655
        %v1657 = vsel %vm604, %v1654, %v1656
        %v1660 = vsel %vm604, 0.0, %v1654
        %v1661 = vmul.f32 %v1660, %v331
        %v1662 = vmul.f32 %v1657, %v332
        %s1663 = scalar_lea.vmem %s4, 96
        %v1664 = vld [vmem:[%s1663] sm:$0xf]
        %1666 = vset.pattern.permute.xlu0 0
        %1667 = vperm.xlu0 %1666, %v1664
        %v1668 = vpop.permute.xlu0 %1667
        %v1670 = vlaneseq
        %v1671 = vshrl.u32 %v1670, 7
        %v1672 = vsub.s32 0, %v1671
        %v1673 = vrot.slane %v1661, %v1672
        %v1674 = vlaneseq
        %v1675 = vshrl.u32 %v1674, 7
        %v1676 = vsub.s32 0, %v1675
        %v1677 = vrot.slane %v1662, %v1676
        %v1678 = vmul.f32 %v1668, %v1673
        %v1679 = vmul.f32 %v1668, %v1677
        %v1680 = vadd.f32 %v1651, %v1678
        %v1681 = vadd.f32 %v1652, %v1679
        %s1682 = scalar_lea.vmem %s4, 100
        %v1683 = vld [vmem:[%s1682] sm:$0xf]
        %1685 = vset.pattern.permute.xlu0 0
        %1686 = vperm.xlu0 %1685, %v1683
        %v1687 = vpop.permute.xlu0 %1686
        %v1689 = vlaneseq
        %v1690 = vshrl.u32 %v1689, 7
        %v1691 = vsub.s32 1, %v1690
        %v1692 = vrot.slane %v1661, %v1691
        %v1693 = vlaneseq
        %v1694 = vshrl.u32 %v1693, 7
        %v1695 = vsub.s32 1, %v1694
        %v1696 = vrot.slane %v1662, %v1695
        %v1697 = vmul.f32 %v1687, %v1692
        %v1698 = vmul.f32 %v1687, %v1696
        %v1699 = vadd.f32 %v1680, %v1697
        %v1700 = vadd.f32 %v1681, %v1698
        %s1701 = scalar_lea.vmem %s4, 104
        %v1702 = vld [vmem:[%s1701] sm:$0xf]
        %1704 = vset.pattern.permute.xlu0 0
        %1705 = vperm.xlu0 %1704, %v1702
        %v1706 = vpop.permute.xlu0 %1705
        %v1708 = vlaneseq
        %v1709 = vshrl.u32 %v1708, 7
        %v1710 = vsub.s32 2, %v1709
        %v1711 = vrot.slane %v1661, %v1710
        %v1712 = vlaneseq
        %v1713 = vshrl.u32 %v1712, 7
        %v1714 = vsub.s32 2, %v1713
        %v1715 = vrot.slane %v1662, %v1714
        %v1716 = vmul.f32 %v1706, %v1711
        %v1717 = vmul.f32 %v1706, %v1715
        %v1718 = vadd.f32 %v1699, %v1716
        %v1719 = vadd.f32 %v1700, %v1717
        %s1720 = scalar_lea.vmem %s4, 108
        %v1721 = vld [vmem:[%s1720] sm:$0xf]
        %1723 = vset.pattern.permute.xlu0 0
        %1724 = vperm.xlu0 %1723, %v1721
        %v1725 = vpop.permute.xlu0 %1724
        %v1727 = vlaneseq
        %v1728 = vshrl.u32 %v1727, 7
        %v1729 = vsub.s32 3, %v1728
        %v1730 = vrot.slane %v1661, %v1729
        %v1731 = vlaneseq
        %v1732 = vshrl.u32 %v1731, 7
        %v1733 = vsub.s32 3, %v1732
        %v1734 = vrot.slane %v1662, %v1733
        %v1735 = vmul.f32 %v1725, %v1730
        %v1736 = vmul.f32 %v1725, %v1734
        %v1737 = vadd.f32 %v1718, %v1735
        %v1738 = vadd.f32 %v1719, %v1736
        %s1739 = scalar_lea.vmem %s4, 112
        %v1740 = vld [vmem:[%s1739] sm:$0xf]
        %1742 = vset.pattern.permute.xlu0 0
        %1743 = vperm.xlu0 %1742, %v1740
        %v1744 = vpop.permute.xlu0 %1743
        %v1746 = vlaneseq
        %v1747 = vshrl.u32 %v1746, 7
        %v1748 = vsub.s32 4, %v1747
        %v1749 = vrot.slane %v1661, %v1748
        %v1750 = vlaneseq
        %v1751 = vshrl.u32 %v1750, 7
        %v1752 = vsub.s32 4, %v1751
        %v1753 = vrot.slane %v1662, %v1752
        %v1754 = vmul.f32 %v1744, %v1749
        %v1755 = vmul.f32 %v1744, %v1753
        %v1756 = vadd.f32 %v1737, %v1754
        %v1757 = vadd.f32 %v1738, %v1755
        %s1758 = scalar_lea.vmem %s4, 116
        %v1759 = vld [vmem:[%s1758] sm:$0xf]
        %1761 = vset.pattern.permute.xlu0 0
        %1762 = vperm.xlu0 %1761, %v1759
        %v1763 = vpop.permute.xlu0 %1762
        %v1765 = vlaneseq
        %v1766 = vshrl.u32 %v1765, 7
        %v1767 = vsub.s32 5, %v1766
        %v1768 = vrot.slane %v1661, %v1767
        %v1769 = vlaneseq
        %v1770 = vshrl.u32 %v1769, 7
        %v1771 = vsub.s32 5, %v1770
        %v1772 = vrot.slane %v1662, %v1771
        %v1773 = vmul.f32 %v1763, %v1768
        %v1774 = vmul.f32 %v1763, %v1772
        %v1775 = vadd.f32 %v1756, %v1773
        %v1776 = vadd.f32 %v1757, %v1774
        %s1777 = scalar_lea.vmem %s4, 120
        %v1778 = vld [vmem:[%s1777] sm:$0xf]
        %1780 = vset.pattern.permute.xlu0 0
        %1781 = vperm.xlu0 %1780, %v1778
        %v1782 = vpop.permute.xlu0 %1781
        %v1784 = vlaneseq
        %v1785 = vshrl.u32 %v1784, 7
        %v1786 = vsub.s32 6, %v1785
        %v1787 = vrot.slane %v1661, %v1786
        %v1788 = vlaneseq
        %v1789 = vshrl.u32 %v1788, 7
        %v1790 = vsub.s32 6, %v1789
        %v1791 = vrot.slane %v1662, %v1790
        %v1792 = vmul.f32 %v1782, %v1787
        %v1793 = vmul.f32 %v1782, %v1791
        %v1794 = vadd.f32 %v1775, %v1792
        %v1795 = vadd.f32 %v1776, %v1793
        %s1796 = scalar_lea.vmem %s4, 124
        %v1797 = vld [vmem:[%s1796] sm:$0xf]
        %1799 = vset.pattern.permute.xlu0 0
        %1800 = vperm.xlu0 %1799, %v1797
        %v1801 = vpop.permute.xlu0 %1800
        %v1803 = vlaneseq
        %v1804 = vshrl.u32 %v1803, 7
        %v1805 = vsub.s32 7, %v1804
        %v1806 = vrot.slane %v1661, %v1805
        %v1807 = vlaneseq
        %v1808 = vshrl.u32 %v1807, 7
        %v1809 = vsub.s32 7, %v1808
        %v1810 = vrot.slane %v1662, %v1809
        %v1811 = vmul.f32 %v1801, %v1806
        %v1812 = vmul.f32 %v1801, %v1810
        %v1813 = vadd.f32 %v1794, %v1811
        %v1814 = vadd.f32 %v1795, %v1812
        %s1815 = scalar_lea.vmem %s4, 128
        %v1816 = vld [vmem:[%s1815] sm:$0xf]
        %1818 = vset.pattern.permute.xlu0 0
        %1819 = vperm.xlu0 %1818, %v1816
        %v1820 = vpop.permute.xlu0 %1819
        %v1822 = vlaneseq
        %v1823 = vshrl.u32 %v1822, 7
        %v1824 = vsub.s32 0, %v1823
        %v1825 = vrot.slane %v1159, %v1824
        %v1826 = vlaneseq
        %v1827 = vshrl.u32 %v1826, 7
        %v1828 = vsub.s32 0, %v1827
        %v1829 = vrot.slane %v1160, %v1828
        %v1830 = vmul.f32 %v1820, %v1825
        %v1831 = vmul.f32 %v1820, %v1829
        %v1832 = vadd.f32 %v1813, %v1830
        %v1833 = vadd.f32 %v1814, %v1831
        %s1834 = scalar_lea.vmem %s4, 132
        %v1835 = vld [vmem:[%s1834] sm:$0xf]
        %1837 = vset.pattern.permute.xlu0 0
        %1838 = vperm.xlu0 %1837, %v1835
        %v1839 = vpop.permute.xlu0 %1838
        %v1841 = vlaneseq
        %v1842 = vshrl.u32 %v1841, 7
        %v1843 = vsub.s32 1, %v1842
        %v1844 = vrot.slane %v1159, %v1843
        %v1845 = vlaneseq
        %v1846 = vshrl.u32 %v1845, 7
        %v1847 = vsub.s32 1, %v1846
        %v1848 = vrot.slane %v1160, %v1847
        %v1849 = vmul.f32 %v1839, %v1844
        %v1850 = vmul.f32 %v1839, %v1848
        %v1851 = vadd.f32 %v1832, %v1849
        %v1852 = vadd.f32 %v1833, %v1850
        %s1853 = scalar_lea.vmem %s4, 136
        %v1854 = vld [vmem:[%s1853] sm:$0xf]
        %1856 = vset.pattern.permute.xlu0 0
        %1857 = vperm.xlu0 %1856, %v1854
        %v1858 = vpop.permute.xlu0 %1857
        %v1860 = vlaneseq
        %v1861 = vshrl.u32 %v1860, 7
        %v1862 = vsub.s32 2, %v1861
        %v1863 = vrot.slane %v1159, %v1862
        %v1864 = vlaneseq
        %v1865 = vshrl.u32 %v1864, 7
        %v1866 = vsub.s32 2, %v1865
        %v1867 = vrot.slane %v1160, %v1866
        %v1868 = vmul.f32 %v1858, %v1863
        %v1869 = vmul.f32 %v1858, %v1867
        %v1870 = vadd.f32 %v1851, %v1868
        %v1871 = vadd.f32 %v1852, %v1869
        %s1872 = scalar_lea.vmem %s4, 140
        %v1873 = vld [vmem:[%s1872] sm:$0xf]
        %1875 = vset.pattern.permute.xlu0 0
        %1876 = vperm.xlu0 %1875, %v1873
        %v1877 = vpop.permute.xlu0 %1876
        %v1879 = vlaneseq
        %v1880 = vshrl.u32 %v1879, 7
        %v1881 = vsub.s32 3, %v1880
        %v1882 = vrot.slane %v1159, %v1881
        %v1883 = vlaneseq
        %v1884 = vshrl.u32 %v1883, 7
        %v1885 = vsub.s32 3, %v1884
        %v1886 = vrot.slane %v1160, %v1885
        %v1887 = vmul.f32 %v1877, %v1882
        %v1888 = vmul.f32 %v1877, %v1886
        %v1889 = vadd.f32 %v1870, %v1887
        %v1890 = vadd.f32 %v1871, %v1888
        %s1891 = scalar_lea.vmem %s4, 144
        %v1892 = vld [vmem:[%s1891] sm:$0xf]
        %1894 = vset.pattern.permute.xlu0 0
        %1895 = vperm.xlu0 %1894, %v1892
        %v1896 = vpop.permute.xlu0 %1895
        %v1898 = vlaneseq
        %v1899 = vshrl.u32 %v1898, 7
        %v1900 = vsub.s32 4, %v1899
        %v1901 = vrot.slane %v1159, %v1900
        %v1902 = vlaneseq
        %v1903 = vshrl.u32 %v1902, 7
        %v1904 = vsub.s32 4, %v1903
        %v1905 = vrot.slane %v1160, %v1904
        %v1906 = vmul.f32 %v1896, %v1901
        %v1907 = vmul.f32 %v1896, %v1905
        %v1908 = vadd.f32 %v1889, %v1906
        %v1909 = vadd.f32 %v1890, %v1907
        %s1910 = scalar_lea.vmem %s4, 148
        %v1911 = vld [vmem:[%s1910] sm:$0xf]
        %1913 = vset.pattern.permute.xlu0 0
        %1914 = vperm.xlu0 %1913, %v1911
        %v1915 = vpop.permute.xlu0 %1914
        %v1917 = vlaneseq
        %v1918 = vshrl.u32 %v1917, 7
        %v1919 = vsub.s32 5, %v1918
        %v1920 = vrot.slane %v1159, %v1919
        %v1921 = vlaneseq
        %v1922 = vshrl.u32 %v1921, 7
        %v1923 = vsub.s32 5, %v1922
        %v1924 = vrot.slane %v1160, %v1923
        %v1925 = vmul.f32 %v1915, %v1920
        %v1926 = vmul.f32 %v1915, %v1924
        %v1927 = vadd.f32 %v1908, %v1925
        %v1928 = vadd.f32 %v1909, %v1926
        %s1929 = scalar_lea.vmem %s4, 152
        %v1930 = vld [vmem:[%s1929] sm:$0xf]
        %1932 = vset.pattern.permute.xlu0 0
        %1933 = vperm.xlu0 %1932, %v1930
        %v1934 = vpop.permute.xlu0 %1933
        %v1936 = vlaneseq
        %v1937 = vshrl.u32 %v1936, 7
        %v1938 = vsub.s32 6, %v1937
        %v1939 = vrot.slane %v1159, %v1938
        %v1940 = vlaneseq
        %v1941 = vshrl.u32 %v1940, 7
        %v1942 = vsub.s32 6, %v1941
        %v1943 = vrot.slane %v1160, %v1942
        %v1944 = vmul.f32 %v1934, %v1939
        %v1945 = vmul.f32 %v1934, %v1943
        %v1946 = vadd.f32 %v1927, %v1944
        %v1947 = vadd.f32 %v1928, %v1945
        %s1948 = scalar_lea.vmem %s4, 156
        %v1949 = vld [vmem:[%s1948] sm:$0xf]
        %1951 = vset.pattern.permute.xlu0 0
        %1952 = vperm.xlu0 %1951, %v1949
        %v1953 = vpop.permute.xlu0 %1952
        %v1955 = vlaneseq
        %v1956 = vshrl.u32 %v1955, 7
        %v1957 = vsub.s32 7, %v1956
        %v1958 = vrot.slane %v1159, %v1957
        %v1959 = vlaneseq
        %v1960 = vshrl.u32 %v1959, 7
        %v1961 = vsub.s32 7, %v1960
        %v1962 = vrot.slane %v1160, %v1961
        %v1963 = vmul.f32 %v1953, %v1958
        %v1964 = vmul.f32 %v1953, %v1962
        %v1965 = vadd.f32 %v1946, %v1963
        %v1966 = vadd.f32 %v1947, %v1964
        %1967 = vrot.lane.b32.xlu0 %v1159, 127
        %v1968 = vpop.permute.xlu0 %1967
        %1969 = vrot.lane.b32.xlu0 %v1160, 127
        %v1970 = vpop.permute.xlu0 %1969
        %v1971 = vsel %vm807, %v1968, %v1970
        %v1974 = vsel %vm807, %v1970, 0.0
        %v1975 = vmul.f32 %v1971, %v325
        %v1976 = vmul.f32 %v1974, %v326
        %s1977 = scalar_lea.vmem %s4, 160
        %v1978 = vld [vmem:[%s1977] sm:$0xf]
        %1980 = vset.pattern.permute.xlu0 0
        %1981 = vperm.xlu0 %1980, %v1978
        %v1982 = vpop.permute.xlu0 %1981
        %v1984 = vlaneseq
        %v1985 = vshrl.u32 %v1984, 7
        %v1986 = vsub.s32 0, %v1985
        %v1987 = vrot.slane %v1975, %v1986
        %v1988 = vlaneseq
        %v1989 = vshrl.u32 %v1988, 7
        %v1990 = vsub.s32 0, %v1989
        %v1991 = vrot.slane %v1976, %v1990
        %v1992 = vmul.f32 %v1982, %v1987
        %v1993 = vmul.f32 %v1982, %v1991
        %v1994 = vadd.f32 %v1965, %v1992
        %v1995 = vadd.f32 %v1966, %v1993
        %s1996 = scalar_lea.vmem %s4, 164
        %v1997 = vld [vmem:[%s1996] sm:$0xf]
        %1999 = vset.pattern.permute.xlu0 0
        %2000 = vperm.xlu0 %1999, %v1997
        %v2001 = vpop.permute.xlu0 %2000
        %v2003 = vlaneseq
        %v2004 = vshrl.u32 %v2003, 7
        %v2005 = vsub.s32 1, %v2004
        %v2006 = vrot.slane %v1975, %v2005
        %v2007 = vlaneseq
        %v2008 = vshrl.u32 %v2007, 7
        %v2009 = vsub.s32 1, %v2008
        %v2010 = vrot.slane %v1976, %v2009
        %v2011 = vmul.f32 %v2001, %v2006
        %v2012 = vmul.f32 %v2001, %v2010
        %v2013 = vadd.f32 %v1994, %v2011
        %v2014 = vadd.f32 %v1995, %v2012
        %s2015 = scalar_lea.vmem %s4, 168
        %v2016 = vld [vmem:[%s2015] sm:$0xf]
        %2018 = vset.pattern.permute.xlu0 0
        %2019 = vperm.xlu0 %2018, %v2016
        %v2020 = vpop.permute.xlu0 %2019
        %v2022 = vlaneseq
        %v2023 = vshrl.u32 %v2022, 7
        %v2024 = vsub.s32 2, %v2023
        %v2025 = vrot.slane %v1975, %v2024
        %v2026 = vlaneseq
        %v2027 = vshrl.u32 %v2026, 7
        %v2028 = vsub.s32 2, %v2027
        %v2029 = vrot.slane %v1976, %v2028
        %v2030 = vmul.f32 %v2020, %v2025
        %v2031 = vmul.f32 %v2020, %v2029
        %v2032 = vadd.f32 %v2013, %v2030
        %v2033 = vadd.f32 %v2014, %v2031
        %s2034 = scalar_lea.vmem %s4, 172
        %v2035 = vld [vmem:[%s2034] sm:$0xf]
        %2037 = vset.pattern.permute.xlu0 0
        %2038 = vperm.xlu0 %2037, %v2035
        %v2039 = vpop.permute.xlu0 %2038
        %v2041 = vlaneseq
        %v2042 = vshrl.u32 %v2041, 7
        %v2043 = vsub.s32 3, %v2042
        %v2044 = vrot.slane %v1975, %v2043
        %v2045 = vlaneseq
        %v2046 = vshrl.u32 %v2045, 7
        %v2047 = vsub.s32 3, %v2046
        %v2048 = vrot.slane %v1976, %v2047
        %v2049 = vmul.f32 %v2039, %v2044
        %v2050 = vmul.f32 %v2039, %v2048
        %v2051 = vadd.f32 %v2032, %v2049
        %v2052 = vadd.f32 %v2033, %v2050
        %s2053 = scalar_lea.vmem %s4, 176
        %v2054 = vld [vmem:[%s2053] sm:$0xf]
        %2056 = vset.pattern.permute.xlu0 0
        %2057 = vperm.xlu0 %2056, %v2054
        %v2058 = vpop.permute.xlu0 %2057
        %v2060 = vlaneseq
        %v2061 = vshrl.u32 %v2060, 7
        %v2062 = vsub.s32 4, %v2061
        %v2063 = vrot.slane %v1975, %v2062
        %v2064 = vlaneseq
        %v2065 = vshrl.u32 %v2064, 7
        %v2066 = vsub.s32 4, %v2065
        %v2067 = vrot.slane %v1976, %v2066
        %v2068 = vmul.f32 %v2058, %v2063
        %v2069 = vmul.f32 %v2058, %v2067
        %v2070 = vadd.f32 %v2051, %v2068
        %v2071 = vadd.f32 %v2052, %v2069
        %s2072 = scalar_lea.vmem %s4, 180
        %v2073 = vld [vmem:[%s2072] sm:$0xf]
        %2075 = vset.pattern.permute.xlu0 0
        %2076 = vperm.xlu0 %2075, %v2073
        %v2077 = vpop.permute.xlu0 %2076
        %v2079 = vlaneseq
        %v2080 = vshrl.u32 %v2079, 7
        %v2081 = vsub.s32 5, %v2080
        %v2082 = vrot.slane %v1975, %v2081
        %v2083 = vlaneseq
        %v2084 = vshrl.u32 %v2083, 7
        %v2085 = vsub.s32 5, %v2084
        %v2086 = vrot.slane %v1976, %v2085
        %v2087 = vmul.f32 %v2077, %v2082
        %v2088 = vmul.f32 %v2077, %v2086
        %v2089 = vadd.f32 %v2070, %v2087
        %v2090 = vadd.f32 %v2071, %v2088
        %s2091 = scalar_lea.vmem %s4, 184
        %v2092 = vld [vmem:[%s2091] sm:$0xf]
        %2094 = vset.pattern.permute.xlu0 0
        %2095 = vperm.xlu0 %2094, %v2092
        %v2096 = vpop.permute.xlu0 %2095
        %v2098 = vlaneseq
        %v2099 = vshrl.u32 %v2098, 7
        %v2100 = vsub.s32 6, %v2099
        %v2101 = vrot.slane %v1975, %v2100
        %v2102 = vlaneseq
        %v2103 = vshrl.u32 %v2102, 7
        %v2104 = vsub.s32 6, %v2103
        %v2105 = vrot.slane %v1976, %v2104
        %v2106 = vmul.f32 %v2096, %v2101
        %v2107 = vmul.f32 %v2096, %v2105
        %v2108 = vadd.f32 %v2089, %v2106
        %v2109 = vadd.f32 %v2090, %v2107
        %s2110 = scalar_lea.vmem %s4, 188
        %v2111 = vld [vmem:[%s2110] sm:$0xf]
        %2113 = vset.pattern.permute.xlu0 0
        %2114 = vperm.xlu0 %2113, %v2111
        %v2115 = vpop.permute.xlu0 %2114
        %v2117 = vlaneseq
        %v2118 = vshrl.u32 %v2117, 7
        %v2119 = vsub.s32 7, %v2118
        %v2120 = vrot.slane %v1975, %v2119
        %v2121 = vlaneseq
        %v2122 = vshrl.u32 %v2121, 7
        %v2123 = vsub.s32 7, %v2122
        %v2124 = vrot.slane %v1976, %v2123
        %v2125 = vmul.f32 %v2115, %v2120
        %v2126 = vmul.f32 %v2115, %v2124
        %v2127 = vadd.f32 %v2108, %v2125
        %v2128 = vadd.f32 %v2109, %v2126
        %2129 = vrot.lane.b32.xlu0 %v1159, 113
        %v2130 = vpop.permute.xlu0 %2129
        %2131 = vrot.lane.b32.xlu0 %v1160, 113
        %v2132 = vpop.permute.xlu0 %2131
        %v2133 = vsel %vm894, %v2130, %v2132
        %v2136 = vsel %vm894, %v2132, 0.0
        %v2137 = vmul.f32 %v2133, %v331
        %v2138 = vmul.f32 %v2136, %v332
        %s2139 = scalar_lea.vmem %s4, 192
        %v2140 = vld [vmem:[%s2139] sm:$0xf]
        %2142 = vset.pattern.permute.xlu0 0
        %2143 = vperm.xlu0 %2142, %v2140
        %v2144 = vpop.permute.xlu0 %2143
        %v2146 = vlaneseq
        %v2147 = vshrl.u32 %v2146, 7
        %v2148 = vsub.s32 0, %v2147
        %v2149 = vrot.slane %v2137, %v2148
        %v2150 = vlaneseq
        %v2151 = vshrl.u32 %v2150, 7
        %v2152 = vsub.s32 0, %v2151
        %v2153 = vrot.slane %v2138, %v2152
        %v2154 = vmul.f32 %v2144, %v2149
        %v2155 = vmul.f32 %v2144, %v2153
        %v2156 = vadd.f32 %v2127, %v2154
        %v2157 = vadd.f32 %v2128, %v2155
        %s2158 = scalar_lea.vmem %s4, 196
        %v2159 = vld [vmem:[%s2158] sm:$0xf]
        %2161 = vset.pattern.permute.xlu0 0
        %2162 = vperm.xlu0 %2161, %v2159
        %v2163 = vpop.permute.xlu0 %2162
        %v2165 = vlaneseq
        %v2166 = vshrl.u32 %v2165, 7
        %v2167 = vsub.s32 1, %v2166
        %v2168 = vrot.slane %v2137, %v2167
        %v2169 = vlaneseq
        %v2170 = vshrl.u32 %v2169, 7
        %v2171 = vsub.s32 1, %v2170
        %v2172 = vrot.slane %v2138, %v2171
        %v2173 = vmul.f32 %v2163, %v2168
        %v2174 = vmul.f32 %v2163, %v2172
        %v2175 = vadd.f32 %v2156, %v2173
        %v2176 = vadd.f32 %v2157, %v2174
        %s2177 = scalar_lea.vmem %s4, 200
        %v2178 = vld [vmem:[%s2177] sm:$0xf]
        %2180 = vset.pattern.permute.xlu0 0
        %2181 = vperm.xlu0 %2180, %v2178
        %v2182 = vpop.permute.xlu0 %2181
        %v2184 = vlaneseq
        %v2185 = vshrl.u32 %v2184, 7
        %v2186 = vsub.s32 2, %v2185
        %v2187 = vrot.slane %v2137, %v2186
        %v2188 = vlaneseq
        %v2189 = vshrl.u32 %v2188, 7
        %v2190 = vsub.s32 2, %v2189
        %v2191 = vrot.slane %v2138, %v2190
        %v2192 = vmul.f32 %v2182, %v2187
        %v2193 = vmul.f32 %v2182, %v2191
        %v2194 = vadd.f32 %v2175, %v2192
        %v2195 = vadd.f32 %v2176, %v2193
        %s2196 = scalar_lea.vmem %s4, 204
        %v2197 = vld [vmem:[%s2196] sm:$0xf]
        %2199 = vset.pattern.permute.xlu0 0
        %2200 = vperm.xlu0 %2199, %v2197
        %v2201 = vpop.permute.xlu0 %2200
        %v2203 = vlaneseq
        %v2204 = vshrl.u32 %v2203, 7
        %v2205 = vsub.s32 3, %v2204
        %v2206 = vrot.slane %v2137, %v2205
        %v2207 = vlaneseq
        %v2208 = vshrl.u32 %v2207, 7
        %v2209 = vsub.s32 3, %v2208
        %v2210 = vrot.slane %v2138, %v2209
        %v2211 = vmul.f32 %v2201, %v2206
        %v2212 = vmul.f32 %v2201, %v2210
        %v2213 = vadd.f32 %v2194, %v2211
        %v2214 = vadd.f32 %v2195, %v2212
        %s2215 = scalar_lea.vmem %s4, 208
        %v2216 = vld [vmem:[%s2215] sm:$0xf]
        %2218 = vset.pattern.permute.xlu0 0
        %2219 = vperm.xlu0 %2218, %v2216
        %v2220 = vpop.permute.xlu0 %2219
        %v2222 = vlaneseq
        %v2223 = vshrl.u32 %v2222, 7
        %v2224 = vsub.s32 4, %v2223
        %v2225 = vrot.slane %v2137, %v2224
        %v2226 = vlaneseq
        %v2227 = vshrl.u32 %v2226, 7
        %v2228 = vsub.s32 4, %v2227
        %v2229 = vrot.slane %v2138, %v2228
        %v2230 = vmul.f32 %v2220, %v2225
        %v2231 = vmul.f32 %v2220, %v2229
        %v2232 = vadd.f32 %v2213, %v2230
        %v2233 = vadd.f32 %v2214, %v2231
        %s2234 = scalar_lea.vmem %s4, 212
        %v2235 = vld [vmem:[%s2234] sm:$0xf]
        %2237 = vset.pattern.permute.xlu0 0
        %2238 = vperm.xlu0 %2237, %v2235
        %v2239 = vpop.permute.xlu0 %2238
        %v2241 = vlaneseq
        %v2242 = vshrl.u32 %v2241, 7
        %v2243 = vsub.s32 5, %v2242
        %v2244 = vrot.slane %v2137, %v2243
        %v2245 = vlaneseq
        %v2246 = vshrl.u32 %v2245, 7
        %v2247 = vsub.s32 5, %v2246
        %v2248 = vrot.slane %v2138, %v2247
        %v2249 = vmul.f32 %v2239, %v2244
        %v2250 = vmul.f32 %v2239, %v2248
        %v2251 = vadd.f32 %v2232, %v2249
        %v2252 = vadd.f32 %v2233, %v2250
        %s2253 = scalar_lea.vmem %s4, 216
        %v2254 = vld [vmem:[%s2253] sm:$0xf]
        %2256 = vset.pattern.permute.xlu0 0
        %2257 = vperm.xlu0 %2256, %v2254
        %v2258 = vpop.permute.xlu0 %2257
        %v2260 = vlaneseq
        %v2261 = vshrl.u32 %v2260, 7
        %v2262 = vsub.s32 6, %v2261
        %v2263 = vrot.slane %v2137, %v2262
        %v2264 = vlaneseq
        %v2265 = vshrl.u32 %v2264, 7
        %v2266 = vsub.s32 6, %v2265
        %v2267 = vrot.slane %v2138, %v2266
        %v2268 = vmul.f32 %v2258, %v2263
        %v2269 = vmul.f32 %v2258, %v2267
        %v2270 = vadd.f32 %v2251, %v2268
        %v2271 = vadd.f32 %v2252, %v2269
        %s2272 = scalar_lea.vmem %s4, 220
        %v2273 = vld [vmem:[%s2272] sm:$0xf]
        %2275 = vset.pattern.permute.xlu0 0
        %2276 = vperm.xlu0 %2275, %v2273
        %v2277 = vpop.permute.xlu0 %2276
        %v2279 = vlaneseq
        %v2280 = vshrl.u32 %v2279, 7
        %v2281 = vsub.s32 7, %v2280
        %v2282 = vrot.slane %v2137, %v2281
        %v2283 = vlaneseq
        %v2284 = vshrl.u32 %v2283, 7
        %v2285 = vsub.s32 7, %v2284
        %v2286 = vrot.slane %v2138, %v2285
        %v2287 = vmul.f32 %v2277, %v2282
        %v2288 = vmul.f32 %v2277, %v2286
        %v2289 = vadd.f32 %v2270, %v2287
        %v2290 = vadd.f32 %v2271, %v2288
        %2291 = vrot.lane.b32.xlu0 %v1159, 112
        %v2292 = vpop.permute.xlu0 %2291
        %2293 = vrot.lane.b32.xlu0 %v1160, 112
        %v2294 = vpop.permute.xlu0 %2293
        %v2295 = vsel %vm981, %v2292, %v2294
        %v2298 = vsel %vm981, %v2294, 0.0
        %s2299 = scalar_lea.vmem %s4, 224
        %v2300 = vld [vmem:[%s2299] sm:$0xf]
        %2302 = vset.pattern.permute.xlu0 0
        %2303 = vperm.xlu0 %2302, %v2300
        %v2304 = vpop.permute.xlu0 %2303
        %v2306 = vlaneseq
        %v2307 = vshrl.u32 %v2306, 7
        %v2308 = vsub.s32 0, %v2307
        %v2309 = vrot.slane %v2295, %v2308
        %v2310 = vlaneseq
        %v2311 = vshrl.u32 %v2310, 7
        %v2312 = vsub.s32 0, %v2311
        %v2313 = vrot.slane %v2298, %v2312
        %v2314 = vmul.f32 %v2304, %v2309
        %v2315 = vmul.f32 %v2304, %v2313
        %v2316 = vadd.f32 %v2289, %v2314
        %v2317 = vadd.f32 %v2290, %v2315
        %s2318 = scalar_lea.vmem %s4, 228
        %v2319 = vld [vmem:[%s2318] sm:$0xf]
        %2321 = vset.pattern.permute.xlu0 0
        %2322 = vperm.xlu0 %2321, %v2319
        %v2323 = vpop.permute.xlu0 %2322
        %v2325 = vlaneseq
        %v2326 = vshrl.u32 %v2325, 7
        %v2327 = vsub.s32 1, %v2326
        %v2328 = vrot.slane %v2295, %v2327
        %v2329 = vlaneseq
        %v2330 = vshrl.u32 %v2329, 7
        %v2331 = vsub.s32 1, %v2330
        %v2332 = vrot.slane %v2298, %v2331
        %v2333 = vmul.f32 %v2323, %v2328
        %v2334 = vmul.f32 %v2323, %v2332
        %v2335 = vadd.f32 %v2316, %v2333
        %v2336 = vadd.f32 %v2317, %v2334
        %s2337 = scalar_lea.vmem %s4, 232
        %v2338 = vld [vmem:[%s2337] sm:$0xf]
        %2340 = vset.pattern.permute.xlu0 0
        %2341 = vperm.xlu0 %2340, %v2338
        %v2342 = vpop.permute.xlu0 %2341
        %v2344 = vlaneseq
        %v2345 = vshrl.u32 %v2344, 7
        %v2346 = vsub.s32 2, %v2345
        %v2347 = vrot.slane %v2295, %v2346
        %v2348 = vlaneseq
        %v2349 = vshrl.u32 %v2348, 7
        %v2350 = vsub.s32 2, %v2349
        %v2351 = vrot.slane %v2298, %v2350
        %v2352 = vmul.f32 %v2342, %v2347
        %v2353 = vmul.f32 %v2342, %v2351
        %v2354 = vadd.f32 %v2335, %v2352
        %v2355 = vadd.f32 %v2336, %v2353
        %s2356 = scalar_lea.vmem %s4, 236
        %v2357 = vld [vmem:[%s2356] sm:$0xf]
        %2359 = vset.pattern.permute.xlu0 0
        %2360 = vperm.xlu0 %2359, %v2357
        %v2361 = vpop.permute.xlu0 %2360
        %v2363 = vlaneseq
        %v2364 = vshrl.u32 %v2363, 7
        %v2365 = vsub.s32 3, %v2364
        %v2366 = vrot.slane %v2295, %v2365
        %v2367 = vlaneseq
        %v2368 = vshrl.u32 %v2367, 7
        %v2369 = vsub.s32 3, %v2368
        %v2370 = vrot.slane %v2298, %v2369
        %v2371 = vmul.f32 %v2361, %v2366
        %v2372 = vmul.f32 %v2361, %v2370
        %v2373 = vadd.f32 %v2354, %v2371
        %v2374 = vadd.f32 %v2355, %v2372
        %s2375 = scalar_lea.vmem %s4, 240
        %v2376 = vld [vmem:[%s2375] sm:$0xf]
        %2378 = vset.pattern.permute.xlu0 0
        %2379 = vperm.xlu0 %2378, %v2376
        %v2380 = vpop.permute.xlu0 %2379
        %v2382 = vlaneseq
        %v2383 = vshrl.u32 %v2382, 7
        %v2384 = vsub.s32 4, %v2383
        %v2385 = vrot.slane %v2295, %v2384
        %v2386 = vlaneseq
        %v2387 = vshrl.u32 %v2386, 7
        %v2388 = vsub.s32 4, %v2387
        %v2389 = vrot.slane %v2298, %v2388
        %v2390 = vmul.f32 %v2380, %v2385
        %v2391 = vmul.f32 %v2380, %v2389
        %v2392 = vadd.f32 %v2373, %v2390
        %v2393 = vadd.f32 %v2374, %v2391
        %s2394 = scalar_lea.vmem %s4, 244
        %v2395 = vld [vmem:[%s2394] sm:$0xf]
        %2397 = vset.pattern.permute.xlu0 0
        %2398 = vperm.xlu0 %2397, %v2395
        %v2399 = vpop.permute.xlu0 %2398
        %v2401 = vlaneseq
        %v2402 = vshrl.u32 %v2401, 7
        %v2403 = vsub.s32 5, %v2402
        %v2404 = vrot.slane %v2295, %v2403
        %v2405 = vlaneseq
        %v2406 = vshrl.u32 %v2405, 7
        %v2407 = vsub.s32 5, %v2406
        %v2408 = vrot.slane %v2298, %v2407
        %v2409 = vmul.f32 %v2399, %v2404
        %v2410 = vmul.f32 %v2399, %v2408
        %v2411 = vadd.f32 %v2392, %v2409
        %v2412 = vadd.f32 %v2393, %v2410
        %s2413 = scalar_lea.vmem %s4, 248
        %v2414 = vld [vmem:[%s2413] sm:$0xf]
        %2416 = vset.pattern.permute.xlu0 0
        %2417 = vperm.xlu0 %2416, %v2414
        %v2418 = vpop.permute.xlu0 %2417
        %v2420 = vlaneseq
        %v2421 = vshrl.u32 %v2420, 7
        %v2422 = vsub.s32 6, %v2421
        %v2423 = vrot.slane %v2295, %v2422
        %v2424 = vlaneseq
        %v2425 = vshrl.u32 %v2424, 7
        %v2426 = vsub.s32 6, %v2425
        %v2427 = vrot.slane %v2298, %v2426
        %v2428 = vmul.f32 %v2418, %v2423
        %v2429 = vmul.f32 %v2418, %v2427
        %v2430 = vadd.f32 %v2411, %v2428
        %v2431 = vadd.f32 %v2412, %v2429
        %s2432 = scalar_lea.vmem %s4, 252
        %v2433 = vld [vmem:[%s2432] sm:$0xf]
        %2435 = vset.pattern.permute.xlu0 0
        %2436 = vperm.xlu0 %2435, %v2433
        %v2437 = vpop.permute.xlu0 %2436
        %v2439 = vlaneseq
        %v2440 = vshrl.u32 %v2439, 7
        %v2441 = vsub.s32 7, %v2440
        %v2442 = vrot.slane %v2295, %v2441
        %v2443 = vlaneseq
        %v2444 = vshrl.u32 %v2443, 7
        %v2445 = vsub.s32 7, %v2444
        %v2446 = vrot.slane %v2298, %v2445
        %v2447 = vmul.f32 %v2437, %v2442
        %v2448 = vmul.f32 %v2437, %v2446
        %v2449 = vadd.f32 %v2430, %v2447
        %v2450 = vadd.f32 %v2431, %v2448
        %2451 = vrot.lane.b32.xlu0 %v1159, 111
        %v2452 = vpop.permute.xlu0 %2451
        %2453 = vrot.lane.b32.xlu0 %v1160, 111
        %v2454 = vpop.permute.xlu0 %2453
        %v2455 = vsel %vm1066, %v2452, %v2454
        %v2458 = vsel %vm1066, %v2454, 0.0
        %v2459 = vmul.f32 %v2455, %v325
        %v2460 = vmul.f32 %v2458, %v326
        %s2461 = scalar_lea.vmem %s4, 256
        %v2462 = vld [vmem:[%s2461] sm:$0xf]
        %2464 = vset.pattern.permute.xlu0 0
        %2465 = vperm.xlu0 %2464, %v2462
        %v2466 = vpop.permute.xlu0 %2465
        %v2468 = vlaneseq
        %v2469 = vshrl.u32 %v2468, 7
        %v2470 = vsub.s32 0, %v2469
        %v2471 = vrot.slane %v2459, %v2470
        %v2472 = vlaneseq
        %v2473 = vshrl.u32 %v2472, 7
        %v2474 = vsub.s32 0, %v2473
        %v2475 = vrot.slane %v2460, %v2474
        %v2476 = vmul.f32 %v2466, %v2471
        %v2477 = vmul.f32 %v2466, %v2475
        %v2478 = vadd.f32 %v2449, %v2476
        %v2479 = vadd.f32 %v2450, %v2477
        %s2480 = scalar_lea.vmem %s4, 260
        %v2481 = vld [vmem:[%s2480] sm:$0xf]
        %2483 = vset.pattern.permute.xlu0 0
        %2484 = vperm.xlu0 %2483, %v2481
        %v2485 = vpop.permute.xlu0 %2484
        %v2487 = vlaneseq
        %v2488 = vshrl.u32 %v2487, 7
        %v2489 = vsub.s32 1, %v2488
        %v2490 = vrot.slane %v2459, %v2489
        %v2491 = vlaneseq
        %v2492 = vshrl.u32 %v2491, 7
        %v2493 = vsub.s32 1, %v2492
        %v2494 = vrot.slane %v2460, %v2493
        %v2495 = vmul.f32 %v2485, %v2490
        %v2496 = vmul.f32 %v2485, %v2494
        %v2497 = vadd.f32 %v2478, %v2495
        %v2498 = vadd.f32 %v2479, %v2496
        %s2499 = scalar_lea.vmem %s4, 264
        %v2500 = vld [vmem:[%s2499] sm:$0xf]
        %2502 = vset.pattern.permute.xlu0 0
        %2503 = vperm.xlu0 %2502, %v2500
        %v2504 = vpop.permute.xlu0 %2503
        %v2506 = vlaneseq
        %v2507 = vshrl.u32 %v2506, 7
        %v2508 = vsub.s32 2, %v2507
        %v2509 = vrot.slane %v2459, %v2508
        %v2510 = vlaneseq
        %v2511 = vshrl.u32 %v2510, 7
        %v2512 = vsub.s32 2, %v2511
        %v2513 = vrot.slane %v2460, %v2512
        %v2514 = vmul.f32 %v2504, %v2509
        %v2515 = vmul.f32 %v2504, %v2513
        %v2516 = vadd.f32 %v2497, %v2514
        %v2517 = vadd.f32 %v2498, %v2515
        %s2518 = scalar_lea.vmem %s4, 268
        %v2519 = vld [vmem:[%s2518] sm:$0xf]
        %2521 = vset.pattern.permute.xlu0 0
        %2522 = vperm.xlu0 %2521, %v2519
        %v2523 = vpop.permute.xlu0 %2522
        %v2525 = vlaneseq
        %v2526 = vshrl.u32 %v2525, 7
        %v2527 = vsub.s32 3, %v2526
        %v2528 = vrot.slane %v2459, %v2527
        %v2529 = vlaneseq
        %v2530 = vshrl.u32 %v2529, 7
        %v2531 = vsub.s32 3, %v2530
        %v2532 = vrot.slane %v2460, %v2531
        %v2533 = vmul.f32 %v2523, %v2528
        %v2534 = vmul.f32 %v2523, %v2532
        %v2535 = vadd.f32 %v2516, %v2533
        %v2536 = vadd.f32 %v2517, %v2534
        %s2537 = scalar_lea.vmem %s4, 272
        %v2538 = vld [vmem:[%s2537] sm:$0xf]
        %2540 = vset.pattern.permute.xlu0 0
        %2541 = vperm.xlu0 %2540, %v2538
        %v2542 = vpop.permute.xlu0 %2541
        %v2544 = vlaneseq
        %v2545 = vshrl.u32 %v2544, 7
        %v2546 = vsub.s32 4, %v2545
        %v2547 = vrot.slane %v2459, %v2546
        %v2548 = vlaneseq
        %v2549 = vshrl.u32 %v2548, 7
        %v2550 = vsub.s32 4, %v2549
        %v2551 = vrot.slane %v2460, %v2550
        %v2552 = vmul.f32 %v2542, %v2547
        %v2553 = vmul.f32 %v2542, %v2551
        %v2554 = vadd.f32 %v2535, %v2552
        %v2555 = vadd.f32 %v2536, %v2553
        %s2556 = scalar_lea.vmem %s4, 276
        %v2557 = vld [vmem:[%s2556] sm:$0xf]
        %2559 = vset.pattern.permute.xlu0 0
        %2560 = vperm.xlu0 %2559, %v2557
        %v2561 = vpop.permute.xlu0 %2560
        %v2563 = vlaneseq
        %v2564 = vshrl.u32 %v2563, 7
        %v2565 = vsub.s32 5, %v2564
        %v2566 = vrot.slane %v2459, %v2565
        %v2567 = vlaneseq
        %v2568 = vshrl.u32 %v2567, 7
        %v2569 = vsub.s32 5, %v2568
        %v2570 = vrot.slane %v2460, %v2569
        %v2571 = vmul.f32 %v2561, %v2566
        %v2572 = vmul.f32 %v2561, %v2570
        %v2573 = vadd.f32 %v2554, %v2571
        %v2574 = vadd.f32 %v2555, %v2572
        %s2575 = scalar_lea.vmem %s4, 280
        %v2576 = vld [vmem:[%s2575] sm:$0xf]
        %2578 = vset.pattern.permute.xlu0 0
        %2579 = vperm.xlu0 %2578, %v2576
        %v2580 = vpop.permute.xlu0 %2579
        %v2582 = vlaneseq
        %v2583 = vshrl.u32 %v2582, 7
        %v2584 = vsub.s32 6, %v2583
        %v2585 = vrot.slane %v2459, %v2584
        %v2586 = vlaneseq
        %v2587 = vshrl.u32 %v2586, 7
        %v2588 = vsub.s32 6, %v2587
        %v2589 = vrot.slane %v2460, %v2588
        %v2590 = vmul.f32 %v2580, %v2585
        %v2591 = vmul.f32 %v2580, %v2589
        %v2592 = vadd.f32 %v2573, %v2590
        %v2593 = vadd.f32 %v2574, %v2591
        %s2594 = scalar_lea.vmem %s4, 284
        %v2595 = vld [vmem:[%s2594] sm:$0xf]
        %2597 = vset.pattern.permute.xlu0 0
        %2598 = vperm.xlu0 %2597, %v2595
        %v2599 = vpop.permute.xlu0 %2598
        %v2601 = vlaneseq
        %v2602 = vshrl.u32 %v2601, 7
        %v2603 = vsub.s32 7, %v2602
        %v2604 = vrot.slane %v2459, %v2603
        %v2605 = vlaneseq
        %v2606 = vshrl.u32 %v2605, 7
        %v2607 = vsub.s32 7, %v2606
        %v2608 = vrot.slane %v2460, %v2607
        %v2609 = vmul.f32 %v2599, %v2604
        %v2610 = vmul.f32 %v2599, %v2608
        %v2611 = vadd.f32 %v2592, %v2609
        %v2612 = vadd.f32 %v2593, %v2610
        %s2613 = sld [smem:[#allocation2]]
        %v2614 = vstv %s2613
        %v2615 = vmul.f32 %v2614, %v293
        %s2616 = sld [smem:[#allocation2 + $0x1]]
        %v2617 = vstv %s2616
        %v2618 = vmul.f32 %v2617, %v2611
        %v2619 = vmul.f32 %v2617, %v2612
        %v2622 = vcombine.low %v2618, %v2619
        %v2624 = vadd.f32 %v2615, %v2622
        %2625 = vst [vmem:[%s292] sm:$0xff] %v2624
        %p2626 = scmp.lt.s32.totalorder %s19, 1
        %s2627 = scalar_select %p2626, %s19, 1
        %s2628 = smul.addr %s2627, 2
        %s2629 = smul.addr %s2628, 4
        %s2630 = scalar_lea.vmem %s7, %s2629
        // Predicated region
        $region53: #{one_conv_forward.1} parent=47 // pred_check
          %p2631 = pneg %p189
        $region54: #{one_conv_forward.1} parent=47 // pred_check_branch
          %2633 = sbr.rel (%p2631) target = $region56
        $region55: #{one_conv_forward.1} parent=47 // pred_region
          _
        $region56: #{one_conv_forward.1} parent=47 // pred_fallthru
          _
      $region48: #{one_conv_forward.1} parent=5 // pred_fallthru
        _
      %p2634 = scmp.le.s32.totalorder 2, %s14
      // Predicated region
      $region57: #{one_conv_forward.1} parent=5 // pred_check
        %p2635 = pneg %p2634
      $region58: #{one_conv_forward.1} parent=5 // pred_check_branch
        %2637 = sbr.rel (%p2635) target = $region60
      $region59: #{one_conv_forward.1} parent=5 // pred_region
        %s2638 = ssub.s32 %s14, 2
        // Predicated region
        $region61: #{one_conv_forward.1} parent=59 // pred_check
          %p2639 = pneg %p195
        $region62: #{one_conv_forward.1} parent=59 // pred_check_branch
          %2641 = sbr.rel (%p2639) target = $region64
        $region63: #{one_conv_forward.1} parent=59 // pred_region
          %p2642 = scmp.lt.s32.totalorder %s20, 1
          %s2643 = scalar_select %p2642, %s20, 1
          %s2644 = smul.addr %s2643, 2
          %s2645 = smul.addr %s2644, 4
          %s2646 = scalar_lea.vmem %s7, %s2645
        $region64: #{one_conv_forward.1} parent=59 // pred_fallthru
          _
      $region60: #{one_conv_forward.1} parent=5 // pred_fallthru
        _
    $region6: #{one_conv_forward.1} parent=1 // loop_footer
      %s18 = sadd.s32 1, %s14
    $region7: #{one_conv_forward.1} parent=1 // loop_footer_branch
      %13 = sbr.rel target = $region3
    $region8: #{one_conv_forward.1} parent=1 // loop_exit
      _
    %2647 = vsyncpa [#allocation3], 1
    %s2648 = scalar_lea.sflag [#allocation3], 1
    %2649 = vsyncpa %s2648, 1

</llo_original>
